<compile_context>
chip_gen: v7x
topology: tpu7x:2x2x1
jax: 0.10.0
libtpu: 0.0.40
codegen_flags: <defaults>
</compile_context>

<pallas_src>
import jax
import jax.numpy as jnp
from jax.experimental import pallas as pl
from jax.experimental.pallas import tpu as pltpu

EPS = 1e-5


def _fused_add_conv1x1_bn_kernel(x1_ref, x2_ref, w_ref, gb_ref, o_ref):
    # x1_ref, x2_ref : (Cin, M)        full views (resident across grid steps)
    # w_ref          : (CO_BLK, Cin)   this block's 1x1-conv weights
    # gb_ref         : (CO_BLK, 2)     columns: [gamma, beta]
    # o_ref          : (CO_BLK, M)
    x = (x1_ref[...] + x2_ref[...]).astype(jnp.bfloat16)            # add (VPU)

    # 1x1 conv == matmul on the MXU; bf16 operands, f32 accumulation.
    y = jnp.dot(w_ref[...].astype(jnp.bfloat16), x,
                preferred_element_type=jnp.float32)                 # (CO_BLK, M)

    # BatchNorm2d training-mode forward, single reduction pass:
    # per-channel sums over N*H*W, biased variance over the LOGICAL M.
    inv_m = 1.0 / float(o_ref.shape[1])
    s1 = jnp.sum(y, axis=1, keepdims=True)            # (CO_BLK, 1)
    s2 = jnp.sum(y * y, axis=1, keepdims=True)        # (CO_BLK, 1)
    mean = s1 * inv_m
    var = jnp.maximum(s2 * inv_m - mean * mean, 0.0)  # clamp f32 cancellation
    inv_std = jax.lax.rsqrt(var + EPS)                # EUP slot

    gamma = gb_ref[:, 0:1]                            # (CO_BLK, 1)
    beta = gb_ref[:, 1:2]                             # (CO_BLK, 1)

    # Fold BN into a per-channel affine: 2 VPU ops per element.
    scale = gamma * inv_std
    shift = beta - mean * scale
    o_ref[...] = (y * scale + shift).astype(o_ref.dtype)


def _tensorcores_per_chip():
    # v7x has 2 TensorCores per chip; v5e/v6e have 1.
    try:
        kind = jax.devices()[0].device_kind.lower()
        if "v7" in kind:
            return 2
    except Exception:
        pass
    return 1


def fused_add_conv1x1_bn(x262, x248, weight, gamma, beta):
    """x262, x248: (N, Cin, H, W) NCHW float32.
    weight: (Cout, Cin, 1, 1) PyTorch Conv2d layout.
    gamma, beta: (Cout,).
    Returns (N, Cout, H, W) float32 (training-mode BN forward)."""
    N, Cin, H, W = x262.shape
    Cout = weight.shape[0]
    M = N * H * W

    # NCHW -> (Cin, M).  For N == 1 this is a pure (zero-cost) reshape; only
    # for N > 1 do we pay a channels-to-front transpose.
    if N == 1:
        x1 = x262.reshape(Cin, M)
        x2 = x248.reshape(Cin, M)
    else:
        x1 = jnp.transpose(x262, (1, 0, 2, 3)).reshape(Cin, M)
        x2 = jnp.transpose(x248, (1, 0, 2, 3)).reshape(Cin, M)

    w = weight.reshape(Cout, Cin)                 # zero-cost
    gb = jnp.stack([gamma, beta], axis=1)         # (Cout, 2), one DMA slab

    # Grid selection: one block per TensorCore (overhead-bound kernel).
    #   v5e/v6e (1 TC): co_blk = Cout            -> grid = (1,)
    #   v7x    (2 TC): co_blk = Cout // 2        -> grid = (2,), "parallel"
    n_tc = _tensorcores_per_chip()
    if n_tc >= 2 and Cout % (2 * 8) == 0:
        co_blk = Cout // 2
    else:
        co_blk = Cout
    grid = (Cout // co_blk,)

    cost = pl.CostEstimate(
        flops=2 * M * Cin * Cout + 6 * M * Cout + Cin * M,
        transcendentals=Cout,
        bytes_accessed=4 * (2 * Cin * M + Cin * Cout + 2 * Cout + Cout * M),
    )

    out_cm = pl.pallas_call(
        _fused_add_conv1x1_bn_kernel,
        out_shape=jax.ShapeDtypeStruct((Cout, M), jnp.float32),
        grid_spec=pltpu.PrefetchScalarGridSpec(
            num_scalar_prefetch=0,
            grid=grid,
            in_specs=[
                pl.BlockSpec((Cin, M), lambda j: (0, 0)),       # x1 (resident)
                pl.BlockSpec((Cin, M), lambda j: (0, 0)),       # x2 (resident)
                pl.BlockSpec((co_blk, Cin), lambda j: (j, 0)),  # weight tile
                pl.BlockSpec((co_blk, 2), lambda j: (j, 0)),    # [gamma|beta]
            ],
            out_specs=pl.BlockSpec((co_blk, M), lambda j: (j, 0)),
        ),
        compiler_params=pltpu.CompilerParams(
            dimension_semantics=("parallel",),
        ),
        cost_estimate=cost,
    )(x1, x2, w, gb)

    # (Cout, M) -> NCHW.  For N == 1 this is again a pure reshape.
    if N == 1:
        return out_cm.reshape(1, Cout, H, W)
    return jnp.transpose(out_cm.reshape(Cout, N, H, W), (1, 0, 2, 3))


def _reference(x262, x248, weight, gamma, beta):
    # pure-JAX f32 reference (same math as the PyTorch module, no Pallas)
    N, Cin, H, W = x262.shape
    Cout = weight.shape[0]
    x = x262 + x248
    xm = jnp.transpose(x, (0, 2, 3, 1)).reshape(-1, Cin)
    y = xm @ jnp.transpose(weight.reshape(Cout, Cin), (1, 0))
    mean = jnp.mean(y, axis=0, keepdims=True)
    var = jnp.mean((y - mean) ** 2, axis=0, keepdims=True)
    z = (y - mean) / jnp.sqrt(var + EPS) * gamma[None, :] + beta[None, :]
    return jnp.transpose(z.reshape(N, H, W, Cout), (0, 3, 1, 2))


if __name__ == "__main__":
    key = jax.random.PRNGKey(0)
    k1, k2, k3, k4, k5 = jax.random.split(key, 5)

    N, Cin, H, W = 1, 128, 14, 14
    Cout = 768

    x262 = jax.random.normal(k1, (N, Cin, H, W), dtype=jnp.float32)
    x248 = jax.random.normal(k2, (N, Cin, H, W), dtype=jnp.float32)

    # deterministic parameter init (synthetic, not a checkpoint load)
    weight = jax.random.normal(k3, (Cout, Cin, 1, 1), dtype=jnp.float32) * 0.05
    gamma = 1.0 + 0.1 * jax.random.normal(k4, (Cout,), dtype=jnp.float32)
    beta = 0.1 * jax.random.normal(k5, (Cout,), dtype=jnp.float32)

    out = fused_add_conv1x1_bn(x262, x248, weight, gamma, beta)
    out = jax.block_until_ready(out)

    ref = _reference(x262, x248, weight, gamma, beta)
    assert out.shape == (N, Cout, H, W)
    # bf16 MXU operands (f32 accumulation) vs. the f32 reference: loosen
    # tolerance slightly; BN-normalized outputs are O(1).
    assert jnp.allclose(out, ref, atol=2e-2, rtol=2e-2)

    print("KERNEL_OK")
</pallas_src>

<mosaic_0001>
module attributes {stable_mosaic.version = 11 : i64} {
  func.func @_fused_add_conv1x1_bn_kernel(%arg0: i32, %arg1: memref<128x196xf32, #tpu.memory_space<vmem>>, %arg2: memref<128x196xf32, #tpu.memory_space<vmem>>, %arg3: memref<768x128xf32, #tpu.memory_space<vmem>>, %arg4: memref<768x2xf32, #tpu.memory_space<vmem>>, %arg5: memref<768x196xf32, #tpu.memory_space<vmem>>) attributes {dimension_semantics = [#tpu.dimension_semantics<parallel>], iteration_bounds = array<i64: 1>, scalar_prefetch = 0 : i64, scratch_operands = 0 : i64, tpu.core_type = #tpu.core_type<tc>, window_params = [{pipeline_mode = #tpu.pipeline_mode<synchronous>, transform_indices = @transform_0, window_bounds = array<i64: 128, 196>}, {pipeline_mode = #tpu.pipeline_mode<synchronous>, transform_indices = @transform_1, window_bounds = array<i64: 128, 196>}, {transform_indices = @transform_2, window_bounds = array<i64: 768, 128>}, {transform_indices = @transform_3, window_bounds = array<i64: 768, 2>}, {transform_indices = @transform_4, window_bounds = array<i64: 768, 196>}]} {
    %c0 = arith.constant 0 : index
    %c0_0 = arith.constant 0 : index
    %0 = vector.load %arg1[%c0, %c0_0] : memref<128x196xf32, #tpu.memory_space<vmem>>, vector<128x196xf32>
    %c0_1 = arith.constant 0 : index
    %c0_2 = arith.constant 0 : index
    %1 = vector.load %arg2[%c0_1, %c0_2] : memref<128x196xf32, #tpu.memory_space<vmem>>, vector<128x196xf32>
    %2 = arith.addf %0, %1 : vector<128x196xf32>
    %3 = arith.truncf %2 : vector<128x196xf32> to vector<128x196xbf16>
    %c0_3 = arith.constant 0 : index
    %c0_4 = arith.constant 0 : index
    %4 = vector.load %arg3[%c0_3, %c0_4] : memref<768x128xf32, #tpu.memory_space<vmem>>, vector<768x128xf32>
    %5 = arith.truncf %4 : vector<768x128xf32> to vector<768x128xbf16>
    %cst = arith.constant dense<0.000000e+00> : vector<768x196xf32>
    %6 = tpu.matmul %5, %3, %cst {dimension_numbers = #tpu.dot_dimension_numbers<[1], [0], [0], [1], [0, 0, 1, 1], [], []>} : vector<768x128xbf16>, vector<128x196xbf16>, vector<768x196xf32> -> vector<768x196xf32>
    %cst_5 = arith.constant dense<0.000000e+00> : vector<768xf32>
    %7 = vector.multi_reduction <add>, %6, %cst_5 [1] : vector<768x196xf32> to vector<768xf32>
    %8 = vector.shape_cast %7 : vector<768xf32> to vector<768x1xf32>
    %9 = arith.mulf %6, %6 : vector<768x196xf32>
    %cst_6 = arith.constant dense<0.000000e+00> : vector<768xf32>
    %10 = vector.multi_reduction <add>, %9, %cst_6 [1] : vector<768x196xf32> to vector<768xf32>
    %11 = vector.shape_cast %10 : vector<768xf32> to vector<768x1xf32>
    %cst_7 = arith.constant 0.00510204071 : f32
    %12 = vector.broadcast %cst_7 : f32 to vector<768x1xf32>
    %13 = arith.mulf %8, %12 : vector<768x1xf32>
    %cst_8 = arith.constant 0.00510204071 : f32
    %14 = vector.broadcast %cst_8 : f32 to vector<768x1xf32>
    %15 = arith.mulf %11, %14 : vector<768x1xf32>
    %16 = arith.mulf %13, %13 : vector<768x1xf32>
    %17 = arith.subf %15, %16 : vector<768x1xf32>
    %cst_9 = arith.constant 0.000000e+00 : f32
    %18 = vector.broadcast %cst_9 : f32 to vector<768x1xf32>
    %19 = arith.maximumf %17, %18 : vector<768x1xf32>
    %cst_10 = arith.constant 9.99999974E-6 : f32
    %20 = vector.broadcast %cst_10 : f32 to vector<768x1xf32>
    %21 = arith.addf %19, %20 : vector<768x1xf32>
    %22 = math.rsqrt %21 : vector<768x1xf32>
    %c0_11 = arith.constant 0 : index
    %c0_12 = arith.constant 0 : index
    %23 = vector.load %arg4[%c0_11, %c0_12] : memref<768x2xf32, #tpu.memory_space<vmem>>, vector<768x1xf32>
    %c0_13 = arith.constant 0 : index
    %c1 = arith.constant 1 : index
    %24 = vector.load %arg4[%c0_13, %c1] : memref<768x2xf32, #tpu.memory_space<vmem>>, vector<768x1xf32>
    %25 = arith.mulf %23, %22 : vector<768x1xf32>
    %26 = arith.mulf %13, %25 : vector<768x1xf32>
    %27 = arith.subf %24, %26 : vector<768x1xf32>
    %28 = vector.broadcast %25 : vector<768x1xf32> to vector<768x196xf32>
    %29 = arith.mulf %6, %28 : vector<768x196xf32>
    %30 = vector.broadcast %27 : vector<768x1xf32> to vector<768x196xf32>
    %31 = arith.addf %29, %30 : vector<768x196xf32>
    %c0_14 = arith.constant 0 : index
    %c0_15 = arith.constant 0 : index
    %32 = vector.load %arg5[%c0_14, %c0_15] : memref<768x196xf32, #tpu.memory_space<vmem>>, vector<768x196xf32>
    tpu.vector_store %arg5[%c0_14, %c0_15], %31 {strides = array<i32>} : memref<768x196xf32, #tpu.memory_space<vmem>>, vector<768x196xf32>,
    return
  }
  func.func @transform_0(%arg0: i32) -> (i32, i32) {
    %c0_i32 = arith.constant 0 : i32
    %c0_i32_0 = arith.constant 0 : i32
    %c0_i32_1 = arith.constant 0 : i32
    return %c0_i32, %c0_i32_0 : i32, i32
  }
  func.func @transform_1(%arg0: i32) -> (i32, i32) {
    %c0_i32 = arith.constant 0 : i32
    %c0_i32_0 = arith.constant 0 : i32
    %c0_i32_1 = arith.constant 0 : i32
    return %c0_i32, %c0_i32_0 : i32, i32
  }
  func.func @transform_2(%arg0: i32) -> (i32, i32) {
    %c0_i32 = arith.constant 0 : i32
    %c0_i32_0 = arith.constant 0 : i32
    return %arg0, %c0_i32 : i32, i32
  }
  func.func @transform_3(%arg0: i32) -> (i32, i32) {
    %c0_i32 = arith.constant 0 : i32
    %c0_i32_0 = arith.constant 0 : i32
    return %arg0, %c0_i32 : i32, i32
  }
  func.func @transform_4(%arg0: i32) -> (i32, i32) {
    %c0_i32 = arith.constant 0 : i32
    %c0_i32_0 = arith.constant 0 : i32
    return %arg0, %c0_i32 : i32, i32
  }
}

</mosaic_0001>

<llo_original>
// kernel: tpu_custom_call.1
$region0: #{tpu_custom_call.1}
  #allocation0 [shape = 'u32[]', space=smem, size = 0x4, offset = 0x4, fixed_abs, tag = 'smem constant byte address 0x4 - core index']
  #allocation1 [shape = 'u32[144,128]{1,0:T(1,128)}', space=vmem, size = 0x12000, scoped, tag = 'internal scratch']
  %s0 = inlined_call_operand.vmem [shape: f32[128,196], index: 0, kind: input, shape index: {}]
  %s1 = inlined_call_operand.vmem [shape: f32[128,196], index: 1, kind: input, shape index: {}]
  %s2 = inlined_call_operand.vmem [shape: f32[768,128], index: 2, kind: input, shape index: {}]
  %s3 = inlined_call_operand.vmem [shape: f32[768,2], index: 3, kind: input, shape index: {}]
  %s4 = inlined_call_operand.vmem [shape: f32[768,196], index: 4, kind: output, shape index: {}]
  %s5 = sld [smem:[#allocation0]]
  $region26: #{tpu_custom_call.1} parent=0
    _
  %s7 = ssub.s32 1, %s5
  %s8 = scalar_select 0, %s7, %s5
  // Predicated region
  $region2: #{tpu_custom_call.1} parent=0 // pred_check
    _
  $region3: #{tpu_custom_call.1} parent=0 // pred_check_branch
    %10 = sbr.rel (0) target = $region5
  $region4: #{tpu_custom_call.1} parent=0 // pred_region
    _
  $region5: #{tpu_custom_call.1} parent=0 // pred_fallthru
    _
  // Predicated region
  $region6: #{tpu_custom_call.1} parent=0 // pred_check
    _
  $region7: #{tpu_custom_call.1} parent=0 // pred_check_branch
    %12 = sbr.rel (0) target = $region9
  $region8: #{tpu_custom_call.1} parent=0 // pred_region
    _
  $region9: #{tpu_custom_call.1} parent=0 // pred_fallthru
    _
  // Predicated region
  $region10: #{tpu_custom_call.1} parent=0 // pred_check
    _
  $region11: #{tpu_custom_call.1} parent=0 // pred_check_branch
    %14 = sbr.rel (0) target = $region13
  $region12: #{tpu_custom_call.1} parent=0 // pred_region
    _
  $region13: #{tpu_custom_call.1} parent=0 // pred_fallthru
    _
  // Predicated region
  $region14: #{tpu_custom_call.1} parent=0 // pred_check
    _
  $region15: #{tpu_custom_call.1} parent=0 // pred_check_branch
    %16 = sbr.rel (0) target = $region17
  $region16: #{tpu_custom_call.1} parent=0 // pred_region
    _
  $region17: #{tpu_custom_call.1} parent=0 // pred_fallthru
    _
  %v18 = vld [vmem:[%s0] sm:$0xff]
  %v19 = vld [vmem:[%s0 + $0x8] sm:$0xff]
  %v20 = vld [vmem:[%s0 + $0x10] sm:$0xff]
  %v21 = vld [vmem:[%s0 + $0x18] sm:$0xff]
  %v22 = vld [vmem:[%s0 + $0x20] sm:$0xff]
  %v23 = vld [vmem:[%s0 + $0x28] sm:$0xff]
  %v24 = vld [vmem:[%s0 + $0x30] sm:$0xff]
  %v25 = vld [vmem:[%s0 + $0x38] sm:$0xff]
  %v26 = vld [vmem:[%s0 + $0x40] sm:$0xff]
  %v27 = vld [vmem:[%s0 + $0x48] sm:$0xff]
  %v28 = vld [vmem:[%s0 + $0x50] sm:$0xff]
  %v29 = vld [vmem:[%s0 + $0x58] sm:$0xff]
  %v30 = vld [vmem:[%s0 + $0x60] sm:$0xff]
  %v31 = vld [vmem:[%s0 + $0x68] sm:$0xff]
  %v32 = vld [vmem:[%s0 + $0x70] sm:$0xff]
  %v33 = vld [vmem:[%s0 + $0x78] sm:$0xff]
  %v34 = vld [vmem:[%s0 + $0x80] sm:$0xff]
  %v35 = vld [vmem:[%s0 + $0x88] sm:$0xff]
  %v36 = vld [vmem:[%s0 + $0x90] sm:$0xff]
  %v37 = vld [vmem:[%s0 + $0x98] sm:$0xff]
  %v38 = vld [vmem:[%s0 + $0xa0] sm:$0xff]
  %v39 = vld [vmem:[%s0 + $0xa8] sm:$0xff]
  %v40 = vld [vmem:[%s0 + $0xb0] sm:$0xff]
  %v41 = vld [vmem:[%s0 + $0xb8] sm:$0xff]
  %v42 = vld [vmem:[%s0 + $0xc0] sm:$0xff]
  %v43 = vld [vmem:[%s0 + $0xc8] sm:$0xff]
  %v44 = vld [vmem:[%s0 + $0xd0] sm:$0xff]
  %v45 = vld [vmem:[%s0 + $0xd8] sm:$0xff]
  %v46 = vld [vmem:[%s0 + $0xe0] sm:$0xff]
  %v47 = vld [vmem:[%s0 + $0xe8] sm:$0xff]
  %v48 = vld [vmem:[%s0 + $0xf0] sm:$0xff]
  %v49 = vld [vmem:[%s0 + $0xf8] sm:$0xff]
  %v50 = vld [vmem:[%s1] sm:$0xff]
  %v51 = vld [vmem:[%s1 + $0x8] sm:$0xff]
  %v52 = vld [vmem:[%s1 + $0x10] sm:$0xff]
  %v53 = vld [vmem:[%s1 + $0x18] sm:$0xff]
  %v54 = vld [vmem:[%s1 + $0x20] sm:$0xff]
  %v55 = vld [vmem:[%s1 + $0x28] sm:$0xff]
  %v56 = vld [vmem:[%s1 + $0x30] sm:$0xff]
  %v57 = vld [vmem:[%s1 + $0x38] sm:$0xff]
  %v58 = vld [vmem:[%s1 + $0x40] sm:$0xff]
  %v59 = vld [vmem:[%s1 + $0x48] sm:$0xff]
  %v60 = vld [vmem:[%s1 + $0x50] sm:$0xff]
  %v61 = vld [vmem:[%s1 + $0x58] sm:$0xff]
  %v62 = vld [vmem:[%s1 + $0x60] sm:$0xff]
  %v63 = vld [vmem:[%s1 + $0x68] sm:$0xff]
  %v64 = vld [vmem:[%s1 + $0x70] sm:$0xff]
  %v65 = vld [vmem:[%s1 + $0x78] sm:$0xff]
  %v66 = vld [vmem:[%s1 + $0x80] sm:$0xff]
  %v67 = vld [vmem:[%s1 + $0x88] sm:$0xff]
  %v68 = vld [vmem:[%s1 + $0x90] sm:$0xff]
  %v69 = vld [vmem:[%s1 + $0x98] sm:$0xff]
  %v70 = vld [vmem:[%s1 + $0xa0] sm:$0xff]
  %v71 = vld [vmem:[%s1 + $0xa8] sm:$0xff]
  %v72 = vld [vmem:[%s1 + $0xb0] sm:$0xff]
  %v73 = vld [vmem:[%s1 + $0xb8] sm:$0xff]
  %v74 = vld [vmem:[%s1 + $0xc0] sm:$0xff]
  %v75 = vld [vmem:[%s1 + $0xc8] sm:$0xff]
  %v76 = vld [vmem:[%s1 + $0xd0] sm:$0xff]
  %v77 = vld [vmem:[%s1 + $0xd8] sm:$0xff]
  %v78 = vld [vmem:[%s1 + $0xe0] sm:$0xff]
  %v79 = vld [vmem:[%s1 + $0xe8] sm:$0xff]
  %v80 = vld [vmem:[%s1 + $0xf0] sm:$0xff]
  %v81 = vld [vmem:[%s1 + $0xf8] sm:$0xff]
  %v82 = vadd.f32 %v18, %v50
  %v83 = vadd.f32 %v19, %v51
  %v84 = vadd.f32 %v20, %v52
  %v85 = vadd.f32 %v21, %v53
  %v86 = vadd.f32 %v22, %v54
  %v87 = vadd.f32 %v23, %v55
  %v88 = vadd.f32 %v24, %v56
  %v89 = vadd.f32 %v25, %v57
  %v90 = vadd.f32 %v26, %v58
  %v91 = vadd.f32 %v27, %v59
  %v92 = vadd.f32 %v28, %v60
  %v93 = vadd.f32 %v29, %v61
  %v94 = vadd.f32 %v30, %v62
  %v95 = vadd.f32 %v31, %v63
  %v96 = vadd.f32 %v32, %v64
  %v97 = vadd.f32 %v33, %v65
  %v98 = vadd.f32 %v34, %v66
  %v99 = vadd.f32 %v35, %v67
  %v100 = vadd.f32 %v36, %v68
  %v101 = vadd.f32 %v37, %v69
  %v102 = vadd.f32 %v38, %v70
  %v103 = vadd.f32 %v39, %v71
  %v104 = vadd.f32 %v40, %v72
  %v105 = vadd.f32 %v41, %v73
  %v106 = vadd.f32 %v42, %v74
  %v107 = vadd.f32 %v43, %v75
  %v108 = vadd.f32 %v44, %v76
  %v109 = vadd.f32 %v45, %v77
  %v110 = vadd.f32 %v46, %v78
  %v111 = vadd.f32 %v47, %v79
  %v112 = vadd.f32 %v48, %v80
  %v113 = vadd.f32 %v49, %v81
  %v114 = vpack.c.bf16 %v84, %v82
  %v115 = vpack.c.bf16 %v85, %v83
  %v116 = vpack.c.bf16 %v88, %v86
  %v117 = vpack.c.bf16 %v89, %v87
  %v118 = vpack.c.bf16 %v92, %v90
  %v119 = vpack.c.bf16 %v93, %v91
  %v120 = vpack.c.bf16 %v96, %v94
  %v121 = vpack.c.bf16 %v97, %v95
  %v122 = vpack.c.bf16 %v100, %v98
  %v123 = vpack.c.bf16 %v101, %v99
  %v124 = vpack.c.bf16 %v104, %v102
  %v125 = vpack.c.bf16 %v105, %v103
  %v126 = vpack.c.bf16 %v108, %v106
  %v127 = vpack.c.bf16 %v109, %v107
  %v128 = vpack.c.bf16 %v112, %v110
  %v129 = vpack.c.bf16 %v113, %v111
  %v130 = vld [vmem:[%s2] sm:$0xff]
  %v131 = vld [vmem:[%s2 + $0x8] sm:$0xff]
  %v132 = vld [vmem:[%s2 + $0x10] sm:$0xff]
  %v133 = vld [vmem:[%s2 + $0x18] sm:$0xff]
  %v134 = vld [vmem:[%s2 + $0x20] sm:$0xff]
  %v135 = vld [vmem:[%s2 + $0x28] sm:$0xff]
  %v136 = vld [vmem:[%s2 + $0x30] sm:$0xff]
  %v137 = vld [vmem:[%s2 + $0x38] sm:$0xff]
  %v138 = vld [vmem:[%s2 + $0x40] sm:$0xff]
  %v139 = vld [vmem:[%s2 + $0x48] sm:$0xff]
  %v140 = vld [vmem:[%s2 + $0x50] sm:$0xff]
  %v141 = vld [vmem:[%s2 + $0x58] sm:$0xff]
  %v142 = vld [vmem:[%s2 + $0x60] sm:$0xff]
  %v143 = vld [vmem:[%s2 + $0x68] sm:$0xff]
  %v144 = vld [vmem:[%s2 + $0x70] sm:$0xff]
  %v145 = vld [vmem:[%s2 + $0x78] sm:$0xff]
  %v146 = vld [vmem:[%s2 + $0x80] sm:$0xff]
  %v147 = vld [vmem:[%s2 + $0x88] sm:$0xff]
  %v148 = vld [vmem:[%s2 + $0x90] sm:$0xff]
  %v149 = vld [vmem:[%s2 + $0x98] sm:$0xff]
  %v150 = vld [vmem:[%s2 + $0xa0] sm:$0xff]
  %v151 = vld [vmem:[%s2 + $0xa8] sm:$0xff]
  %v152 = vld [vmem:[%s2 + $0xb0] sm:$0xff]
  %v153 = vld [vmem:[%s2 + $0xb8] sm:$0xff]
  %v154 = vld [vmem:[%s2 + $0xc0] sm:$0xff]
  %v155 = vld [vmem:[%s2 + $0xc8] sm:$0xff]
  %v156 = vld [vmem:[%s2 + $0xd0] sm:$0xff]
  %v157 = vld [vmem:[%s2 + $0xd8] sm:$0xff]
  %v158 = vld [vmem:[%s2 + $0xe0] sm:$0xff]
  %v159 = vld [vmem:[%s2 + $0xe8] sm:$0xff]
  %v160 = vld [vmem:[%s2 + $0xf0] sm:$0xff]
  %v161 = vld [vmem:[%s2 + $0xf8] sm:$0xff]
  %v162 = vld [vmem:[%s2 + $0x100] sm:$0xff]
  %v163 = vld [vmem:[%s2 + $0x108] sm:$0xff]
  %v164 = vld [vmem:[%s2 + $0x110] sm:$0xff]
  %v165 = vld [vmem:[%s2 + $0x118] sm:$0xff]
  %v166 = vld [vmem:[%s2 + $0x120] sm:$0xff]
  %v167 = vld [vmem:[%s2 + $0x128] sm:$0xff]
  %v168 = vld [vmem:[%s2 + $0x130] sm:$0xff]
  %v169 = vld [vmem:[%s2 + $0x138] sm:$0xff]
  %v170 = vld [vmem:[%s2 + $0x140] sm:$0xff]
  %v171 = vld [vmem:[%s2 + $0x148] sm:$0xff]
  %v172 = vld [vmem:[%s2 + $0x150] sm:$0xff]
  %v173 = vld [vmem:[%s2 + $0x158] sm:$0xff]
  %v174 = vld [vmem:[%s2 + $0x160] sm:$0xff]
  %v175 = vld [vmem:[%s2 + $0x168] sm:$0xff]
  %v176 = vld [vmem:[%s2 + $0x170] sm:$0xff]
  %v177 = vld [vmem:[%s2 + $0x178] sm:$0xff]
  %v178 = vld [vmem:[%s2 + $0x180] sm:$0xff]
  %v179 = vld [vmem:[%s2 + $0x188] sm:$0xff]
  %v180 = vld [vmem:[%s2 + $0x190] sm:$0xff]
  %v181 = vld [vmem:[%s2 + $0x198] sm:$0xff]
  %v182 = vld [vmem:[%s2 + $0x1a0] sm:$0xff]
  %v183 = vld [vmem:[%s2 + $0x1a8] sm:$0xff]
  %v184 = vld [vmem:[%s2 + $0x1b0] sm:$0xff]
  %v185 = vld [vmem:[%s2 + $0x1b8] sm:$0xff]
  %v186 = vld [vmem:[%s2 + $0x1c0] sm:$0xff]
  %v187 = vld [vmem:[%s2 + $0x1c8] sm:$0xff]
  %v188 = vld [vmem:[%s2 + $0x1d0] sm:$0xff]
  %v189 = vld [vmem:[%s2 + $0x1d8] sm:$0xff]
  %v190 = vld [vmem:[%s2 + $0x1e0] sm:$0xff]
  %v191 = vld [vmem:[%s2 + $0x1e8] sm:$0xff]
  %v192 = vld [vmem:[%s2 + $0x1f0] sm:$0xff]
  %v193 = vld [vmem:[%s2 + $0x1f8] sm:$0xff]
  %v194 = vld [vmem:[%s2 + $0x200] sm:$0xff]
  %v195 = vld [vmem:[%s2 + $0x208] sm:$0xff]
  %v196 = vld [vmem:[%s2 + $0x210] sm:$0xff]
  %v197 = vld [vmem:[%s2 + $0x218] sm:$0xff]
  %v198 = vld [vmem:[%s2 + $0x220] sm:$0xff]
  %v199 = vld [vmem:[%s2 + $0x228] sm:$0xff]
  %v200 = vld [vmem:[%s2 + $0x230] sm:$0xff]
  %v201 = vld [vmem:[%s2 + $0x238] sm:$0xff]
  %v202 = vld [vmem:[%s2 + $0x240] sm:$0xff]
  %v203 = vld [vmem:[%s2 + $0x248] sm:$0xff]
  %v204 = vld [vmem:[%s2 + $0x250] sm:$0xff]
  %v205 = vld [vmem:[%s2 + $0x258] sm:$0xff]
  %v206 = vld [vmem:[%s2 + $0x260] sm:$0xff]
  %v207 = vld [vmem:[%s2 + $0x268] sm:$0xff]
  %v208 = vld [vmem:[%s2 + $0x270] sm:$0xff]
  %v209 = vld [vmem:[%s2 + $0x278] sm:$0xff]
  %v210 = vld [vmem:[%s2 + $0x280] sm:$0xff]
  %v211 = vld [vmem:[%s2 + $0x288] sm:$0xff]
  %v212 = vld [vmem:[%s2 + $0x290] sm:$0xff]
  %v213 = vld [vmem:[%s2 + $0x298] sm:$0xff]
  %v214 = vld [vmem:[%s2 + $0x2a0] sm:$0xff]
  %v215 = vld [vmem:[%s2 + $0x2a8] sm:$0xff]
  %v216 = vld [vmem:[%s2 + $0x2b0] sm:$0xff]
  %v217 = vld [vmem:[%s2 + $0x2b8] sm:$0xff]
  %v218 = vld [vmem:[%s2 + $0x2c0] sm:$0xff]
  %v219 = vld [vmem:[%s2 + $0x2c8] sm:$0xff]
  %v220 = vld [vmem:[%s2 + $0x2d0] sm:$0xff]
  %v221 = vld [vmem:[%s2 + $0x2d8] sm:$0xff]
  %v222 = vld [vmem:[%s2 + $0x2e0] sm:$0xff]
  %v223 = vld [vmem:[%s2 + $0x2e8] sm:$0xff]
  %v224 = vld [vmem:[%s2 + $0x2f0] sm:$0xff]
  %v225 = vld [vmem:[%s2 + $0x2f8] sm:$0xff]
  %v226 = vpack.c.bf16 %v131, %v130
  %v227 = vpack.c.bf16 %v133, %v132
  %v228 = vpack.c.bf16 %v135, %v134
  %v229 = vpack.c.bf16 %v137, %v136
  %v230 = vpack.c.bf16 %v139, %v138
  %v231 = vpack.c.bf16 %v141, %v140
  %v232 = vpack.c.bf16 %v143, %v142
  %v233 = vpack.c.bf16 %v145, %v144
  %v234 = vpack.c.bf16 %v147, %v146
  %v235 = vpack.c.bf16 %v149, %v148
  %v236 = vpack.c.bf16 %v151, %v150
  %v237 = vpack.c.bf16 %v153, %v152
  %v238 = vpack.c.bf16 %v155, %v154
  %v239 = vpack.c.bf16 %v157, %v156
  %v240 = vpack.c.bf16 %v159, %v158
  %v241 = vpack.c.bf16 %v161, %v160
  %v242 = vpack.c.bf16 %v163, %v162
  %v243 = vpack.c.bf16 %v165, %v164
  %v244 = vpack.c.bf16 %v167, %v166
  %v245 = vpack.c.bf16 %v169, %v168
  %v246 = vpack.c.bf16 %v171, %v170
  %v247 = vpack.c.bf16 %v173, %v172
  %v248 = vpack.c.bf16 %v175, %v174
  %v249 = vpack.c.bf16 %v177, %v176
  %v250 = vpack.c.bf16 %v179, %v178
  %v251 = vpack.c.bf16 %v181, %v180
  %v252 = vpack.c.bf16 %v183, %v182
  %v253 = vpack.c.bf16 %v185, %v184
  %v254 = vpack.c.bf16 %v187, %v186
  %v255 = vpack.c.bf16 %v189, %v188
  %v256 = vpack.c.bf16 %v191, %v190
  %v257 = vpack.c.bf16 %v193, %v192
  %v258 = vpack.c.bf16 %v195, %v194
  %v259 = vpack.c.bf16 %v197, %v196
  %v260 = vpack.c.bf16 %v199, %v198
  %v261 = vpack.c.bf16 %v201, %v200
  %v262 = vpack.c.bf16 %v203, %v202
  %v263 = vpack.c.bf16 %v205, %v204
  %v264 = vpack.c.bf16 %v207, %v206
  %v265 = vpack.c.bf16 %v209, %v208
  %v266 = vpack.c.bf16 %v211, %v210
  %v267 = vpack.c.bf16 %v213, %v212
  %v268 = vpack.c.bf16 %v215, %v214
  %v269 = vpack.c.bf16 %v217, %v216
  %v270 = vpack.c.bf16 %v219, %v218
  %v271 = vpack.c.bf16 %v221, %v220
  %v272 = vpack.c.bf16 %v223, %v222
  %v273 = vpack.c.bf16 %v225, %v224
  %274 = vmatprep.subr.bf16.mxu0 %v115
  %275 = vmatpush1.bf16.msra.mxu0 %v114
  %276 = vmatprep.subr.bf16.mxu0 %v117
  %277 = vmatpush1.bf16.msra.mxu0 %v116
  %278 = vmatprep.subr.bf16.mxu0 %v119
  %279 = vmatpush1.bf16.msra.mxu0 %v118
  %280 = vmatprep.subr.bf16.mxu0 %v121
  %281 = vmatpush1.bf16.msra.mxu0 %v120
  %282 = vmatprep.subr.bf16.mxu0 %v123
  %283 = vmatpush1.bf16.msra.mxu0 %v122
  %284 = vmatprep.subr.bf16.mxu0 %v125
  %285 = vmatpush1.bf16.msra.mxu0 %v124
  %286 = vmatprep.subr.bf16.mxu0 %v127
  %287 = vmatpush1.bf16.msra.mxu0 %v126
  %288 = vmatprep.subr.bf16.mxu0 %v129
  %289 = vmatpush1.bf16.msra.mxu0 %v128
  %290 = vmatprep.subr.bf16.mxu0 0
  %291 = vmatpush1.bf16.msra.mxu0 0
  %292 = vmatprep.subr.bf16.mxu0 0
  %293 = vmatpush1.bf16.msra.mxu0 0
  %294 = vmatprep.subr.bf16.mxu0 0
  %295 = vmatpush1.bf16.msra.mxu0 0
  %296 = vmatprep.subr.bf16.mxu0 0
  %297 = vmatpush1.bf16.msra.mxu0 0
  %298 = vmatprep.subr.bf16.mxu0 0
  %299 = vmatpush1.bf16.msra.mxu0 0
  %300 = vmatprep.subr.bf16.mxu0 0
  %301 = vmatpush1.bf16.msra.mxu0 0
  %302 = vmatprep.subr.bf16.mxu0 0
  %303 = vmatpush1.bf16.msra.mxu0 0
  %304 = vmatprep.subr.bf16.mxu0 0
  %305 = vmatpush1.bf16.msra.mxu0 0
  %306 = vmatprep.mubr.bf16.mxu0 0
  %307 = vmatmul.mubr.bf16.gmra.mrb[0].mxu0 %v226
  %v308 = vpop.f32.mrb[0].mxu0
  %v309 = vadd.f32 0.0, %v308
  %v310 = vpop.f32.mrb[0].mxu0
  %v311 = vadd.f32 0.0, %v310
  %v312 = vpop.f32.mrb[0].mxu0
  %v313 = vadd.f32 0.0, %v312
  %v314 = vpop.f32.mrb[0].mxu0
  %v315 = vadd.f32 0.0, %v314
  %316 = vmatprep.mubr.bf16.mxu0 0
  %317 = vmatmul.mubr.bf16.gmra.mrb[0].mxu0 %v227
  %v318 = vpop.f32.mrb[0].mxu0
  %v319 = vadd.f32 0.0, %v318
  %v320 = vpop.f32.mrb[0].mxu0
  %v321 = vadd.f32 0.0, %v320
  %v322 = vpop.f32.mrb[0].mxu0
  %v323 = vadd.f32 0.0, %v322
  %v324 = vpop.f32.mrb[0].mxu0
  %v325 = vadd.f32 0.0, %v324
  %326 = vmatprep.mubr.bf16.mxu0 0
  %327 = vmatmul.mubr.bf16.gmra.mrb[0].mxu0 %v228
  %v328 = vpop.f32.mrb[0].mxu0
  %v329 = vadd.f32 0.0, %v328
  %v330 = vpop.f32.mrb[0].mxu0
  %v331 = vadd.f32 0.0, %v330
  %v332 = vpop.f32.mrb[0].mxu0
  %v333 = vadd.f32 0.0, %v332
  %v334 = vpop.f32.mrb[0].mxu0
  %v335 = vadd.f32 0.0, %v334
  %336 = vmatprep.mubr.bf16.mxu0 0
  %337 = vmatmul.mubr.bf16.gmra.mrb[0].mxu0 %v229
  %v338 = vpop.f32.mrb[0].mxu0
  %v339 = vadd.f32 0.0, %v338
  %v340 = vpop.f32.mrb[0].mxu0
  %v341 = vadd.f32 0.0, %v340
  %v342 = vpop.f32.mrb[0].mxu0
  %v343 = vadd.f32 0.0, %v342
  %v344 = vpop.f32.mrb[0].mxu0
  %v345 = vadd.f32 0.0, %v344
  %346 = vmatprep.mubr.bf16.mxu0 0
  %347 = vmatmul.mubr.bf16.gmra.mrb[0].mxu0 %v230
  %v348 = vpop.f32.mrb[0].mxu0
  %v349 = vadd.f32 0.0, %v348
  %v350 = vpop.f32.mrb[0].mxu0
  %v351 = vadd.f32 0.0, %v350
  %v352 = vpop.f32.mrb[0].mxu0
  %v353 = vadd.f32 0.0, %v352
  %v354 = vpop.f32.mrb[0].mxu0
  %v355 = vadd.f32 0.0, %v354
  %356 = vmatprep.mubr.bf16.mxu0 0
  %357 = vmatmul.mubr.bf16.gmra.mrb[0].mxu0 %v231
  %v358 = vpop.f32.mrb[0].mxu0
  %v359 = vadd.f32 0.0, %v358
  %v360 = vpop.f32.mrb[0].mxu0
  %v361 = vadd.f32 0.0, %v360
  %v362 = vpop.f32.mrb[0].mxu0
  %v363 = vadd.f32 0.0, %v362
  %v364 = vpop.f32.mrb[0].mxu0
  %v365 = vadd.f32 0.0, %v364
  %366 = vmatprep.mubr.bf16.mxu0 0
  %367 = vmatmul.mubr.bf16.gmra.mrb[0].mxu0 %v232
  %v368 = vpop.f32.mrb[0].mxu0
  %v369 = vadd.f32 0.0, %v368
  %v370 = vpop.f32.mrb[0].mxu0
  %v371 = vadd.f32 0.0, %v370
  %v372 = vpop.f32.mrb[0].mxu0
  %v373 = vadd.f32 0.0, %v372
  %v374 = vpop.f32.mrb[0].mxu0
  %v375 = vadd.f32 0.0, %v374
  %376 = vmatprep.mubr.bf16.mxu0 0
  %377 = vmatmul.mubr.bf16.gmra.mrb[0].mxu0 %v233
  %v378 = vpop.f32.mrb[0].mxu0
  %v379 = vadd.f32 0.0, %v378
  %v380 = vpop.f32.mrb[0].mxu0
  %v381 = vadd.f32 0.0, %v380
  %v382 = vpop.f32.mrb[0].mxu0
  %v383 = vadd.f32 0.0, %v382
  %v384 = vpop.f32.mrb[0].mxu0
  %v385 = vadd.f32 0.0, %v384
  %386 = vmatprep.mubr.bf16.mxu0 0
  %387 = vmatmul.mubr.bf16.gmra.mrb[0].mxu0 %v234
  %v388 = vpop.f32.mrb[0].mxu0
  %v389 = vadd.f32 0.0, %v388
  %v390 = vpop.f32.mrb[0].mxu0
  %v391 = vadd.f32 0.0, %v390
  %v392 = vpop.f32.mrb[0].mxu0
  %v393 = vadd.f32 0.0, %v392
  %v394 = vpop.f32.mrb[0].mxu0
  %v395 = vadd.f32 0.0, %v394
  %396 = vmatprep.mubr.bf16.mxu0 0
  %397 = vmatmul.mubr.bf16.gmra.mrb[0].mxu0 %v235
  %v398 = vpop.f32.mrb[0].mxu0
  %v399 = vadd.f32 0.0, %v398
  %v400 = vpop.f32.mrb[0].mxu0
  %v401 = vadd.f32 0.0, %v400
  %v402 = vpop.f32.mrb[0].mxu0
  %v403 = vadd.f32 0.0, %v402
  %v404 = vpop.f32.mrb[0].mxu0
  %v405 = vadd.f32 0.0, %v404
  %406 = vmatprep.mubr.bf16.mxu0 0
  %407 = vmatmul.mubr.bf16.gmra.mrb[0].mxu0 %v236
  %v408 = vpop.f32.mrb[0].mxu0
  %v409 = vadd.f32 0.0, %v408
  %v410 = vpop.f32.mrb[0].mxu0
  %v411 = vadd.f32 0.0, %v410
  %v412 = vpop.f32.mrb[0].mxu0
  %v413 = vadd.f32 0.0, %v412
  %v414 = vpop.f32.mrb[0].mxu0
  %v415 = vadd.f32 0.0, %v414
  %416 = vmatprep.mubr.bf16.mxu0 0
  %417 = vmatmul.mubr.bf16.gmra.mrb[0].mxu0 %v237
  %v418 = vpop.f32.mrb[0].mxu0
  %v419 = vadd.f32 0.0, %v418
  %v420 = vpop.f32.mrb[0].mxu0
  %v421 = vadd.f32 0.0, %v420
  %v422 = vpop.f32.mrb[0].mxu0
  %v423 = vadd.f32 0.0, %v422
  %v424 = vpop.f32.mrb[0].mxu0
  %v425 = vadd.f32 0.0, %v424
  %426 = vmatprep.mubr.bf16.mxu0 0
  %427 = vmatmul.mubr.bf16.gmra.mrb[0].mxu0 %v238
  %v428 = vpop.f32.mrb[0].mxu0
  %v429 = vadd.f32 0.0, %v428
  %v430 = vpop.f32.mrb[0].mxu0
  %v431 = vadd.f32 0.0, %v430
  %v432 = vpop.f32.mrb[0].mxu0
  %v433 = vadd.f32 0.0, %v432
  %v434 = vpop.f32.mrb[0].mxu0
  %v435 = vadd.f32 0.0, %v434
  %436 = vmatprep.mubr.bf16.mxu0 0
  %437 = vmatmul.mubr.bf16.gmra.mrb[0].mxu0 %v239
  %v438 = vpop.f32.mrb[0].mxu0
  %v439 = vadd.f32 0.0, %v438
  %v440 = vpop.f32.mrb[0].mxu0
  %v441 = vadd.f32 0.0, %v440
  %v442 = vpop.f32.mrb[0].mxu0
  %v443 = vadd.f32 0.0, %v442
  %v444 = vpop.f32.mrb[0].mxu0
  %v445 = vadd.f32 0.0, %v444
  %446 = vmatprep.mubr.bf16.mxu0 0
  %447 = vmatmul.mubr.bf16.gmra.mrb[0].mxu0 %v240
  %v448 = vpop.f32.mrb[0].mxu0
  %v449 = vadd.f32 0.0, %v448
  %v450 = vpop.f32.mrb[0].mxu0
  %v451 = vadd.f32 0.0, %v450
  %v452 = vpop.f32.mrb[0].mxu0
  %v453 = vadd.f32 0.0, %v452
  %v454 = vpop.f32.mrb[0].mxu0
  %v455 = vadd.f32 0.0, %v454
  %456 = vmatprep.mubr.bf16.mxu0 0
  %457 = vmatmul.mubr.bf16.gmra.mrb[0].mxu0 %v241
  %v458 = vpop.f32.mrb[0].mxu0
  %v459 = vadd.f32 0.0, %v458
  %v460 = vpop.f32.mrb[0].mxu0
  %v461 = vadd.f32 0.0, %v460
  %v462 = vpop.f32.mrb[0].mxu0
  %v463 = vadd.f32 0.0, %v462
  %v464 = vpop.f32.mrb[0].mxu0
  %v465 = vadd.f32 0.0, %v464
  %466 = vmatprep.mubr.bf16.mxu0 0
  %467 = vmatmul.mubr.bf16.gmra.mrb[0].mxu0 %v242
  %v468 = vpop.f32.mrb[0].mxu0
  %v469 = vadd.f32 0.0, %v468
  %v470 = vpop.f32.mrb[0].mxu0
  %v471 = vadd.f32 0.0, %v470
  %v472 = vpop.f32.mrb[0].mxu0
  %v473 = vadd.f32 0.0, %v472
  %v474 = vpop.f32.mrb[0].mxu0
  %v475 = vadd.f32 0.0, %v474
  %476 = vmatprep.mubr.bf16.mxu0 0
  %477 = vmatmul.mubr.bf16.gmra.mrb[0].mxu0 %v243
  %v478 = vpop.f32.mrb[0].mxu0
  %v479 = vadd.f32 0.0, %v478
  %v480 = vpop.f32.mrb[0].mxu0
  %v481 = vadd.f32 0.0, %v480
  %v482 = vpop.f32.mrb[0].mxu0
  %v483 = vadd.f32 0.0, %v482
  %v484 = vpop.f32.mrb[0].mxu0
  %v485 = vadd.f32 0.0, %v484
  %486 = vmatprep.mubr.bf16.mxu0 0
  %487 = vmatmul.mubr.bf16.gmra.mrb[0].mxu0 %v244
  %v488 = vpop.f32.mrb[0].mxu0
  %v489 = vadd.f32 0.0, %v488
  %v490 = vpop.f32.mrb[0].mxu0
  %v491 = vadd.f32 0.0, %v490
  %v492 = vpop.f32.mrb[0].mxu0
  %v493 = vadd.f32 0.0, %v492
  %v494 = vpop.f32.mrb[0].mxu0
  %v495 = vadd.f32 0.0, %v494
  %496 = vmatprep.mubr.bf16.mxu0 0
  %497 = vmatmul.mubr.bf16.gmra.mrb[0].mxu0 %v245
  %v498 = vpop.f32.mrb[0].mxu0
  %v499 = vadd.f32 0.0, %v498
  %v500 = vpop.f32.mrb[0].mxu0
  %v501 = vadd.f32 0.0, %v500
  %v502 = vpop.f32.mrb[0].mxu0
  %v503 = vadd.f32 0.0, %v502
  %v504 = vpop.f32.mrb[0].mxu0
  %v505 = vadd.f32 0.0, %v504
  %506 = vmatprep.mubr.bf16.mxu0 0
  %507 = vmatmul.mubr.bf16.gmra.mrb[0].mxu0 %v246
  %v508 = vpop.f32.mrb[0].mxu0
  %v509 = vadd.f32 0.0, %v508
  %v510 = vpop.f32.mrb[0].mxu0
  %v511 = vadd.f32 0.0, %v510
  %v512 = vpop.f32.mrb[0].mxu0
  %v513 = vadd.f32 0.0, %v512
  %v514 = vpop.f32.mrb[0].mxu0
  %v515 = vadd.f32 0.0, %v514
  %516 = vmatprep.mubr.bf16.mxu0 0
  %517 = vmatmul.mubr.bf16.gmra.mrb[0].mxu0 %v247
  %v518 = vpop.f32.mrb[0].mxu0
  %v519 = vadd.f32 0.0, %v518
  %v520 = vpop.f32.mrb[0].mxu0
  %v521 = vadd.f32 0.0, %v520
  %v522 = vpop.f32.mrb[0].mxu0
  %v523 = vadd.f32 0.0, %v522
  %v524 = vpop.f32.mrb[0].mxu0
  %v525 = vadd.f32 0.0, %v524
  %526 = vmatprep.mubr.bf16.mxu0 0
  %527 = vmatmul.mubr.bf16.gmra.mrb[0].mxu0 %v248
  %v528 = vpop.f32.mrb[0].mxu0
  %v529 = vadd.f32 0.0, %v528
  %v530 = vpop.f32.mrb[0].mxu0
  %v531 = vadd.f32 0.0, %v530
  %v532 = vpop.f32.mrb[0].mxu0
  %v533 = vadd.f32 0.0, %v532
  %v534 = vpop.f32.mrb[0].mxu0
  %v535 = vadd.f32 0.0, %v534
  %536 = vmatprep.mubr.bf16.mxu0 0
  %537 = vmatmul.mubr.bf16.gmra.mrb[0].mxu0 %v249
  %v538 = vpop.f32.mrb[0].mxu0
  %v539 = vadd.f32 0.0, %v538
  %v540 = vpop.f32.mrb[0].mxu0
  %v541 = vadd.f32 0.0, %v540
  %v542 = vpop.f32.mrb[0].mxu0
  %v543 = vadd.f32 0.0, %v542
  %v544 = vpop.f32.mrb[0].mxu0
  %v545 = vadd.f32 0.0, %v544
  %546 = vmatprep.mubr.bf16.mxu0 0
  %547 = vmatmul.mubr.bf16.gmra.mrb[0].mxu0 %v250
  %v548 = vpop.f32.mrb[0].mxu0
  %v549 = vadd.f32 0.0, %v548
  %v550 = vpop.f32.mrb[0].mxu0
  %v551 = vadd.f32 0.0, %v550
  %v552 = vpop.f32.mrb[0].mxu0
  %v553 = vadd.f32 0.0, %v552
  %v554 = vpop.f32.mrb[0].mxu0
  %v555 = vadd.f32 0.0, %v554
  %556 = vmatprep.mubr.bf16.mxu0 0
  %557 = vmatmul.mubr.bf16.gmra.mrb[0].mxu0 %v251
  %v558 = vpop.f32.mrb[0].mxu0
  %v559 = vadd.f32 0.0, %v558
  %v560 = vpop.f32.mrb[0].mxu0
  %v561 = vadd.f32 0.0, %v560
  %v562 = vpop.f32.mrb[0].mxu0
  %v563 = vadd.f32 0.0, %v562
  %v564 = vpop.f32.mrb[0].mxu0
  %v565 = vadd.f32 0.0, %v564
  %566 = vmatprep.mubr.bf16.mxu0 0
  %567 = vmatmul.mubr.bf16.gmra.mrb[0].mxu0 %v252
  %v568 = vpop.f32.mrb[0].mxu0
  %v569 = vadd.f32 0.0, %v568
  %v570 = vpop.f32.mrb[0].mxu0
  %v571 = vadd.f32 0.0, %v570
  %v572 = vpop.f32.mrb[0].mxu0
  %v573 = vadd.f32 0.0, %v572
  %v574 = vpop.f32.mrb[0].mxu0
  %v575 = vadd.f32 0.0, %v574
  %576 = vmatprep.mubr.bf16.mxu0 0
  %577 = vmatmul.mubr.bf16.gmra.mrb[0].mxu0 %v253
  %v578 = vpop.f32.mrb[0].mxu0
  %v579 = vadd.f32 0.0, %v578
  %v580 = vpop.f32.mrb[0].mxu0
  %v581 = vadd.f32 0.0, %v580
  %v582 = vpop.f32.mrb[0].mxu0
  %v583 = vadd.f32 0.0, %v582
  %v584 = vpop.f32.mrb[0].mxu0
  %v585 = vadd.f32 0.0, %v584
  %586 = vmatprep.mubr.bf16.mxu0 0
  %587 = vmatmul.mubr.bf16.gmra.mrb[0].mxu0 %v254
  %v588 = vpop.f32.mrb[0].mxu0
  %v589 = vadd.f32 0.0, %v588
  %v590 = vpop.f32.mrb[0].mxu0
  %v591 = vadd.f32 0.0, %v590
  %v592 = vpop.f32.mrb[0].mxu0
  %v593 = vadd.f32 0.0, %v592
  %v594 = vpop.f32.mrb[0].mxu0
  %v595 = vadd.f32 0.0, %v594
  %596 = vmatprep.mubr.bf16.mxu0 0
  %597 = vmatmul.mubr.bf16.gmra.mrb[0].mxu0 %v255
  %v598 = vpop.f32.mrb[0].mxu0
  %v599 = vadd.f32 0.0, %v598
  %v600 = vpop.f32.mrb[0].mxu0
  %v601 = vadd.f32 0.0, %v600
  %v602 = vpop.f32.mrb[0].mxu0
  %v603 = vadd.f32 0.0, %v602
  %v604 = vpop.f32.mrb[0].mxu0
  %v605 = vadd.f32 0.0, %v604
  %606 = vmatprep.mubr.bf16.mxu0 0
  %607 = vmatmul.mubr.bf16.gmra.mrb[0].mxu0 %v256
  %v608 = vpop.f32.mrb[0].mxu0
  %v609 = vadd.f32 0.0, %v608
  %v610 = vpop.f32.mrb[0].mxu0
  %v611 = vadd.f32 0.0, %v610
  %v612 = vpop.f32.mrb[0].mxu0
  %v613 = vadd.f32 0.0, %v612
  %v614 = vpop.f32.mrb[0].mxu0
  %v615 = vadd.f32 0.0, %v614
  %616 = vmatprep.mubr.bf16.mxu0 0
  %617 = vmatmul.mubr.bf16.gmra.mrb[0].mxu0 %v257
  %v618 = vpop.f32.mrb[0].mxu0
  %v619 = vadd.f32 0.0, %v618
  %v620 = vpop.f32.mrb[0].mxu0
  %v621 = vadd.f32 0.0, %v620
  %v622 = vpop.f32.mrb[0].mxu0
  %v623 = vadd.f32 0.0, %v622
  %v624 = vpop.f32.mrb[0].mxu0
  %v625 = vadd.f32 0.0, %v624
  %626 = vmatprep.mubr.bf16.mxu0 0
  %627 = vmatmul.mubr.bf16.gmra.mrb[0].mxu0 %v258
  %v628 = vpop.f32.mrb[0].mxu0
  %v629 = vadd.f32 0.0, %v628
  %v630 = vpop.f32.mrb[0].mxu0
  %v631 = vadd.f32 0.0, %v630
  %v632 = vpop.f32.mrb[0].mxu0
  %v633 = vadd.f32 0.0, %v632
  %v634 = vpop.f32.mrb[0].mxu0
  %v635 = vadd.f32 0.0, %v634
  %636 = vmatprep.mubr.bf16.mxu0 0
  %637 = vmatmul.mubr.bf16.gmra.mrb[0].mxu0 %v259
  %v638 = vpop.f32.mrb[0].mxu0
  %v639 = vadd.f32 0.0, %v638
  %v640 = vpop.f32.mrb[0].mxu0
  %v641 = vadd.f32 0.0, %v640
  %v642 = vpop.f32.mrb[0].mxu0
  %v643 = vadd.f32 0.0, %v642
  %v644 = vpop.f32.mrb[0].mxu0
  %v645 = vadd.f32 0.0, %v644
  %646 = vmatprep.mubr.bf16.mxu0 0
  %647 = vmatmul.mubr.bf16.gmra.mrb[0].mxu0 %v260
  %v648 = vpop.f32.mrb[0].mxu0
  %v649 = vadd.f32 0.0, %v648
  %v650 = vpop.f32.mrb[0].mxu0
  %v651 = vadd.f32 0.0, %v650
  %v652 = vpop.f32.mrb[0].mxu0
  %v653 = vadd.f32 0.0, %v652
  %v654 = vpop.f32.mrb[0].mxu0
  %v655 = vadd.f32 0.0, %v654
  %656 = vmatprep.mubr.bf16.mxu0 0
  %657 = vmatmul.mubr.bf16.gmra.mrb[0].mxu0 %v261
  %v658 = vpop.f32.mrb[0].mxu0
  %v659 = vadd.f32 0.0, %v658
  %v660 = vpop.f32.mrb[0].mxu0
  %v661 = vadd.f32 0.0, %v660
  %v662 = vpop.f32.mrb[0].mxu0
  %v663 = vadd.f32 0.0, %v662
  %v664 = vpop.f32.mrb[0].mxu0
  %v665 = vadd.f32 0.0, %v664
  %666 = vmatprep.mubr.bf16.mxu0 0
  %667 = vmatmul.mubr.bf16.gmra.mrb[0].mxu0 %v262
  %v668 = vpop.f32.mrb[0].mxu0
  %v669 = vadd.f32 0.0, %v668
  %v670 = vpop.f32.mrb[0].mxu0
  %v671 = vadd.f32 0.0, %v670
  %v672 = vpop.f32.mrb[0].mxu0
  %v673 = vadd.f32 0.0, %v672
  %v674 = vpop.f32.mrb[0].mxu0
  %v675 = vadd.f32 0.0, %v674
  %676 = vmatprep.mubr.bf16.mxu0 0
  %677 = vmatmul.mubr.bf16.gmra.mrb[0].mxu0 %v263
  %v678 = vpop.f32.mrb[0].mxu0
  %v679 = vadd.f32 0.0, %v678
  %v680 = vpop.f32.mrb[0].mxu0
  %v681 = vadd.f32 0.0, %v680
  %v682 = vpop.f32.mrb[0].mxu0
  %v683 = vadd.f32 0.0, %v682
  %v684 = vpop.f32.mrb[0].mxu0
  %v685 = vadd.f32 0.0, %v684
  %686 = vmatprep.mubr.bf16.mxu0 0
  %687 = vmatmul.mubr.bf16.gmra.mrb[0].mxu0 %v264
  %v688 = vpop.f32.mrb[0].mxu0
  %v689 = vadd.f32 0.0, %v688
  %v690 = vpop.f32.mrb[0].mxu0
  %v691 = vadd.f32 0.0, %v690
  %v692 = vpop.f32.mrb[0].mxu0
  %v693 = vadd.f32 0.0, %v692
  %v694 = vpop.f32.mrb[0].mxu0
  %v695 = vadd.f32 0.0, %v694
  %696 = vmatprep.mubr.bf16.mxu0 0
  %697 = vmatmul.mubr.bf16.gmra.mrb[0].mxu0 %v265
  %v698 = vpop.f32.mrb[0].mxu0
  %v699 = vadd.f32 0.0, %v698
  %v700 = vpop.f32.mrb[0].mxu0
  %v701 = vadd.f32 0.0, %v700
  %v702 = vpop.f32.mrb[0].mxu0
  %v703 = vadd.f32 0.0, %v702
  %v704 = vpop.f32.mrb[0].mxu0
  %v705 = vadd.f32 0.0, %v704
  %706 = vmatprep.mubr.bf16.mxu0 0
  %707 = vmatmul.mubr.bf16.gmra.mrb[0].mxu0 %v266
  %v708 = vpop.f32.mrb[0].mxu0
  %v709 = vadd.f32 0.0, %v708
  %v710 = vpop.f32.mrb[0].mxu0
  %v711 = vadd.f32 0.0, %v710
  %v712 = vpop.f32.mrb[0].mxu0
  %v713 = vadd.f32 0.0, %v712
  %v714 = vpop.f32.mrb[0].mxu0
  %v715 = vadd.f32 0.0, %v714
  %716 = vmatprep.mubr.bf16.mxu0 0
  %717 = vmatmul.mubr.bf16.gmra.mrb[0].mxu0 %v267
  %v718 = vpop.f32.mrb[0].mxu0
  %v719 = vadd.f32 0.0, %v718
  %v720 = vpop.f32.mrb[0].mxu0
  %v721 = vadd.f32 0.0, %v720
  %v722 = vpop.f32.mrb[0].mxu0
  %v723 = vadd.f32 0.0, %v722
  %v724 = vpop.f32.mrb[0].mxu0
  %v725 = vadd.f32 0.0, %v724
  %726 = vmatprep.mubr.bf16.mxu0 0
  %727 = vmatmul.mubr.bf16.gmra.mrb[0].mxu0 %v268
  %v728 = vpop.f32.mrb[0].mxu0
  %v729 = vadd.f32 0.0, %v728
  %v730 = vpop.f32.mrb[0].mxu0
  %v731 = vadd.f32 0.0, %v730
  %v732 = vpop.f32.mrb[0].mxu0
  %v733 = vadd.f32 0.0, %v732
  %v734 = vpop.f32.mrb[0].mxu0
  %v735 = vadd.f32 0.0, %v734
  %736 = vmatprep.mubr.bf16.mxu0 0
  %737 = vmatmul.mubr.bf16.gmra.mrb[0].mxu0 %v269
  %v738 = vpop.f32.mrb[0].mxu0
  %v739 = vadd.f32 0.0, %v738
  %v740 = vpop.f32.mrb[0].mxu0
  %v741 = vadd.f32 0.0, %v740
  %v742 = vpop.f32.mrb[0].mxu0
  %v743 = vadd.f32 0.0, %v742
  %v744 = vpop.f32.mrb[0].mxu0
  %v745 = vadd.f32 0.0, %v744
  %746 = vmatprep.mubr.bf16.mxu0 0
  %747 = vmatmul.mubr.bf16.gmra.mrb[0].mxu0 %v270
  %v748 = vpop.f32.mrb[0].mxu0
  %v749 = vadd.f32 0.0, %v748
  %v750 = vpop.f32.mrb[0].mxu0
  %v751 = vadd.f32 0.0, %v750
  %v752 = vpop.f32.mrb[0].mxu0
  %v753 = vadd.f32 0.0, %v752
  %v754 = vpop.f32.mrb[0].mxu0
  %v755 = vadd.f32 0.0, %v754
  %756 = vmatprep.mubr.bf16.mxu0 0
  %757 = vmatmul.mubr.bf16.gmra.mrb[0].mxu0 %v271
  %v758 = vpop.f32.mrb[0].mxu0
  %v759 = vadd.f32 0.0, %v758
  %v760 = vpop.f32.mrb[0].mxu0
  %v761 = vadd.f32 0.0, %v760
  %v762 = vpop.f32.mrb[0].mxu0
  %v763 = vadd.f32 0.0, %v762
  %v764 = vpop.f32.mrb[0].mxu0
  %v765 = vadd.f32 0.0, %v764
  %766 = vmatprep.mubr.bf16.mxu0 0
  %767 = vmatmul.mubr.bf16.gmra.mrb[0].mxu0 %v272
  %v768 = vpop.f32.mrb[0].mxu0
  %v769 = vadd.f32 0.0, %v768
  %v770 = vpop.f32.mrb[0].mxu0
  %v771 = vadd.f32 0.0, %v770
  %v772 = vpop.f32.mrb[0].mxu0
  %v773 = vadd.f32 0.0, %v772
  %v774 = vpop.f32.mrb[0].mxu0
  %v775 = vadd.f32 0.0, %v774
  %776 = vmatprep.mubr.bf16.mxu0 0
  %777 = vmatmul.mubr.bf16.gmra.mrb[0].mxu0 %v273
  %v778 = vpop.f32.mrb[0].mxu0
  %v779 = vadd.f32 0.0, %v778
  %v780 = vpop.f32.mrb[0].mxu0
  %v781 = vadd.f32 0.0, %v780
  %v782 = vpop.f32.mrb[0].mxu0
  %v783 = vadd.f32 0.0, %v782
  %v784 = vpop.f32.mrb[0].mxu0
  %v785 = vadd.f32 0.0, %v784
  %786 = vdwg.mxu0
  %vm787 = vcmask 556032
  %v788 = vsel %vm787, %v311, 0.0
  %v789 = vadd.f32 %v309, %v788
  %790 = vadd.xlane.f32.xlu0 %v789
  %v791 = vpop.xlane.xlu0 %790
  %v792 = vsel %vm787, %v315, 0.0
  %v793 = vadd.f32 %v313, %v792
  %794 = vadd.xlane.f32.xlu0 %v793
  %v795 = vpop.xlane.xlu0 %794
  %v796 = vsel %vm787, %v321, 0.0
  %v797 = vadd.f32 %v319, %v796
  %798 = vadd.xlane.f32.xlu0 %v797
  %v799 = vpop.xlane.xlu0 %798
  %v800 = vsel %vm787, %v325, 0.0
  %v801 = vadd.f32 %v323, %v800
  %802 = vadd.xlane.f32.xlu0 %v801
  %v803 = vpop.xlane.xlu0 %802
  %v804 = vsel %vm787, %v331, 0.0
  %v805 = vadd.f32 %v329, %v804
  %806 = vadd.xlane.f32.xlu0 %v805
  %v807 = vpop.xlane.xlu0 %806
  %v808 = vsel %vm787, %v335, 0.0
  %v809 = vadd.f32 %v333, %v808
  %810 = vadd.xlane.f32.xlu0 %v809
  %v811 = vpop.xlane.xlu0 %810
  %v812 = vsel %vm787, %v341, 0.0
  %v813 = vadd.f32 %v339, %v812
  %814 = vadd.xlane.f32.xlu0 %v813
  %v815 = vpop.xlane.xlu0 %814
  %v816 = vsel %vm787, %v345, 0.0
  %v817 = vadd.f32 %v343, %v816
  %818 = vadd.xlane.f32.xlu0 %v817
  %v819 = vpop.xlane.xlu0 %818
  %v820 = vsel %vm787, %v351, 0.0
  %v821 = vadd.f32 %v349, %v820
  %822 = vadd.xlane.f32.xlu0 %v821
  %v823 = vpop.xlane.xlu0 %822
  %v824 = vsel %vm787, %v355, 0.0
  %v825 = vadd.f32 %v353, %v824
  %826 = vadd.xlane.f32.xlu0 %v825
  %v827 = vpop.xlane.xlu0 %826
  %v828 = vsel %vm787, %v361, 0.0
  %v829 = vadd.f32 %v359, %v828
  %830 = vadd.xlane.f32.xlu0 %v829
  %v831 = vpop.xlane.xlu0 %830
  %v832 = vsel %vm787, %v365, 0.0
  %v833 = vadd.f32 %v363, %v832
  %834 = vadd.xlane.f32.xlu0 %v833
  %v835 = vpop.xlane.xlu0 %834
  %v836 = vsel %vm787, %v371, 0.0
  %v837 = vadd.f32 %v369, %v836
  %838 = vadd.xlane.f32.xlu0 %v837
  %v839 = vpop.xlane.xlu0 %838
  %v840 = vsel %vm787, %v375, 0.0
  %v841 = vadd.f32 %v373, %v840
  %842 = vadd.xlane.f32.xlu0 %v841
  %v843 = vpop.xlane.xlu0 %842
  %v844 = vsel %vm787, %v381, 0.0
  %v845 = vadd.f32 %v379, %v844
  %846 = vadd.xlane.f32.xlu0 %v845
  %v847 = vpop.xlane.xlu0 %846
  %v848 = vsel %vm787, %v385, 0.0
  %v849 = vadd.f32 %v383, %v848
  %850 = vadd.xlane.f32.xlu0 %v849
  %v851 = vpop.xlane.xlu0 %850
  %v852 = vsel %vm787, %v391, 0.0
  %v853 = vadd.f32 %v389, %v852
  %854 = vadd.xlane.f32.xlu0 %v853
  %v855 = vpop.xlane.xlu0 %854
  %v856 = vsel %vm787, %v395, 0.0
  %v857 = vadd.f32 %v393, %v856
  %858 = vadd.xlane.f32.xlu0 %v857
  %v859 = vpop.xlane.xlu0 %858
  %v860 = vsel %vm787, %v401, 0.0
  %v861 = vadd.f32 %v399, %v860
  %862 = vadd.xlane.f32.xlu0 %v861
  %v863 = vpop.xlane.xlu0 %862
  %v864 = vsel %vm787, %v405, 0.0
  %v865 = vadd.f32 %v403, %v864
  %866 = vadd.xlane.f32.xlu0 %v865
  %v867 = vpop.xlane.xlu0 %866
  %v868 = vsel %vm787, %v411, 0.0
  %v869 = vadd.f32 %v409, %v868
  %870 = vadd.xlane.f32.xlu0 %v869
  %v871 = vpop.xlane.xlu0 %870
  %v872 = vsel %vm787, %v415, 0.0
  %v873 = vadd.f32 %v413, %v872
  %874 = vadd.xlane.f32.xlu0 %v873
  %v875 = vpop.xlane.xlu0 %874
  %v876 = vsel %vm787, %v421, 0.0
  %v877 = vadd.f32 %v419, %v876
  %878 = vadd.xlane.f32.xlu0 %v877
  %v879 = vpop.xlane.xlu0 %878
  %v880 = vsel %vm787, %v425, 0.0
  %v881 = vadd.f32 %v423, %v880
  %882 = vadd.xlane.f32.xlu0 %v881
  %v883 = vpop.xlane.xlu0 %882
  %v884 = vsel %vm787, %v431, 0.0
  %v885 = vadd.f32 %v429, %v884
  %886 = vadd.xlane.f32.xlu0 %v885
  %v887 = vpop.xlane.xlu0 %886
  %v888 = vsel %vm787, %v435, 0.0
  %v889 = vadd.f32 %v433, %v888
  %890 = vadd.xlane.f32.xlu0 %v889
  %v891 = vpop.xlane.xlu0 %890
  %v892 = vsel %vm787, %v441, 0.0
  %v893 = vadd.f32 %v439, %v892
  %894 = vadd.xlane.f32.xlu0 %v893
  %v895 = vpop.xlane.xlu0 %894
  %v896 = vsel %vm787, %v445, 0.0
  %v897 = vadd.f32 %v443, %v896
  %898 = vadd.xlane.f32.xlu0 %v897
  %v899 = vpop.xlane.xlu0 %898
  %v900 = vsel %vm787, %v451, 0.0
  %v901 = vadd.f32 %v449, %v900
  %902 = vadd.xlane.f32.xlu0 %v901
  %v903 = vpop.xlane.xlu0 %902
  %v904 = vsel %vm787, %v455, 0.0
  %v905 = vadd.f32 %v453, %v904
  %906 = vadd.xlane.f32.xlu0 %v905
  %v907 = vpop.xlane.xlu0 %906
  %v908 = vsel %vm787, %v461, 0.0
  %v909 = vadd.f32 %v459, %v908
  %910 = vadd.xlane.f32.xlu0 %v909
  %v911 = vpop.xlane.xlu0 %910
  %v912 = vsel %vm787, %v465, 0.0
  %v913 = vadd.f32 %v463, %v912
  %914 = vadd.xlane.f32.xlu0 %v913
  %v915 = vpop.xlane.xlu0 %914
  %v916 = vsel %vm787, %v471, 0.0
  %v917 = vadd.f32 %v469, %v916
  %918 = vadd.xlane.f32.xlu0 %v917
  %v919 = vpop.xlane.xlu0 %918
  %v920 = vsel %vm787, %v475, 0.0
  %v921 = vadd.f32 %v473, %v920
  %922 = vadd.xlane.f32.xlu0 %v921
  %v923 = vpop.xlane.xlu0 %922
  %v924 = vsel %vm787, %v481, 0.0
  %v925 = vadd.f32 %v479, %v924
  %926 = vadd.xlane.f32.xlu0 %v925
  %v927 = vpop.xlane.xlu0 %926
  %v928 = vsel %vm787, %v485, 0.0
  %v929 = vadd.f32 %v483, %v928
  %930 = vadd.xlane.f32.xlu0 %v929
  %v931 = vpop.xlane.xlu0 %930
  %v932 = vsel %vm787, %v491, 0.0
  %v933 = vadd.f32 %v489, %v932
  %934 = vadd.xlane.f32.xlu0 %v933
  %v935 = vpop.xlane.xlu0 %934
  %v936 = vsel %vm787, %v495, 0.0
  %v937 = vadd.f32 %v493, %v936
  %938 = vadd.xlane.f32.xlu0 %v937
  %v939 = vpop.xlane.xlu0 %938
  %v940 = vsel %vm787, %v501, 0.0
  %v941 = vadd.f32 %v499, %v940
  %942 = vadd.xlane.f32.xlu0 %v941
  %v943 = vpop.xlane.xlu0 %942
  %v944 = vsel %vm787, %v505, 0.0
  %v945 = vadd.f32 %v503, %v944
  %946 = vadd.xlane.f32.xlu0 %v945
  %v947 = vpop.xlane.xlu0 %946
  %v948 = vsel %vm787, %v511, 0.0
  %v949 = vadd.f32 %v509, %v948
  %950 = vadd.xlane.f32.xlu0 %v949
  %v951 = vpop.xlane.xlu0 %950
  %v952 = vsel %vm787, %v515, 0.0
  %v953 = vadd.f32 %v513, %v952
  %954 = vadd.xlane.f32.xlu0 %v953
  %v955 = vpop.xlane.xlu0 %954
  %v956 = vsel %vm787, %v521, 0.0
  %v957 = vadd.f32 %v519, %v956
  %958 = vadd.xlane.f32.xlu0 %v957
  %v959 = vpop.xlane.xlu0 %958
  %v960 = vsel %vm787, %v525, 0.0
  %v961 = vadd.f32 %v523, %v960
  %962 = vadd.xlane.f32.xlu0 %v961
  %v963 = vpop.xlane.xlu0 %962
  %v964 = vsel %vm787, %v531, 0.0
  %v965 = vadd.f32 %v529, %v964
  %966 = vadd.xlane.f32.xlu0 %v965
  %v967 = vpop.xlane.xlu0 %966
  %v968 = vsel %vm787, %v535, 0.0
  %v969 = vadd.f32 %v533, %v968
  %970 = vadd.xlane.f32.xlu0 %v969
  %v971 = vpop.xlane.xlu0 %970
  %v972 = vsel %vm787, %v541, 0.0
  %v973 = vadd.f32 %v539, %v972
  %974 = vadd.xlane.f32.xlu0 %v973
  %v975 = vpop.xlane.xlu0 %974
  %v976 = vsel %vm787, %v545, 0.0
  %v977 = vadd.f32 %v543, %v976
  %978 = vadd.xlane.f32.xlu0 %v977
  %v979 = vpop.xlane.xlu0 %978
  %v980 = vsel %vm787, %v551, 0.0
  %v981 = vadd.f32 %v549, %v980
  %982 = vadd.xlane.f32.xlu0 %v981
  %v983 = vpop.xlane.xlu0 %982
  %v984 = vsel %vm787, %v555, 0.0
  %v985 = vadd.f32 %v553, %v984
  %986 = vadd.xlane.f32.xlu0 %v985
  %v987 = vpop.xlane.xlu0 %986
  %v988 = vsel %vm787, %v561, 0.0
  %v989 = vadd.f32 %v559, %v988
  %990 = vadd.xlane.f32.xlu0 %v989
  %v991 = vpop.xlane.xlu0 %990
  %v992 = vsel %vm787, %v565, 0.0
  %v993 = vadd.f32 %v563, %v992
  %994 = vadd.xlane.f32.xlu0 %v993
  %v995 = vpop.xlane.xlu0 %994
  %v996 = vsel %vm787, %v571, 0.0
  %v997 = vadd.f32 %v569, %v996
  %998 = vadd.xlane.f32.xlu0 %v997
  %v999 = vpop.xlane.xlu0 %998
  %v1000 = vsel %vm787, %v575, 0.0
  %v1001 = vadd.f32 %v573, %v1000
  %1002 = vadd.xlane.f32.xlu0 %v1001
  %v1003 = vpop.xlane.xlu0 %1002
  %v1004 = vsel %vm787, %v581, 0.0
  %v1005 = vadd.f32 %v579, %v1004
  %1006 = vadd.xlane.f32.xlu0 %v1005
  %v1007 = vpop.xlane.xlu0 %1006
  %v1008 = vsel %vm787, %v585, 0.0
  %v1009 = vadd.f32 %v583, %v1008
  %1010 = vadd.xlane.f32.xlu0 %v1009
  %v1011 = vpop.xlane.xlu0 %1010
  %v1012 = vsel %vm787, %v591, 0.0
  %v1013 = vadd.f32 %v589, %v1012
  %1014 = vadd.xlane.f32.xlu0 %v1013
  %v1015 = vpop.xlane.xlu0 %1014
  %v1016 = vsel %vm787, %v595, 0.0
  %v1017 = vadd.f32 %v593, %v1016
  %1018 = vadd.xlane.f32.xlu0 %v1017
  %v1019 = vpop.xlane.xlu0 %1018
  %v1020 = vsel %vm787, %v601, 0.0
  %v1021 = vadd.f32 %v599, %v1020
  %1022 = vadd.xlane.f32.xlu0 %v1021
  %v1023 = vpop.xlane.xlu0 %1022
  %v1024 = vsel %vm787, %v605, 0.0
  %v1025 = vadd.f32 %v603, %v1024
  %1026 = vadd.xlane.f32.xlu0 %v1025
  %v1027 = vpop.xlane.xlu0 %1026
  %v1028 = vsel %vm787, %v611, 0.0
  %v1029 = vadd.f32 %v609, %v1028
  %1030 = vadd.xlane.f32.xlu0 %v1029
  %v1031 = vpop.xlane.xlu0 %1030
  %v1032 = vsel %vm787, %v615, 0.0
  %v1033 = vadd.f32 %v613, %v1032
  %1034 = vadd.xlane.f32.xlu0 %v1033
  %v1035 = vpop.xlane.xlu0 %1034
  %v1036 = vsel %vm787, %v621, 0.0
  %v1037 = vadd.f32 %v619, %v1036
  %1038 = vadd.xlane.f32.xlu0 %v1037
  %v1039 = vpop.xlane.xlu0 %1038
  %v1040 = vsel %vm787, %v625, 0.0
  %v1041 = vadd.f32 %v623, %v1040
  %1042 = vadd.xlane.f32.xlu0 %v1041
  %v1043 = vpop.xlane.xlu0 %1042
  %v1044 = vsel %vm787, %v631, 0.0
  %v1045 = vadd.f32 %v629, %v1044
  %1046 = vadd.xlane.f32.xlu0 %v1045
  %v1047 = vpop.xlane.xlu0 %1046
  %v1048 = vsel %vm787, %v635, 0.0
  %v1049 = vadd.f32 %v633, %v1048
  %1050 = vadd.xlane.f32.xlu0 %v1049
  %v1051 = vpop.xlane.xlu0 %1050
  %v1052 = vsel %vm787, %v641, 0.0
  %v1053 = vadd.f32 %v639, %v1052
  %1054 = vadd.xlane.f32.xlu0 %v1053
  %v1055 = vpop.xlane.xlu0 %1054
  %v1056 = vsel %vm787, %v645, 0.0
  %v1057 = vadd.f32 %v643, %v1056
  %1058 = vadd.xlane.f32.xlu0 %v1057
  %v1059 = vpop.xlane.xlu0 %1058
  %v1060 = vsel %vm787, %v651, 0.0
  %v1061 = vadd.f32 %v649, %v1060
  %1062 = vadd.xlane.f32.xlu0 %v1061
  %v1063 = vpop.xlane.xlu0 %1062
  %v1064 = vsel %vm787, %v655, 0.0
  %v1065 = vadd.f32 %v653, %v1064
  %1066 = vadd.xlane.f32.xlu0 %v1065
  %v1067 = vpop.xlane.xlu0 %1066
  %v1068 = vsel %vm787, %v661, 0.0
  %v1069 = vadd.f32 %v659, %v1068
  %1070 = vadd.xlane.f32.xlu0 %v1069
  %v1071 = vpop.xlane.xlu0 %1070
  %v1072 = vsel %vm787, %v665, 0.0
  %v1073 = vadd.f32 %v663, %v1072
  %1074 = vadd.xlane.f32.xlu0 %v1073
  %v1075 = vpop.xlane.xlu0 %1074
  %v1076 = vsel %vm787, %v671, 0.0
  %v1077 = vadd.f32 %v669, %v1076
  %1078 = vadd.xlane.f32.xlu0 %v1077
  %v1079 = vpop.xlane.xlu0 %1078
  %v1080 = vsel %vm787, %v675, 0.0
  %v1081 = vadd.f32 %v673, %v1080
  %1082 = vadd.xlane.f32.xlu0 %v1081
  %v1083 = vpop.xlane.xlu0 %1082
  %v1084 = vsel %vm787, %v681, 0.0
  %v1085 = vadd.f32 %v679, %v1084
  %1086 = vadd.xlane.f32.xlu0 %v1085
  %v1087 = vpop.xlane.xlu0 %1086
  %v1088 = vsel %vm787, %v685, 0.0
  %v1089 = vadd.f32 %v683, %v1088
  %1090 = vadd.xlane.f32.xlu0 %v1089
  %v1091 = vpop.xlane.xlu0 %1090
  %v1092 = vsel %vm787, %v691, 0.0
  %v1093 = vadd.f32 %v689, %v1092
  %1094 = vadd.xlane.f32.xlu0 %v1093
  %v1095 = vpop.xlane.xlu0 %1094
  %v1096 = vsel %vm787, %v695, 0.0
  %v1097 = vadd.f32 %v693, %v1096
  %1098 = vadd.xlane.f32.xlu0 %v1097
  %v1099 = vpop.xlane.xlu0 %1098
  %v1100 = vsel %vm787, %v701, 0.0
  %v1101 = vadd.f32 %v699, %v1100
  %1102 = vadd.xlane.f32.xlu0 %v1101
  %v1103 = vpop.xlane.xlu0 %1102
  %v1104 = vsel %vm787, %v705, 0.0
  %v1105 = vadd.f32 %v703, %v1104
  %1106 = vadd.xlane.f32.xlu0 %v1105
  %v1107 = vpop.xlane.xlu0 %1106
  %v1108 = vsel %vm787, %v711, 0.0
  %v1109 = vadd.f32 %v709, %v1108
  %1110 = vadd.xlane.f32.xlu0 %v1109
  %v1111 = vpop.xlane.xlu0 %1110
  %v1112 = vsel %vm787, %v715, 0.0
  %v1113 = vadd.f32 %v713, %v1112
  %1114 = vadd.xlane.f32.xlu0 %v1113
  %v1115 = vpop.xlane.xlu0 %1114
  %v1116 = vsel %vm787, %v721, 0.0
  %v1117 = vadd.f32 %v719, %v1116
  %1118 = vadd.xlane.f32.xlu0 %v1117
  %v1119 = vpop.xlane.xlu0 %1118
  %v1120 = vsel %vm787, %v725, 0.0
  %v1121 = vadd.f32 %v723, %v1120
  %1122 = vadd.xlane.f32.xlu0 %v1121
  %v1123 = vpop.xlane.xlu0 %1122
  %v1124 = vsel %vm787, %v731, 0.0
  %v1125 = vadd.f32 %v729, %v1124
  %1126 = vadd.xlane.f32.xlu0 %v1125
  %v1127 = vpop.xlane.xlu0 %1126
  %v1128 = vsel %vm787, %v735, 0.0
  %v1129 = vadd.f32 %v733, %v1128
  %1130 = vadd.xlane.f32.xlu0 %v1129
  %v1131 = vpop.xlane.xlu0 %1130
  %v1132 = vsel %vm787, %v741, 0.0
  %v1133 = vadd.f32 %v739, %v1132
  %1134 = vadd.xlane.f32.xlu0 %v1133
  %v1135 = vpop.xlane.xlu0 %1134
  %v1136 = vsel %vm787, %v745, 0.0
  %v1137 = vadd.f32 %v743, %v1136
  %1138 = vadd.xlane.f32.xlu0 %v1137
  %v1139 = vpop.xlane.xlu0 %1138
  %v1140 = vsel %vm787, %v751, 0.0
  %v1141 = vadd.f32 %v749, %v1140
  %1142 = vadd.xlane.f32.xlu0 %v1141
  %v1143 = vpop.xlane.xlu0 %1142
  %v1144 = vsel %vm787, %v755, 0.0
  %v1145 = vadd.f32 %v753, %v1144
  %1146 = vadd.xlane.f32.xlu0 %v1145
  %v1147 = vpop.xlane.xlu0 %1146
  %v1148 = vsel %vm787, %v761, 0.0
  %v1149 = vadd.f32 %v759, %v1148
  %1150 = vadd.xlane.f32.xlu0 %v1149
  %v1151 = vpop.xlane.xlu0 %1150
  %v1152 = vsel %vm787, %v765, 0.0
  %v1153 = vadd.f32 %v763, %v1152
  %1154 = vadd.xlane.f32.xlu0 %v1153
  %v1155 = vpop.xlane.xlu0 %1154
  %v1156 = vsel %vm787, %v771, 0.0
  %v1157 = vadd.f32 %v769, %v1156
  %1158 = vadd.xlane.f32.xlu0 %v1157
  %v1159 = vpop.xlane.xlu0 %1158
  %v1160 = vsel %vm787, %v775, 0.0
  %v1161 = vadd.f32 %v773, %v1160
  %1162 = vadd.xlane.f32.xlu0 %v1161
  %v1163 = vpop.xlane.xlu0 %1162
  %v1164 = vsel %vm787, %v781, 0.0
  %v1165 = vadd.f32 %v779, %v1164
  %1166 = vadd.xlane.f32.xlu0 %v1165
  %v1167 = vpop.xlane.xlu0 %1166
  %v1168 = vsel %vm787, %v785, 0.0
  %v1169 = vadd.f32 %v783, %v1168
  %1170 = vadd.xlane.f32.xlu0 %v1169
  %v1171 = vpop.xlane.xlu0 %1170
  %v1172 = vmul.f32 %v309, %v309
  %v1173 = vmul.f32 %v311, %v311
  %v1174 = vmul.f32 %v313, %v313
  %v1175 = vmul.f32 %v315, %v315
  %v1176 = vmul.f32 %v319, %v319
  %v1177 = vmul.f32 %v321, %v321
  %v1178 = vmul.f32 %v323, %v323
  %v1179 = vmul.f32 %v325, %v325
  %v1180 = vmul.f32 %v329, %v329
  %v1181 = vmul.f32 %v331, %v331
  %v1182 = vmul.f32 %v333, %v333
  %v1183 = vmul.f32 %v335, %v335
  %v1184 = vmul.f32 %v339, %v339
  %v1185 = vmul.f32 %v341, %v341
  %v1186 = vmul.f32 %v343, %v343
  %v1187 = vmul.f32 %v345, %v345
  %v1188 = vmul.f32 %v349, %v349
  %v1189 = vmul.f32 %v351, %v351
  %v1190 = vmul.f32 %v353, %v353
  %v1191 = vmul.f32 %v355, %v355
  %v1192 = vmul.f32 %v359, %v359
  %v1193 = vmul.f32 %v361, %v361
  %v1194 = vmul.f32 %v363, %v363
  %v1195 = vmul.f32 %v365, %v365
  %v1196 = vmul.f32 %v369, %v369
  %v1197 = vmul.f32 %v371, %v371
  %v1198 = vmul.f32 %v373, %v373
  %v1199 = vmul.f32 %v375, %v375
  %v1200 = vmul.f32 %v379, %v379
  %v1201 = vmul.f32 %v381, %v381
  %v1202 = vmul.f32 %v383, %v383
  %v1203 = vmul.f32 %v385, %v385
  %v1204 = vmul.f32 %v389, %v389
  %v1205 = vmul.f32 %v391, %v391
  %v1206 = vmul.f32 %v393, %v393
  %v1207 = vmul.f32 %v395, %v395
  %v1208 = vmul.f32 %v399, %v399
  %v1209 = vmul.f32 %v401, %v401
  %v1210 = vmul.f32 %v403, %v403
  %v1211 = vmul.f32 %v405, %v405
  %v1212 = vmul.f32 %v409, %v409
  %v1213 = vmul.f32 %v411, %v411
  %v1214 = vmul.f32 %v413, %v413
  %v1215 = vmul.f32 %v415, %v415
  %v1216 = vmul.f32 %v419, %v419
  %v1217 = vmul.f32 %v421, %v421
  %v1218 = vmul.f32 %v423, %v423
  %v1219 = vmul.f32 %v425, %v425
  %v1220 = vmul.f32 %v429, %v429
  %v1221 = vmul.f32 %v431, %v431
  %v1222 = vmul.f32 %v433, %v433
  %v1223 = vmul.f32 %v435, %v435
  %v1224 = vmul.f32 %v439, %v439
  %v1225 = vmul.f32 %v441, %v441
  %v1226 = vmul.f32 %v443, %v443
  %v1227 = vmul.f32 %v445, %v445
  %v1228 = vmul.f32 %v449, %v449
  %v1229 = vmul.f32 %v451, %v451
  %v1230 = vmul.f32 %v453, %v453
  %v1231 = vmul.f32 %v455, %v455
  %v1232 = vmul.f32 %v459, %v459
  %v1233 = vmul.f32 %v461, %v461
  %v1234 = vmul.f32 %v463, %v463
  %v1235 = vmul.f32 %v465, %v465
  %v1236 = vmul.f32 %v469, %v469
  %v1237 = vmul.f32 %v471, %v471
  %v1238 = vmul.f32 %v473, %v473
  %v1239 = vmul.f32 %v475, %v475
  %v1240 = vmul.f32 %v479, %v479
  %v1241 = vmul.f32 %v481, %v481
  %v1242 = vmul.f32 %v483, %v483
  %v1243 = vmul.f32 %v485, %v485
  %v1244 = vmul.f32 %v489, %v489
  %v1245 = vmul.f32 %v491, %v491
  %v1246 = vmul.f32 %v493, %v493
  %v1247 = vmul.f32 %v495, %v495
  %v1248 = vmul.f32 %v499, %v499
  %v1249 = vmul.f32 %v501, %v501
  %v1250 = vmul.f32 %v503, %v503
  %v1251 = vmul.f32 %v505, %v505
  %v1252 = vmul.f32 %v509, %v509
  %v1253 = vmul.f32 %v511, %v511
  %v1254 = vmul.f32 %v513, %v513
  %v1255 = vmul.f32 %v515, %v515
  %v1256 = vmul.f32 %v519, %v519
  %v1257 = vmul.f32 %v521, %v521
  %v1258 = vmul.f32 %v523, %v523
  %v1259 = vmul.f32 %v525, %v525
  %v1260 = vmul.f32 %v529, %v529
  %v1261 = vmul.f32 %v531, %v531
  %v1262 = vmul.f32 %v533, %v533
  %v1263 = vmul.f32 %v535, %v535
  %v1264 = vmul.f32 %v539, %v539
  %v1265 = vmul.f32 %v541, %v541
  %v1266 = vmul.f32 %v543, %v543
  %v1267 = vmul.f32 %v545, %v545
  %v1268 = vmul.f32 %v549, %v549
  %v1269 = vmul.f32 %v551, %v551
  %v1270 = vmul.f32 %v553, %v553
  %v1271 = vmul.f32 %v555, %v555
  %v1272 = vmul.f32 %v559, %v559
  %v1273 = vmul.f32 %v561, %v561
  %v1274 = vmul.f32 %v563, %v563
  %v1275 = vmul.f32 %v565, %v565
  %v1276 = vmul.f32 %v569, %v569
  %v1277 = vmul.f32 %v571, %v571
  %v1278 = vmul.f32 %v573, %v573
  %v1279 = vmul.f32 %v575, %v575
  %v1280 = vmul.f32 %v579, %v579
  %v1281 = vmul.f32 %v581, %v581
  %v1282 = vmul.f32 %v583, %v583
  %v1283 = vmul.f32 %v585, %v585
  %v1284 = vmul.f32 %v589, %v589
  %v1285 = vmul.f32 %v591, %v591
  %v1286 = vmul.f32 %v593, %v593
  %v1287 = vmul.f32 %v595, %v595
  %v1288 = vmul.f32 %v599, %v599
  %v1289 = vmul.f32 %v601, %v601
  %v1290 = vmul.f32 %v603, %v603
  %v1291 = vmul.f32 %v605, %v605
  %v1292 = vmul.f32 %v609, %v609
  %v1293 = vmul.f32 %v611, %v611
  %v1294 = vmul.f32 %v613, %v613
  %v1295 = vmul.f32 %v615, %v615
  %v1296 = vmul.f32 %v619, %v619
  %v1297 = vmul.f32 %v621, %v621
  %v1298 = vmul.f32 %v623, %v623
  %v1299 = vmul.f32 %v625, %v625
  %v1300 = vmul.f32 %v629, %v629
  %v1301 = vmul.f32 %v631, %v631
  %v1302 = vmul.f32 %v633, %v633
  %v1303 = vmul.f32 %v635, %v635
  %v1304 = vmul.f32 %v639, %v639
  %v1305 = vmul.f32 %v641, %v641
  %v1306 = vmul.f32 %v643, %v643
  %v1307 = vmul.f32 %v645, %v645
  %v1308 = vmul.f32 %v649, %v649
  %v1309 = vmul.f32 %v651, %v651
  %v1310 = vmul.f32 %v653, %v653
  %v1311 = vmul.f32 %v655, %v655
  %v1312 = vmul.f32 %v659, %v659
  %v1313 = vmul.f32 %v661, %v661
  %v1314 = vmul.f32 %v663, %v663
  %v1315 = vmul.f32 %v665, %v665
  %v1316 = vmul.f32 %v669, %v669
  %v1317 = vmul.f32 %v671, %v671
  %v1318 = vmul.f32 %v673, %v673
  %v1319 = vmul.f32 %v675, %v675
  %v1320 = vmul.f32 %v679, %v679
  %v1321 = vmul.f32 %v681, %v681
  %v1322 = vmul.f32 %v683, %v683
  %v1323 = vmul.f32 %v685, %v685
  %v1324 = vmul.f32 %v689, %v689
  %v1325 = vmul.f32 %v691, %v691
  %v1326 = vmul.f32 %v693, %v693
  %v1327 = vmul.f32 %v695, %v695
  %v1328 = vmul.f32 %v699, %v699
  %v1329 = vmul.f32 %v701, %v701
  %v1330 = vmul.f32 %v703, %v703
  %v1331 = vmul.f32 %v705, %v705
  %v1332 = vmul.f32 %v709, %v709
  %v1333 = vmul.f32 %v711, %v711
  %v1334 = vmul.f32 %v713, %v713
  %v1335 = vmul.f32 %v715, %v715
  %v1336 = vmul.f32 %v719, %v719
  %v1337 = vmul.f32 %v721, %v721
  %v1338 = vmul.f32 %v723, %v723
  %v1339 = vmul.f32 %v725, %v725
  %v1340 = vmul.f32 %v729, %v729
  %v1341 = vmul.f32 %v731, %v731
  %v1342 = vmul.f32 %v733, %v733
  %v1343 = vmul.f32 %v735, %v735
  %v1344 = vmul.f32 %v739, %v739
  %v1345 = vmul.f32 %v741, %v741
  %v1346 = vmul.f32 %v743, %v743
  %v1347 = vmul.f32 %v745, %v745
  %v1348 = vmul.f32 %v749, %v749
  %v1349 = vmul.f32 %v751, %v751
  %v1350 = vmul.f32 %v753, %v753
  %v1351 = vmul.f32 %v755, %v755
  %v1352 = vmul.f32 %v759, %v759
  %v1353 = vmul.f32 %v761, %v761
  %v1354 = vmul.f32 %v763, %v763
  %v1355 = vmul.f32 %v765, %v765
  %v1356 = vmul.f32 %v769, %v769
  %v1357 = vmul.f32 %v771, %v771
  %v1358 = vmul.f32 %v773, %v773
  %v1359 = vmul.f32 %v775, %v775
  %v1360 = vmul.f32 %v779, %v779
  %v1361 = vmul.f32 %v781, %v781
  %v1362 = vmul.f32 %v783, %v783
  %v1363 = vmul.f32 %v785, %v785
  %v1364 = vsel %vm787, %v1173, 0.0
  %v1365 = vadd.f32 %v1172, %v1364
  %1366 = vadd.xlane.f32.xlu0 %v1365
  %v1367 = vpop.xlane.xlu0 %1366
  %v1368 = vsel %vm787, %v1175, 0.0
  %v1369 = vadd.f32 %v1174, %v1368
  %1370 = vadd.xlane.f32.xlu0 %v1369
  %v1371 = vpop.xlane.xlu0 %1370
  %v1372 = vsel %vm787, %v1177, 0.0
  %v1373 = vadd.f32 %v1176, %v1372
  %1374 = vadd.xlane.f32.xlu0 %v1373
  %v1375 = vpop.xlane.xlu0 %1374
  %v1376 = vsel %vm787, %v1179, 0.0
  %v1377 = vadd.f32 %v1178, %v1376
  %1378 = vadd.xlane.f32.xlu0 %v1377
  %v1379 = vpop.xlane.xlu0 %1378
  %v1380 = vsel %vm787, %v1181, 0.0
  %v1381 = vadd.f32 %v1180, %v1380
  %1382 = vadd.xlane.f32.xlu0 %v1381
  %v1383 = vpop.xlane.xlu0 %1382
  %v1384 = vsel %vm787, %v1183, 0.0
  %v1385 = vadd.f32 %v1182, %v1384
  %1386 = vadd.xlane.f32.xlu0 %v1385
  %v1387 = vpop.xlane.xlu0 %1386
  %v1388 = vsel %vm787, %v1185, 0.0
  %v1389 = vadd.f32 %v1184, %v1388
  %1390 = vadd.xlane.f32.xlu0 %v1389
  %v1391 = vpop.xlane.xlu0 %1390
  %v1392 = vsel %vm787, %v1187, 0.0
  %v1393 = vadd.f32 %v1186, %v1392
  %1394 = vadd.xlane.f32.xlu0 %v1393
  %v1395 = vpop.xlane.xlu0 %1394
  %v1396 = vsel %vm787, %v1189, 0.0
  %v1397 = vadd.f32 %v1188, %v1396
  %1398 = vadd.xlane.f32.xlu0 %v1397
  %v1399 = vpop.xlane.xlu0 %1398
  %v1400 = vsel %vm787, %v1191, 0.0
  %v1401 = vadd.f32 %v1190, %v1400
  %1402 = vadd.xlane.f32.xlu0 %v1401
  %v1403 = vpop.xlane.xlu0 %1402
  %v1404 = vsel %vm787, %v1193, 0.0
  %v1405 = vadd.f32 %v1192, %v1404
  %1406 = vadd.xlane.f32.xlu0 %v1405
  %v1407 = vpop.xlane.xlu0 %1406
  %v1408 = vsel %vm787, %v1195, 0.0
  %v1409 = vadd.f32 %v1194, %v1408
  %1410 = vadd.xlane.f32.xlu0 %v1409
  %v1411 = vpop.xlane.xlu0 %1410
  %v1412 = vsel %vm787, %v1197, 0.0
  %v1413 = vadd.f32 %v1196, %v1412
  %1414 = vadd.xlane.f32.xlu0 %v1413
  %v1415 = vpop.xlane.xlu0 %1414
  %v1416 = vsel %vm787, %v1199, 0.0
  %v1417 = vadd.f32 %v1198, %v1416
  %1418 = vadd.xlane.f32.xlu0 %v1417
  %v1419 = vpop.xlane.xlu0 %1418
  %v1420 = vsel %vm787, %v1201, 0.0
  %v1421 = vadd.f32 %v1200, %v1420
  %1422 = vadd.xlane.f32.xlu0 %v1421
  %v1423 = vpop.xlane.xlu0 %1422
  %v1424 = vsel %vm787, %v1203, 0.0
  %v1425 = vadd.f32 %v1202, %v1424
  %1426 = vadd.xlane.f32.xlu0 %v1425
  %v1427 = vpop.xlane.xlu0 %1426
  %v1428 = vsel %vm787, %v1205, 0.0
  %v1429 = vadd.f32 %v1204, %v1428
  %1430 = vadd.xlane.f32.xlu0 %v1429
  %v1431 = vpop.xlane.xlu0 %1430
  %v1432 = vsel %vm787, %v1207, 0.0
  %v1433 = vadd.f32 %v1206, %v1432
  %1434 = vadd.xlane.f32.xlu0 %v1433
  %v1435 = vpop.xlane.xlu0 %1434
  %v1436 = vsel %vm787, %v1209, 0.0
  %v1437 = vadd.f32 %v1208, %v1436
  %1438 = vadd.xlane.f32.xlu0 %v1437
  %v1439 = vpop.xlane.xlu0 %1438
  %v1440 = vsel %vm787, %v1211, 0.0
  %v1441 = vadd.f32 %v1210, %v1440
  %1442 = vadd.xlane.f32.xlu0 %v1441
  %v1443 = vpop.xlane.xlu0 %1442
  %v1444 = vsel %vm787, %v1213, 0.0
  %v1445 = vadd.f32 %v1212, %v1444
  %1446 = vadd.xlane.f32.xlu0 %v1445
  %v1447 = vpop.xlane.xlu0 %1446
  %v1448 = vsel %vm787, %v1215, 0.0
  %v1449 = vadd.f32 %v1214, %v1448
  %1450 = vadd.xlane.f32.xlu0 %v1449
  %v1451 = vpop.xlane.xlu0 %1450
  %v1452 = vsel %vm787, %v1217, 0.0
  %v1453 = vadd.f32 %v1216, %v1452
  %1454 = vadd.xlane.f32.xlu0 %v1453
  %v1455 = vpop.xlane.xlu0 %1454
  %v1456 = vsel %vm787, %v1219, 0.0
  %v1457 = vadd.f32 %v1218, %v1456
  %1458 = vadd.xlane.f32.xlu0 %v1457
  %v1459 = vpop.xlane.xlu0 %1458
  %v1460 = vsel %vm787, %v1221, 0.0
  %v1461 = vadd.f32 %v1220, %v1460
  %1462 = vadd.xlane.f32.xlu0 %v1461
  %v1463 = vpop.xlane.xlu0 %1462
  %v1464 = vsel %vm787, %v1223, 0.0
  %v1465 = vadd.f32 %v1222, %v1464
  %1466 = vadd.xlane.f32.xlu0 %v1465
  %v1467 = vpop.xlane.xlu0 %1466
  %v1468 = vsel %vm787, %v1225, 0.0
  %v1469 = vadd.f32 %v1224, %v1468
  %1470 = vadd.xlane.f32.xlu0 %v1469
  %v1471 = vpop.xlane.xlu0 %1470
  %v1472 = vsel %vm787, %v1227, 0.0
  %v1473 = vadd.f32 %v1226, %v1472
  %1474 = vadd.xlane.f32.xlu0 %v1473
  %v1475 = vpop.xlane.xlu0 %1474
  %v1476 = vsel %vm787, %v1229, 0.0
  %v1477 = vadd.f32 %v1228, %v1476
  %1478 = vadd.xlane.f32.xlu0 %v1477
  %v1479 = vpop.xlane.xlu0 %1478
  %v1480 = vsel %vm787, %v1231, 0.0
  %v1481 = vadd.f32 %v1230, %v1480
  %1482 = vadd.xlane.f32.xlu0 %v1481
  %v1483 = vpop.xlane.xlu0 %1482
  %v1484 = vsel %vm787, %v1233, 0.0
  %v1485 = vadd.f32 %v1232, %v1484
  %1486 = vadd.xlane.f32.xlu0 %v1485
  %v1487 = vpop.xlane.xlu0 %1486
  %v1488 = vsel %vm787, %v1235, 0.0
  %v1489 = vadd.f32 %v1234, %v1488
  %1490 = vadd.xlane.f32.xlu0 %v1489
  %v1491 = vpop.xlane.xlu0 %1490
  %v1492 = vsel %vm787, %v1237, 0.0
  %v1493 = vadd.f32 %v1236, %v1492
  %1494 = vadd.xlane.f32.xlu0 %v1493
  %v1495 = vpop.xlane.xlu0 %1494
  %v1496 = vsel %vm787, %v1239, 0.0
  %v1497 = vadd.f32 %v1238, %v1496
  %1498 = vadd.xlane.f32.xlu0 %v1497
  %v1499 = vpop.xlane.xlu0 %1498
  %v1500 = vsel %vm787, %v1241, 0.0
  %v1501 = vadd.f32 %v1240, %v1500
  %1502 = vadd.xlane.f32.xlu0 %v1501
  %v1503 = vpop.xlane.xlu0 %1502
  %v1504 = vsel %vm787, %v1243, 0.0
  %v1505 = vadd.f32 %v1242, %v1504
  %1506 = vadd.xlane.f32.xlu0 %v1505
  %v1507 = vpop.xlane.xlu0 %1506
  %v1508 = vsel %vm787, %v1245, 0.0
  %v1509 = vadd.f32 %v1244, %v1508
  %1510 = vadd.xlane.f32.xlu0 %v1509
  %v1511 = vpop.xlane.xlu0 %1510
  %v1512 = vsel %vm787, %v1247, 0.0
  %v1513 = vadd.f32 %v1246, %v1512
  %1514 = vadd.xlane.f32.xlu0 %v1513
  %v1515 = vpop.xlane.xlu0 %1514
  %v1516 = vsel %vm787, %v1249, 0.0
  %v1517 = vadd.f32 %v1248, %v1516
  %1518 = vadd.xlane.f32.xlu0 %v1517
  %v1519 = vpop.xlane.xlu0 %1518
  %v1520 = vsel %vm787, %v1251, 0.0
  %v1521 = vadd.f32 %v1250, %v1520
  %1522 = vadd.xlane.f32.xlu0 %v1521
  %v1523 = vpop.xlane.xlu0 %1522
  %v1524 = vsel %vm787, %v1253, 0.0
  %v1525 = vadd.f32 %v1252, %v1524
  %1526 = vadd.xlane.f32.xlu0 %v1525
  %v1527 = vpop.xlane.xlu0 %1526
  %v1528 = vsel %vm787, %v1255, 0.0
  %v1529 = vadd.f32 %v1254, %v1528
  %1530 = vadd.xlane.f32.xlu0 %v1529
  %v1531 = vpop.xlane.xlu0 %1530
  %v1532 = vsel %vm787, %v1257, 0.0
  %v1533 = vadd.f32 %v1256, %v1532
  %1534 = vadd.xlane.f32.xlu0 %v1533
  %v1535 = vpop.xlane.xlu0 %1534
  %v1536 = vsel %vm787, %v1259, 0.0
  %v1537 = vadd.f32 %v1258, %v1536
  %1538 = vadd.xlane.f32.xlu0 %v1537
  %v1539 = vpop.xlane.xlu0 %1538
  %v1540 = vsel %vm787, %v1261, 0.0
  %v1541 = vadd.f32 %v1260, %v1540
  %1542 = vadd.xlane.f32.xlu0 %v1541
  %v1543 = vpop.xlane.xlu0 %1542
  %v1544 = vsel %vm787, %v1263, 0.0
  %v1545 = vadd.f32 %v1262, %v1544
  %1546 = vadd.xlane.f32.xlu0 %v1545
  %v1547 = vpop.xlane.xlu0 %1546
  %v1548 = vsel %vm787, %v1265, 0.0
  %v1549 = vadd.f32 %v1264, %v1548
  %1550 = vadd.xlane.f32.xlu0 %v1549
  %v1551 = vpop.xlane.xlu0 %1550
  %v1552 = vsel %vm787, %v1267, 0.0
  %v1553 = vadd.f32 %v1266, %v1552
  %1554 = vadd.xlane.f32.xlu0 %v1553
  %v1555 = vpop.xlane.xlu0 %1554
  %v1556 = vsel %vm787, %v1269, 0.0
  %v1557 = vadd.f32 %v1268, %v1556
  %1558 = vadd.xlane.f32.xlu0 %v1557
  %v1559 = vpop.xlane.xlu0 %1558
  %v1560 = vsel %vm787, %v1271, 0.0
  %v1561 = vadd.f32 %v1270, %v1560
  %1562 = vadd.xlane.f32.xlu0 %v1561
  %v1563 = vpop.xlane.xlu0 %1562
  %v1564 = vsel %vm787, %v1273, 0.0
  %v1565 = vadd.f32 %v1272, %v1564
  %1566 = vadd.xlane.f32.xlu0 %v1565
  %v1567 = vpop.xlane.xlu0 %1566
  %v1568 = vsel %vm787, %v1275, 0.0
  %v1569 = vadd.f32 %v1274, %v1568
  %1570 = vadd.xlane.f32.xlu0 %v1569
  %v1571 = vpop.xlane.xlu0 %1570
  %v1572 = vsel %vm787, %v1277, 0.0
  %v1573 = vadd.f32 %v1276, %v1572
  %1574 = vadd.xlane.f32.xlu0 %v1573
  %v1575 = vpop.xlane.xlu0 %1574
  %v1576 = vsel %vm787, %v1279, 0.0
  %v1577 = vadd.f32 %v1278, %v1576
  %1578 = vadd.xlane.f32.xlu0 %v1577
  %v1579 = vpop.xlane.xlu0 %1578
  %v1580 = vsel %vm787, %v1281, 0.0
  %v1581 = vadd.f32 %v1280, %v1580
  %1582 = vadd.xlane.f32.xlu0 %v1581
  %v1583 = vpop.xlane.xlu0 %1582
  %v1584 = vsel %vm787, %v1283, 0.0
  %v1585 = vadd.f32 %v1282, %v1584
  %1586 = vadd.xlane.f32.xlu0 %v1585
  %v1587 = vpop.xlane.xlu0 %1586
  %v1588 = vsel %vm787, %v1285, 0.0
  %v1589 = vadd.f32 %v1284, %v1588
  %1590 = vadd.xlane.f32.xlu0 %v1589
  %v1591 = vpop.xlane.xlu0 %1590
  %v1592 = vsel %vm787, %v1287, 0.0
  %v1593 = vadd.f32 %v1286, %v1592
  %1594 = vadd.xlane.f32.xlu0 %v1593
  %v1595 = vpop.xlane.xlu0 %1594
  %v1596 = vsel %vm787, %v1289, 0.0
  %v1597 = vadd.f32 %v1288, %v1596
  %1598 = vadd.xlane.f32.xlu0 %v1597
  %v1599 = vpop.xlane.xlu0 %1598
  %v1600 = vsel %vm787, %v1291, 0.0
  %v1601 = vadd.f32 %v1290, %v1600
  %1602 = vadd.xlane.f32.xlu0 %v1601
  %v1603 = vpop.xlane.xlu0 %1602
  %v1604 = vsel %vm787, %v1293, 0.0
  %v1605 = vadd.f32 %v1292, %v1604
  %1606 = vadd.xlane.f32.xlu0 %v1605
  %v1607 = vpop.xlane.xlu0 %1606
  %v1608 = vsel %vm787, %v1295, 0.0
  %v1609 = vadd.f32 %v1294, %v1608
  %1610 = vadd.xlane.f32.xlu0 %v1609
  %v1611 = vpop.xlane.xlu0 %1610
  %v1612 = vsel %vm787, %v1297, 0.0
  %v1613 = vadd.f32 %v1296, %v1612
  %1614 = vadd.xlane.f32.xlu0 %v1613
  %v1615 = vpop.xlane.xlu0 %1614
  %v1616 = vsel %vm787, %v1299, 0.0
  %v1617 = vadd.f32 %v1298, %v1616
  %1618 = vadd.xlane.f32.xlu0 %v1617
  %v1619 = vpop.xlane.xlu0 %1618
  %v1620 = vsel %vm787, %v1301, 0.0
  %v1621 = vadd.f32 %v1300, %v1620
  %1622 = vadd.xlane.f32.xlu0 %v1621
  %v1623 = vpop.xlane.xlu0 %1622
  %v1624 = vsel %vm787, %v1303, 0.0
  %v1625 = vadd.f32 %v1302, %v1624
  %1626 = vadd.xlane.f32.xlu0 %v1625
  %v1627 = vpop.xlane.xlu0 %1626
  %v1628 = vsel %vm787, %v1305, 0.0
  %v1629 = vadd.f32 %v1304, %v1628
  %1630 = vadd.xlane.f32.xlu0 %v1629
  %v1631 = vpop.xlane.xlu0 %1630
  %v1632 = vsel %vm787, %v1307, 0.0
  %v1633 = vadd.f32 %v1306, %v1632
  %1634 = vadd.xlane.f32.xlu0 %v1633
  %v1635 = vpop.xlane.xlu0 %1634
  %v1636 = vsel %vm787, %v1309, 0.0
  %v1637 = vadd.f32 %v1308, %v1636
  %1638 = vadd.xlane.f32.xlu0 %v1637
  %v1639 = vpop.xlane.xlu0 %1638
  %v1640 = vsel %vm787, %v1311, 0.0
  %v1641 = vadd.f32 %v1310, %v1640
  %1642 = vadd.xlane.f32.xlu0 %v1641
  %v1643 = vpop.xlane.xlu0 %1642
  %v1644 = vsel %vm787, %v1313, 0.0
  %v1645 = vadd.f32 %v1312, %v1644
  %1646 = vadd.xlane.f32.xlu0 %v1645
  %v1647 = vpop.xlane.xlu0 %1646
  %v1648 = vsel %vm787, %v1315, 0.0
  %v1649 = vadd.f32 %v1314, %v1648
  %1650 = vadd.xlane.f32.xlu0 %v1649
  %v1651 = vpop.xlane.xlu0 %1650
  %v1652 = vsel %vm787, %v1317, 0.0
  %v1653 = vadd.f32 %v1316, %v1652
  %1654 = vadd.xlane.f32.xlu0 %v1653
  %v1655 = vpop.xlane.xlu0 %1654
  %v1656 = vsel %vm787, %v1319, 0.0
  %v1657 = vadd.f32 %v1318, %v1656
  %1658 = vadd.xlane.f32.xlu0 %v1657
  %v1659 = vpop.xlane.xlu0 %1658
  %v1660 = vsel %vm787, %v1321, 0.0
  %v1661 = vadd.f32 %v1320, %v1660
  %1662 = vadd.xlane.f32.xlu0 %v1661
  %v1663 = vpop.xlane.xlu0 %1662
  %v1664 = vsel %vm787, %v1323, 0.0
  %v1665 = vadd.f32 %v1322, %v1664
  %1666 = vadd.xlane.f32.xlu0 %v1665
  %v1667 = vpop.xlane.xlu0 %1666
  %v1668 = vsel %vm787, %v1325, 0.0
  %v1669 = vadd.f32 %v1324, %v1668
  %1670 = vadd.xlane.f32.xlu0 %v1669
  %v1671 = vpop.xlane.xlu0 %1670
  %v1672 = vsel %vm787, %v1327, 0.0
  %v1673 = vadd.f32 %v1326, %v1672
  %1674 = vadd.xlane.f32.xlu0 %v1673
  %v1675 = vpop.xlane.xlu0 %1674
  %v1676 = vsel %vm787, %v1329, 0.0
  %v1677 = vadd.f32 %v1328, %v1676
  %1678 = vadd.xlane.f32.xlu0 %v1677
  %v1679 = vpop.xlane.xlu0 %1678
  %v1680 = vsel %vm787, %v1331, 0.0
  %v1681 = vadd.f32 %v1330, %v1680
  %1682 = vadd.xlane.f32.xlu0 %v1681
  %v1683 = vpop.xlane.xlu0 %1682
  %v1684 = vsel %vm787, %v1333, 0.0
  %v1685 = vadd.f32 %v1332, %v1684
  %1686 = vadd.xlane.f32.xlu0 %v1685
  %v1687 = vpop.xlane.xlu0 %1686
  %v1688 = vsel %vm787, %v1335, 0.0
  %v1689 = vadd.f32 %v1334, %v1688
  %1690 = vadd.xlane.f32.xlu0 %v1689
  %v1691 = vpop.xlane.xlu0 %1690
  %v1692 = vsel %vm787, %v1337, 0.0
  %v1693 = vadd.f32 %v1336, %v1692
  %1694 = vadd.xlane.f32.xlu0 %v1693
  %v1695 = vpop.xlane.xlu0 %1694
  %v1696 = vsel %vm787, %v1339, 0.0
  %v1697 = vadd.f32 %v1338, %v1696
  %1698 = vadd.xlane.f32.xlu0 %v1697
  %v1699 = vpop.xlane.xlu0 %1698
  %v1700 = vsel %vm787, %v1341, 0.0
  %v1701 = vadd.f32 %v1340, %v1700
  %1702 = vadd.xlane.f32.xlu0 %v1701
  %v1703 = vpop.xlane.xlu0 %1702
  %v1704 = vsel %vm787, %v1343, 0.0
  %v1705 = vadd.f32 %v1342, %v1704
  %1706 = vadd.xlane.f32.xlu0 %v1705
  %v1707 = vpop.xlane.xlu0 %1706
  %v1708 = vsel %vm787, %v1345, 0.0
  %v1709 = vadd.f32 %v1344, %v1708
  %1710 = vadd.xlane.f32.xlu0 %v1709
  %v1711 = vpop.xlane.xlu0 %1710
  %v1712 = vsel %vm787, %v1347, 0.0
  %v1713 = vadd.f32 %v1346, %v1712
  %1714 = vadd.xlane.f32.xlu0 %v1713
  %v1715 = vpop.xlane.xlu0 %1714
  %v1716 = vsel %vm787, %v1349, 0.0
  %v1717 = vadd.f32 %v1348, %v1716
  %1718 = vadd.xlane.f32.xlu0 %v1717
  %v1719 = vpop.xlane.xlu0 %1718
  %v1720 = vsel %vm787, %v1351, 0.0
  %v1721 = vadd.f32 %v1350, %v1720
  %1722 = vadd.xlane.f32.xlu0 %v1721
  %v1723 = vpop.xlane.xlu0 %1722
  %v1724 = vsel %vm787, %v1353, 0.0
  %v1725 = vadd.f32 %v1352, %v1724
  %1726 = vadd.xlane.f32.xlu0 %v1725
  %v1727 = vpop.xlane.xlu0 %1726
  %v1728 = vsel %vm787, %v1355, 0.0
  %v1729 = vadd.f32 %v1354, %v1728
  %1730 = vadd.xlane.f32.xlu0 %v1729
  %v1731 = vpop.xlane.xlu0 %1730
  %v1732 = vsel %vm787, %v1357, 0.0
  %v1733 = vadd.f32 %v1356, %v1732
  %1734 = vadd.xlane.f32.xlu0 %v1733
  %v1735 = vpop.xlane.xlu0 %1734
  %v1736 = vsel %vm787, %v1359, 0.0
  %v1737 = vadd.f32 %v1358, %v1736
  %1738 = vadd.xlane.f32.xlu0 %v1737
  %v1739 = vpop.xlane.xlu0 %1738
  %v1740 = vsel %vm787, %v1361, 0.0
  %v1741 = vadd.f32 %v1360, %v1740
  %1742 = vadd.xlane.f32.xlu0 %v1741
  %v1743 = vpop.xlane.xlu0 %1742
  %v1744 = vsel %vm787, %v1363, 0.0
  %v1745 = vadd.f32 %v1362, %v1744
  %1746 = vadd.xlane.f32.xlu0 %v1745
  %v1747 = vpop.xlane.xlu0 %1746
  %v1748 = vmul.f32 %v791, 0.0051020407
  %v1749 = vmul.f32 %v795, 0.0051020407
  %v1750 = vmul.f32 %v799, 0.0051020407
  %v1751 = vmul.f32 %v803, 0.0051020407
  %v1752 = vmul.f32 %v807, 0.0051020407
  %v1753 = vmul.f32 %v811, 0.0051020407
  %v1754 = vmul.f32 %v815, 0.0051020407
  %v1755 = vmul.f32 %v819, 0.0051020407
  %v1756 = vmul.f32 %v823, 0.0051020407
  %v1757 = vmul.f32 %v827, 0.0051020407
  %v1758 = vmul.f32 %v831, 0.0051020407
  %v1759 = vmul.f32 %v835, 0.0051020407
  %v1760 = vmul.f32 %v839, 0.0051020407
  %v1761 = vmul.f32 %v843, 0.0051020407
  %v1762 = vmul.f32 %v847, 0.0051020407
  %v1763 = vmul.f32 %v851, 0.0051020407
  %v1764 = vmul.f32 %v855, 0.0051020407
  %v1765 = vmul.f32 %v859, 0.0051020407
  %v1766 = vmul.f32 %v863, 0.0051020407
  %v1767 = vmul.f32 %v867, 0.0051020407
  %v1768 = vmul.f32 %v871, 0.0051020407
  %v1769 = vmul.f32 %v875, 0.0051020407
  %v1770 = vmul.f32 %v879, 0.0051020407
  %v1771 = vmul.f32 %v883, 0.0051020407
  %v1772 = vmul.f32 %v887, 0.0051020407
  %v1773 = vmul.f32 %v891, 0.0051020407
  %v1774 = vmul.f32 %v895, 0.0051020407
  %v1775 = vmul.f32 %v899, 0.0051020407
  %v1776 = vmul.f32 %v903, 0.0051020407
  %v1777 = vmul.f32 %v907, 0.0051020407
  %v1778 = vmul.f32 %v911, 0.0051020407
  %v1779 = vmul.f32 %v915, 0.0051020407
  %v1780 = vmul.f32 %v919, 0.0051020407
  %v1781 = vmul.f32 %v923, 0.0051020407
  %v1782 = vmul.f32 %v927, 0.0051020407
  %v1783 = vmul.f32 %v931, 0.0051020407
  %v1784 = vmul.f32 %v935, 0.0051020407
  %v1785 = vmul.f32 %v939, 0.0051020407
  %v1786 = vmul.f32 %v943, 0.0051020407
  %v1787 = vmul.f32 %v947, 0.0051020407
  %v1788 = vmul.f32 %v951, 0.0051020407
  %v1789 = vmul.f32 %v955, 0.0051020407
  %v1790 = vmul.f32 %v959, 0.0051020407
  %v1791 = vmul.f32 %v963, 0.0051020407
  %v1792 = vmul.f32 %v967, 0.0051020407
  %v1793 = vmul.f32 %v971, 0.0051020407
  %v1794 = vmul.f32 %v975, 0.0051020407
  %v1795 = vmul.f32 %v979, 0.0051020407
  %v1796 = vmul.f32 %v983, 0.0051020407
  %v1797 = vmul.f32 %v987, 0.0051020407
  %v1798 = vmul.f32 %v991, 0.0051020407
  %v1799 = vmul.f32 %v995, 0.0051020407
  %v1800 = vmul.f32 %v999, 0.0051020407
  %v1801 = vmul.f32 %v1003, 0.0051020407
  %v1802 = vmul.f32 %v1007, 0.0051020407
  %v1803 = vmul.f32 %v1011, 0.0051020407
  %v1804 = vmul.f32 %v1015, 0.0051020407
  %v1805 = vmul.f32 %v1019, 0.0051020407
  %v1806 = vmul.f32 %v1023, 0.0051020407
  %v1807 = vmul.f32 %v1027, 0.0051020407
  %v1808 = vmul.f32 %v1031, 0.0051020407
  %v1809 = vmul.f32 %v1035, 0.0051020407
  %v1810 = vmul.f32 %v1039, 0.0051020407
  %v1811 = vmul.f32 %v1043, 0.0051020407
  %v1812 = vmul.f32 %v1047, 0.0051020407
  %v1813 = vmul.f32 %v1051, 0.0051020407
  %v1814 = vmul.f32 %v1055, 0.0051020407
  %v1815 = vmul.f32 %v1059, 0.0051020407
  %v1816 = vmul.f32 %v1063, 0.0051020407
  %v1817 = vmul.f32 %v1067, 0.0051020407
  %v1818 = vmul.f32 %v1071, 0.0051020407
  %v1819 = vmul.f32 %v1075, 0.0051020407
  %v1820 = vmul.f32 %v1079, 0.0051020407
  %v1821 = vmul.f32 %v1083, 0.0051020407
  %v1822 = vmul.f32 %v1087, 0.0051020407
  %v1823 = vmul.f32 %v1091, 0.0051020407
  %v1824 = vmul.f32 %v1095, 0.0051020407
  %v1825 = vmul.f32 %v1099, 0.0051020407
  %v1826 = vmul.f32 %v1103, 0.0051020407
  %v1827 = vmul.f32 %v1107, 0.0051020407
  %v1828 = vmul.f32 %v1111, 0.0051020407
  %v1829 = vmul.f32 %v1115, 0.0051020407
  %v1830 = vmul.f32 %v1119, 0.0051020407
  %v1831 = vmul.f32 %v1123, 0.0051020407
  %v1832 = vmul.f32 %v1127, 0.0051020407
  %v1833 = vmul.f32 %v1131, 0.0051020407
  %v1834 = vmul.f32 %v1135, 0.0051020407
  %v1835 = vmul.f32 %v1139, 0.0051020407
  %v1836 = vmul.f32 %v1143, 0.0051020407
  %v1837 = vmul.f32 %v1147, 0.0051020407
  %v1838 = vmul.f32 %v1151, 0.0051020407
  %v1839 = vmul.f32 %v1155, 0.0051020407
  %v1840 = vmul.f32 %v1159, 0.0051020407
  %v1841 = vmul.f32 %v1163, 0.0051020407
  %v1842 = vmul.f32 %v1167, 0.0051020407
  %v1843 = vmul.f32 %v1171, 0.0051020407
  %v1844 = vmul.f32 %v1367, 0.0051020407
  %v1845 = vmul.f32 %v1371, 0.0051020407
  %v1846 = vmul.f32 %v1375, 0.0051020407
  %v1847 = vmul.f32 %v1379, 0.0051020407
  %v1848 = vmul.f32 %v1383, 0.0051020407
  %v1849 = vmul.f32 %v1387, 0.0051020407
  %v1850 = vmul.f32 %v1391, 0.0051020407
  %v1851 = vmul.f32 %v1395, 0.0051020407
  %v1852 = vmul.f32 %v1399, 0.0051020407
  %v1853 = vmul.f32 %v1403, 0.0051020407
  %v1854 = vmul.f32 %v1407, 0.0051020407
  %v1855 = vmul.f32 %v1411, 0.0051020407
  %v1856 = vmul.f32 %v1415, 0.0051020407
  %v1857 = vmul.f32 %v1419, 0.0051020407
  %v1858 = vmul.f32 %v1423, 0.0051020407
  %v1859 = vmul.f32 %v1427, 0.0051020407
  %v1860 = vmul.f32 %v1431, 0.0051020407
  %v1861 = vmul.f32 %v1435, 0.0051020407
  %v1862 = vmul.f32 %v1439, 0.0051020407
  %v1863 = vmul.f32 %v1443, 0.0051020407
  %v1864 = vmul.f32 %v1447, 0.0051020407
  %v1865 = vmul.f32 %v1451, 0.0051020407
  %v1866 = vmul.f32 %v1455, 0.0051020407
  %v1867 = vmul.f32 %v1459, 0.0051020407
  %v1868 = vmul.f32 %v1463, 0.0051020407
  %v1869 = vmul.f32 %v1467, 0.0051020407
  %v1870 = vmul.f32 %v1471, 0.0051020407
  %v1871 = vmul.f32 %v1475, 0.0051020407
  %v1872 = vmul.f32 %v1479, 0.0051020407
  %v1873 = vmul.f32 %v1483, 0.0051020407
  %v1874 = vmul.f32 %v1487, 0.0051020407
  %v1875 = vmul.f32 %v1491, 0.0051020407
  %v1876 = vmul.f32 %v1495, 0.0051020407
  %v1877 = vmul.f32 %v1499, 0.0051020407
  %v1878 = vmul.f32 %v1503, 0.0051020407
  %v1879 = vmul.f32 %v1507, 0.0051020407
  %v1880 = vmul.f32 %v1511, 0.0051020407
  %v1881 = vmul.f32 %v1515, 0.0051020407
  %v1882 = vmul.f32 %v1519, 0.0051020407
  %v1883 = vmul.f32 %v1523, 0.0051020407
  %v1884 = vmul.f32 %v1527, 0.0051020407
  %v1885 = vmul.f32 %v1531, 0.0051020407
  %v1886 = vmul.f32 %v1535, 0.0051020407
  %v1887 = vmul.f32 %v1539, 0.0051020407
  %v1888 = vmul.f32 %v1543, 0.0051020407
  %v1889 = vmul.f32 %v1547, 0.0051020407
  %v1890 = vmul.f32 %v1551, 0.0051020407
  %v1891 = vmul.f32 %v1555, 0.0051020407
  %v1892 = vmul.f32 %v1559, 0.0051020407
  %v1893 = vmul.f32 %v1563, 0.0051020407
  %v1894 = vmul.f32 %v1567, 0.0051020407
  %v1895 = vmul.f32 %v1571, 0.0051020407
  %v1896 = vmul.f32 %v1575, 0.0051020407
  %v1897 = vmul.f32 %v1579, 0.0051020407
  %v1898 = vmul.f32 %v1583, 0.0051020407
  %v1899 = vmul.f32 %v1587, 0.0051020407
  %v1900 = vmul.f32 %v1591, 0.0051020407
  %v1901 = vmul.f32 %v1595, 0.0051020407
  %v1902 = vmul.f32 %v1599, 0.0051020407
  %v1903 = vmul.f32 %v1603, 0.0051020407
  %v1904 = vmul.f32 %v1607, 0.0051020407
  %v1905 = vmul.f32 %v1611, 0.0051020407
  %v1906 = vmul.f32 %v1615, 0.0051020407
  %v1907 = vmul.f32 %v1619, 0.0051020407
  %v1908 = vmul.f32 %v1623, 0.0051020407
  %v1909 = vmul.f32 %v1627, 0.0051020407
  %v1910 = vmul.f32 %v1631, 0.0051020407
  %v1911 = vmul.f32 %v1635, 0.0051020407
  %v1912 = vmul.f32 %v1639, 0.0051020407
  %v1913 = vmul.f32 %v1643, 0.0051020407
  %v1914 = vmul.f32 %v1647, 0.0051020407
  %v1915 = vmul.f32 %v1651, 0.0051020407
  %v1916 = vmul.f32 %v1655, 0.0051020407
  %v1917 = vmul.f32 %v1659, 0.0051020407
  %v1918 = vmul.f32 %v1663, 0.0051020407
  %v1919 = vmul.f32 %v1667, 0.0051020407
  %v1920 = vmul.f32 %v1671, 0.0051020407
  %v1921 = vmul.f32 %v1675, 0.0051020407
  %v1922 = vmul.f32 %v1679, 0.0051020407
  %v1923 = vmul.f32 %v1683, 0.0051020407
  %v1924 = vmul.f32 %v1687, 0.0051020407
  %v1925 = vmul.f32 %v1691, 0.0051020407
  %v1926 = vmul.f32 %v1695, 0.0051020407
  %v1927 = vmul.f32 %v1699, 0.0051020407
  %v1928 = vmul.f32 %v1703, 0.0051020407
  %v1929 = vmul.f32 %v1707, 0.0051020407
  %v1930 = vmul.f32 %v1711, 0.0051020407
  %v1931 = vmul.f32 %v1715, 0.0051020407
  %v1932 = vmul.f32 %v1719, 0.0051020407
  %v1933 = vmul.f32 %v1723, 0.0051020407
  %v1934 = vmul.f32 %v1727, 0.0051020407
  %v1935 = vmul.f32 %v1731, 0.0051020407
  %v1936 = vmul.f32 %v1735, 0.0051020407
  %v1937 = vmul.f32 %v1739, 0.0051020407
  %v1938 = vmul.f32 %v1743, 0.0051020407
  %v1939 = vmul.f32 %v1747, 0.0051020407
  %v1940 = vmul.f32 %v1748, %v1748
  %v1941 = vmul.f32 %v1749, %v1749
  %v1942 = vmul.f32 %v1750, %v1750
  %v1943 = vmul.f32 %v1751, %v1751
  %v1944 = vmul.f32 %v1752, %v1752
  %v1945 = vmul.f32 %v1753, %v1753
  %v1946 = vmul.f32 %v1754, %v1754
  %v1947 = vmul.f32 %v1755, %v1755
  %v1948 = vmul.f32 %v1756, %v1756
  %v1949 = vmul.f32 %v1757, %v1757
  %v1950 = vmul.f32 %v1758, %v1758
  %v1951 = vmul.f32 %v1759, %v1759
  %v1952 = vmul.f32 %v1760, %v1760
  %v1953 = vmul.f32 %v1761, %v1761
  %v1954 = vmul.f32 %v1762, %v1762
  %v1955 = vmul.f32 %v1763, %v1763
  %v1956 = vmul.f32 %v1764, %v1764
  %v1957 = vmul.f32 %v1765, %v1765
  %v1958 = vmul.f32 %v1766, %v1766
  %v1959 = vmul.f32 %v1767, %v1767
  %v1960 = vmul.f32 %v1768, %v1768
  %v1961 = vmul.f32 %v1769, %v1769
  %v1962 = vmul.f32 %v1770, %v1770
  %v1963 = vmul.f32 %v1771, %v1771
  %v1964 = vmul.f32 %v1772, %v1772
  %v1965 = vmul.f32 %v1773, %v1773
  %v1966 = vmul.f32 %v1774, %v1774
  %v1967 = vmul.f32 %v1775, %v1775
  %v1968 = vmul.f32 %v1776, %v1776
  %v1969 = vmul.f32 %v1777, %v1777
  %v1970 = vmul.f32 %v1778, %v1778
  %v1971 = vmul.f32 %v1779, %v1779
  %v1972 = vmul.f32 %v1780, %v1780
  %v1973 = vmul.f32 %v1781, %v1781
  %v1974 = vmul.f32 %v1782, %v1782
  %v1975 = vmul.f32 %v1783, %v1783
  %v1976 = vmul.f32 %v1784, %v1784
  %v1977 = vmul.f32 %v1785, %v1785
  %v1978 = vmul.f32 %v1786, %v1786
  %v1979 = vmul.f32 %v1787, %v1787
  %v1980 = vmul.f32 %v1788, %v1788
  %v1981 = vmul.f32 %v1789, %v1789
  %v1982 = vmul.f32 %v1790, %v1790
  %v1983 = vmul.f32 %v1791, %v1791
  %v1984 = vmul.f32 %v1792, %v1792
  %v1985 = vmul.f32 %v1793, %v1793
  %v1986 = vmul.f32 %v1794, %v1794
  %v1987 = vmul.f32 %v1795, %v1795
  %v1988 = vmul.f32 %v1796, %v1796
  %v1989 = vmul.f32 %v1797, %v1797
  %v1990 = vmul.f32 %v1798, %v1798
  %v1991 = vmul.f32 %v1799, %v1799
  %v1992 = vmul.f32 %v1800, %v1800
  %v1993 = vmul.f32 %v1801, %v1801
  %v1994 = vmul.f32 %v1802, %v1802
  %v1995 = vmul.f32 %v1803, %v1803
  %v1996 = vmul.f32 %v1804, %v1804
  %v1997 = vmul.f32 %v1805, %v1805
  %v1998 = vmul.f32 %v1806, %v1806
  %v1999 = vmul.f32 %v1807, %v1807
  %v2000 = vmul.f32 %v1808, %v1808
  %v2001 = vmul.f32 %v1809, %v1809
  %v2002 = vmul.f32 %v1810, %v1810
  %v2003 = vmul.f32 %v1811, %v1811
  %v2004 = vmul.f32 %v1812, %v1812
  %v2005 = vmul.f32 %v1813, %v1813
  %v2006 = vmul.f32 %v1814, %v1814
  %v2007 = vmul.f32 %v1815, %v1815
  %v2008 = vmul.f32 %v1816, %v1816
  %v2009 = vmul.f32 %v1817, %v1817
  %v2010 = vmul.f32 %v1818, %v1818
  %v2011 = vmul.f32 %v1819, %v1819
  %v2012 = vmul.f32 %v1820, %v1820
  %v2013 = vmul.f32 %v1821, %v1821
  %v2014 = vmul.f32 %v1822, %v1822
  %v2015 = vmul.f32 %v1823, %v1823
  %v2016 = vmul.f32 %v1824, %v1824
  %v2017 = vmul.f32 %v1825, %v1825
  %v2018 = vmul.f32 %v1826, %v1826
  %v2019 = vmul.f32 %v1827, %v1827
  %v2020 = vmul.f32 %v1828, %v1828
  %v2021 = vmul.f32 %v1829, %v1829
  %v2022 = vmul.f32 %v1830, %v1830
  %v2023 = vmul.f32 %v1831, %v1831
  %v2024 = vmul.f32 %v1832, %v1832
  %v2025 = vmul.f32 %v1833, %v1833
  %v2026 = vmul.f32 %v1834, %v1834
  %v2027 = vmul.f32 %v1835, %v1835
  %v2028 = vmul.f32 %v1836, %v1836
  %v2029 = vmul.f32 %v1837, %v1837
  %v2030 = vmul.f32 %v1838, %v1838
  %v2031 = vmul.f32 %v1839, %v1839
  %v2032 = vmul.f32 %v1840, %v1840
  %v2033 = vmul.f32 %v1841, %v1841
  %v2034 = vmul.f32 %v1842, %v1842
  %v2035 = vmul.f32 %v1843, %v1843
  %v2036 = vsub.f32 %v1844, %v1940
  %v2037 = vsub.f32 %v1845, %v1941
  %v2038 = vsub.f32 %v1846, %v1942
  %v2039 = vsub.f32 %v1847, %v1943
  %v2040 = vsub.f32 %v1848, %v1944
  %v2041 = vsub.f32 %v1849, %v1945
  %v2042 = vsub.f32 %v1850, %v1946
  %v2043 = vsub.f32 %v1851, %v1947
  %v2044 = vsub.f32 %v1852, %v1948
  %v2045 = vsub.f32 %v1853, %v1949
  %v2046 = vsub.f32 %v1854, %v1950
  %v2047 = vsub.f32 %v1855, %v1951
  %v2048 = vsub.f32 %v1856, %v1952
  %v2049 = vsub.f32 %v1857, %v1953
  %v2050 = vsub.f32 %v1858, %v1954
  %v2051 = vsub.f32 %v1859, %v1955
  %v2052 = vsub.f32 %v1860, %v1956
  %v2053 = vsub.f32 %v1861, %v1957
  %v2054 = vsub.f32 %v1862, %v1958
  %v2055 = vsub.f32 %v1863, %v1959
  %v2056 = vsub.f32 %v1864, %v1960
  %v2057 = vsub.f32 %v1865, %v1961
  %v2058 = vsub.f32 %v1866, %v1962
  %v2059 = vsub.f32 %v1867, %v1963
  %v2060 = vsub.f32 %v1868, %v1964
  %v2061 = vsub.f32 %v1869, %v1965
  %v2062 = vsub.f32 %v1870, %v1966
  %v2063 = vsub.f32 %v1871, %v1967
  %v2064 = vsub.f32 %v1872, %v1968
  %v2065 = vsub.f32 %v1873, %v1969
  %v2066 = vsub.f32 %v1874, %v1970
  %v2067 = vsub.f32 %v1875, %v1971
  %v2068 = vsub.f32 %v1876, %v1972
  %v2069 = vsub.f32 %v1877, %v1973
  %v2070 = vsub.f32 %v1878, %v1974
  %v2071 = vsub.f32 %v1879, %v1975
  %v2072 = vsub.f32 %v1880, %v1976
  %v2073 = vsub.f32 %v1881, %v1977
  %v2074 = vsub.f32 %v1882, %v1978
  %v2075 = vsub.f32 %v1883, %v1979
  %v2076 = vsub.f32 %v1884, %v1980
  %v2077 = vsub.f32 %v1885, %v1981
  %v2078 = vsub.f32 %v1886, %v1982
  %v2079 = vsub.f32 %v1887, %v1983
  %v2080 = vsub.f32 %v1888, %v1984
  %v2081 = vsub.f32 %v1889, %v1985
  %v2082 = vsub.f32 %v1890, %v1986
  %v2083 = vsub.f32 %v1891, %v1987
  %v2084 = vsub.f32 %v1892, %v1988
  %v2085 = vsub.f32 %v1893, %v1989
  %v2086 = vsub.f32 %v1894, %v1990
  %v2087 = vsub.f32 %v1895, %v1991
  %v2088 = vsub.f32 %v1896, %v1992
  %v2089 = vsub.f32 %v1897, %v1993
  %v2090 = vsub.f32 %v1898, %v1994
  %v2091 = vsub.f32 %v1899, %v1995
  %v2092 = vsub.f32 %v1900, %v1996
  %v2093 = vsub.f32 %v1901, %v1997
  %v2094 = vsub.f32 %v1902, %v1998
  %v2095 = vsub.f32 %v1903, %v1999
  %v2096 = vsub.f32 %v1904, %v2000
  %v2097 = vsub.f32 %v1905, %v2001
  %v2098 = vsub.f32 %v1906, %v2002
  %v2099 = vsub.f32 %v1907, %v2003
  %v2100 = vsub.f32 %v1908, %v2004
  %v2101 = vsub.f32 %v1909, %v2005
  %v2102 = vsub.f32 %v1910, %v2006
  %v2103 = vsub.f32 %v1911, %v2007
  %v2104 = vsub.f32 %v1912, %v2008
  %v2105 = vsub.f32 %v1913, %v2009
  %v2106 = vsub.f32 %v1914, %v2010
  %v2107 = vsub.f32 %v1915, %v2011
  %v2108 = vsub.f32 %v1916, %v2012
  %v2109 = vsub.f32 %v1917, %v2013
  %v2110 = vsub.f32 %v1918, %v2014
  %v2111 = vsub.f32 %v1919, %v2015
  %v2112 = vsub.f32 %v1920, %v2016
  %v2113 = vsub.f32 %v1921, %v2017
  %v2114 = vsub.f32 %v1922, %v2018
  %v2115 = vsub.f32 %v1923, %v2019
  %v2116 = vsub.f32 %v1924, %v2020
  %v2117 = vsub.f32 %v1925, %v2021
  %v2118 = vsub.f32 %v1926, %v2022
  %v2119 = vsub.f32 %v1927, %v2023
  %v2120 = vsub.f32 %v1928, %v2024
  %v2121 = vsub.f32 %v1929, %v2025
  %v2122 = vsub.f32 %v1930, %v2026
  %v2123 = vsub.f32 %v1931, %v2027
  %v2124 = vsub.f32 %v1932, %v2028
  %v2125 = vsub.f32 %v1933, %v2029
  %v2126 = vsub.f32 %v1934, %v2030
  %v2127 = vsub.f32 %v1935, %v2031
  %v2128 = vsub.f32 %v1936, %v2032
  %v2129 = vsub.f32 %v1937, %v2033
  %v2130 = vsub.f32 %v1938, %v2034
  %v2131 = vsub.f32 %v1939, %v2035
  %v2132 = vmax.f32 %v2036, 0.0
  %v2133 = vmax.f32 %v2037, 0.0
  %v2134 = vmax.f32 %v2038, 0.0
  %v2135 = vmax.f32 %v2039, 0.0
  %v2136 = vmax.f32 %v2040, 0.0
  %v2137 = vmax.f32 %v2041, 0.0
  %v2138 = vmax.f32 %v2042, 0.0
  %v2139 = vmax.f32 %v2043, 0.0
  %v2140 = vmax.f32 %v2044, 0.0
  %v2141 = vmax.f32 %v2045, 0.0
  %v2142 = vmax.f32 %v2046, 0.0
  %v2143 = vmax.f32 %v2047, 0.0
  %v2144 = vmax.f32 %v2048, 0.0
  %v2145 = vmax.f32 %v2049, 0.0
  %v2146 = vmax.f32 %v2050, 0.0
  %v2147 = vmax.f32 %v2051, 0.0
  %v2148 = vmax.f32 %v2052, 0.0
  %v2149 = vmax.f32 %v2053, 0.0
  %v2150 = vmax.f32 %v2054, 0.0
  %v2151 = vmax.f32 %v2055, 0.0
  %v2152 = vmax.f32 %v2056, 0.0
  %v2153 = vmax.f32 %v2057, 0.0
  %v2154 = vmax.f32 %v2058, 0.0
  %v2155 = vmax.f32 %v2059, 0.0
  %v2156 = vmax.f32 %v2060, 0.0
  %v2157 = vmax.f32 %v2061, 0.0
  %v2158 = vmax.f32 %v2062, 0.0
  %v2159 = vmax.f32 %v2063, 0.0
  %v2160 = vmax.f32 %v2064, 0.0
  %v2161 = vmax.f32 %v2065, 0.0
  %v2162 = vmax.f32 %v2066, 0.0
  %v2163 = vmax.f32 %v2067, 0.0
  %v2164 = vmax.f32 %v2068, 0.0
  %v2165 = vmax.f32 %v2069, 0.0
  %v2166 = vmax.f32 %v2070, 0.0
  %v2167 = vmax.f32 %v2071, 0.0
  %v2168 = vmax.f32 %v2072, 0.0
  %v2169 = vmax.f32 %v2073, 0.0
  %v2170 = vmax.f32 %v2074, 0.0
  %v2171 = vmax.f32 %v2075, 0.0
  %v2172 = vmax.f32 %v2076, 0.0
  %v2173 = vmax.f32 %v2077, 0.0
  %v2174 = vmax.f32 %v2078, 0.0
  %v2175 = vmax.f32 %v2079, 0.0
  %v2176 = vmax.f32 %v2080, 0.0
  %v2177 = vmax.f32 %v2081, 0.0
  %v2178 = vmax.f32 %v2082, 0.0
  %v2179 = vmax.f32 %v2083, 0.0
  %v2180 = vmax.f32 %v2084, 0.0
  %v2181 = vmax.f32 %v2085, 0.0
  %v2182 = vmax.f32 %v2086, 0.0
  %v2183 = vmax.f32 %v2087, 0.0
  %v2184 = vmax.f32 %v2088, 0.0
  %v2185 = vmax.f32 %v2089, 0.0
  %v2186 = vmax.f32 %v2090, 0.0
  %v2187 = vmax.f32 %v2091, 0.0
  %v2188 = vmax.f32 %v2092, 0.0
  %v2189 = vmax.f32 %v2093, 0.0
  %v2190 = vmax.f32 %v2094, 0.0
  %v2191 = vmax.f32 %v2095, 0.0
  %v2192 = vmax.f32 %v2096, 0.0
  %v2193 = vmax.f32 %v2097, 0.0
  %v2194 = vmax.f32 %v2098, 0.0
  %v2195 = vmax.f32 %v2099, 0.0
  %v2196 = vmax.f32 %v2100, 0.0
  %v2197 = vmax.f32 %v2101, 0.0
  %v2198 = vmax.f32 %v2102, 0.0
  %v2199 = vmax.f32 %v2103, 0.0
  %v2200 = vmax.f32 %v2104, 0.0
  %v2201 = vmax.f32 %v2105, 0.0
  %v2202 = vmax.f32 %v2106, 0.0
  %v2203 = vmax.f32 %v2107, 0.0
  %v2204 = vmax.f32 %v2108, 0.0
  %v2205 = vmax.f32 %v2109, 0.0
  %v2206 = vmax.f32 %v2110, 0.0
  %v2207 = vmax.f32 %v2111, 0.0
  %v2208 = vmax.f32 %v2112, 0.0
  %v2209 = vmax.f32 %v2113, 0.0
  %v2210 = vmax.f32 %v2114, 0.0
  %v2211 = vmax.f32 %v2115, 0.0
  %v2212 = vmax.f32 %v2116, 0.0
  %v2213 = vmax.f32 %v2117, 0.0
  %v2214 = vmax.f32 %v2118, 0.0
  %v2215 = vmax.f32 %v2119, 0.0
  %v2216 = vmax.f32 %v2120, 0.0
  %v2217 = vmax.f32 %v2121, 0.0
  %v2218 = vmax.f32 %v2122, 0.0
  %v2219 = vmax.f32 %v2123, 0.0
  %v2220 = vmax.f32 %v2124, 0.0
  %v2221 = vmax.f32 %v2125, 0.0
  %v2222 = vmax.f32 %v2126, 0.0
  %v2223 = vmax.f32 %v2127, 0.0
  %v2224 = vmax.f32 %v2128, 0.0
  %v2225 = vmax.f32 %v2129, 0.0
  %v2226 = vmax.f32 %v2130, 0.0
  %v2227 = vmax.f32 %v2131, 0.0
  %v2228 = vadd.f32 %v2132, 1e-05
  %v2229 = vadd.f32 %v2133, 1e-05
  %v2230 = vadd.f32 %v2134, 1e-05
  %v2231 = vadd.f32 %v2135, 1e-05
  %v2232 = vadd.f32 %v2136, 1e-05
  %v2233 = vadd.f32 %v2137, 1e-05
  %v2234 = vadd.f32 %v2138, 1e-05
  %v2235 = vadd.f32 %v2139, 1e-05
  %v2236 = vadd.f32 %v2140, 1e-05
  %v2237 = vadd.f32 %v2141, 1e-05
  %v2238 = vadd.f32 %v2142, 1e-05
  %v2239 = vadd.f32 %v2143, 1e-05
  %v2240 = vadd.f32 %v2144, 1e-05
  %v2241 = vadd.f32 %v2145, 1e-05
  %v2242 = vadd.f32 %v2146, 1e-05
  %v2243 = vadd.f32 %v2147, 1e-05
  %v2244 = vadd.f32 %v2148, 1e-05
  %v2245 = vadd.f32 %v2149, 1e-05
  %v2246 = vadd.f32 %v2150, 1e-05
  %v2247 = vadd.f32 %v2151, 1e-05
  %v2248 = vadd.f32 %v2152, 1e-05
  %v2249 = vadd.f32 %v2153, 1e-05
  %v2250 = vadd.f32 %v2154, 1e-05
  %v2251 = vadd.f32 %v2155, 1e-05
  %v2252 = vadd.f32 %v2156, 1e-05
  %v2253 = vadd.f32 %v2157, 1e-05
  %v2254 = vadd.f32 %v2158, 1e-05
  %v2255 = vadd.f32 %v2159, 1e-05
  %v2256 = vadd.f32 %v2160, 1e-05
  %v2257 = vadd.f32 %v2161, 1e-05
  %v2258 = vadd.f32 %v2162, 1e-05
  %v2259 = vadd.f32 %v2163, 1e-05
  %v2260 = vadd.f32 %v2164, 1e-05
  %v2261 = vadd.f32 %v2165, 1e-05
  %v2262 = vadd.f32 %v2166, 1e-05
  %v2263 = vadd.f32 %v2167, 1e-05
  %v2264 = vadd.f32 %v2168, 1e-05
  %v2265 = vadd.f32 %v2169, 1e-05
  %v2266 = vadd.f32 %v2170, 1e-05
  %v2267 = vadd.f32 %v2171, 1e-05
  %v2268 = vadd.f32 %v2172, 1e-05
  %v2269 = vadd.f32 %v2173, 1e-05
  %v2270 = vadd.f32 %v2174, 1e-05
  %v2271 = vadd.f32 %v2175, 1e-05
  %v2272 = vadd.f32 %v2176, 1e-05
  %v2273 = vadd.f32 %v2177, 1e-05
  %v2274 = vadd.f32 %v2178, 1e-05
  %v2275 = vadd.f32 %v2179, 1e-05
  %v2276 = vadd.f32 %v2180, 1e-05
  %v2277 = vadd.f32 %v2181, 1e-05
  %v2278 = vadd.f32 %v2182, 1e-05
  %v2279 = vadd.f32 %v2183, 1e-05
  %v2280 = vadd.f32 %v2184, 1e-05
  %v2281 = vadd.f32 %v2185, 1e-05
  %v2282 = vadd.f32 %v2186, 1e-05
  %v2283 = vadd.f32 %v2187, 1e-05
  %v2284 = vadd.f32 %v2188, 1e-05
  %v2285 = vadd.f32 %v2189, 1e-05
  %v2286 = vadd.f32 %v2190, 1e-05
  %v2287 = vadd.f32 %v2191, 1e-05
  %v2288 = vadd.f32 %v2192, 1e-05
  %v2289 = vadd.f32 %v2193, 1e-05
  %v2290 = vadd.f32 %v2194, 1e-05
  %v2291 = vadd.f32 %v2195, 1e-05
  %v2292 = vadd.f32 %v2196, 1e-05
  %v2293 = vadd.f32 %v2197, 1e-05
  %v2294 = vadd.f32 %v2198, 1e-05
  %v2295 = vadd.f32 %v2199, 1e-05
  %v2296 = vadd.f32 %v2200, 1e-05
  %v2297 = vadd.f32 %v2201, 1e-05
  %v2298 = vadd.f32 %v2202, 1e-05
  %v2299 = vadd.f32 %v2203, 1e-05
  %v2300 = vadd.f32 %v2204, 1e-05
  %v2301 = vadd.f32 %v2205, 1e-05
  %v2302 = vadd.f32 %v2206, 1e-05
  %v2303 = vadd.f32 %v2207, 1e-05
  %v2304 = vadd.f32 %v2208, 1e-05
  %v2305 = vadd.f32 %v2209, 1e-05
  %v2306 = vadd.f32 %v2210, 1e-05
  %v2307 = vadd.f32 %v2211, 1e-05
  %v2308 = vadd.f32 %v2212, 1e-05
  %v2309 = vadd.f32 %v2213, 1e-05
  %v2310 = vadd.f32 %v2214, 1e-05
  %v2311 = vadd.f32 %v2215, 1e-05
  %v2312 = vadd.f32 %v2216, 1e-05
  %v2313 = vadd.f32 %v2217, 1e-05
  %v2314 = vadd.f32 %v2218, 1e-05
  %v2315 = vadd.f32 %v2219, 1e-05
  %v2316 = vadd.f32 %v2220, 1e-05
  %v2317 = vadd.f32 %v2221, 1e-05
  %v2318 = vadd.f32 %v2222, 1e-05
  %v2319 = vadd.f32 %v2223, 1e-05
  %v2320 = vadd.f32 %v2224, 1e-05
  %v2321 = vadd.f32 %v2225, 1e-05
  %v2322 = vadd.f32 %v2226, 1e-05
  %v2323 = vadd.f32 %v2227, 1e-05
  %v2324 = vrsqrt.pop %v2228
  %v2325 = vrsqrt.pop %v2229
  %v2326 = vrsqrt.pop %v2230
  %v2327 = vrsqrt.pop %v2231
  %v2328 = vrsqrt.pop %v2232
  %v2329 = vrsqrt.pop %v2233
  %v2330 = vrsqrt.pop %v2234
  %v2331 = vrsqrt.pop %v2235
  %v2332 = vrsqrt.pop %v2236
  %v2333 = vrsqrt.pop %v2237
  %v2334 = vrsqrt.pop %v2238
  %v2335 = vrsqrt.pop %v2239
  %v2336 = vrsqrt.pop %v2240
  %v2337 = vrsqrt.pop %v2241
  %v2338 = vrsqrt.pop %v2242
  %v2339 = vrsqrt.pop %v2243
  %v2340 = vrsqrt.pop %v2244
  %v2341 = vrsqrt.pop %v2245
  %v2342 = vrsqrt.pop %v2246
  %v2343 = vrsqrt.pop %v2247
  %v2344 = vrsqrt.pop %v2248
  %v2345 = vrsqrt.pop %v2249
  %v2346 = vrsqrt.pop %v2250
  %v2347 = vrsqrt.pop %v2251
  %v2348 = vrsqrt.pop %v2252
  %v2349 = vrsqrt.pop %v2253
  %v2350 = vrsqrt.pop %v2254
  %v2351 = vrsqrt.pop %v2255
  %v2352 = vrsqrt.pop %v2256
  %v2353 = vrsqrt.pop %v2257
  %v2354 = vrsqrt.pop %v2258
  %v2355 = vrsqrt.pop %v2259
  %v2356 = vrsqrt.pop %v2260
  %v2357 = vrsqrt.pop %v2261
  %v2358 = vrsqrt.pop %v2262
  %v2359 = vrsqrt.pop %v2263
  %v2360 = vrsqrt.pop %v2264
  %v2361 = vrsqrt.pop %v2265
  %v2362 = vrsqrt.pop %v2266
  %v2363 = vrsqrt.pop %v2267
  %v2364 = vrsqrt.pop %v2268
  %v2365 = vrsqrt.pop %v2269
  %v2366 = vrsqrt.pop %v2270
  %v2367 = vrsqrt.pop %v2271
  %v2368 = vrsqrt.pop %v2272
  %v2369 = vrsqrt.pop %v2273
  %v2370 = vrsqrt.pop %v2274
  %v2371 = vrsqrt.pop %v2275
  %v2372 = vrsqrt.pop %v2276
  %v2373 = vrsqrt.pop %v2277
  %v2374 = vrsqrt.pop %v2278
  %v2375 = vrsqrt.pop %v2279
  %v2376 = vrsqrt.pop %v2280
  %v2377 = vrsqrt.pop %v2281
  %v2378 = vrsqrt.pop %v2282
  %v2379 = vrsqrt.pop %v2283
  %v2380 = vrsqrt.pop %v2284
  %v2381 = vrsqrt.pop %v2285
  %v2382 = vrsqrt.pop %v2286
  %v2383 = vrsqrt.pop %v2287
  %v2384 = vrsqrt.pop %v2288
  %v2385 = vrsqrt.pop %v2289
  %v2386 = vrsqrt.pop %v2290
  %v2387 = vrsqrt.pop %v2291
  %v2388 = vrsqrt.pop %v2292
  %v2389 = vrsqrt.pop %v2293
  %v2390 = vrsqrt.pop %v2294
  %v2391 = vrsqrt.pop %v2295
  %v2392 = vrsqrt.pop %v2296
  %v2393 = vrsqrt.pop %v2297
  %v2394 = vrsqrt.pop %v2298
  %v2395 = vrsqrt.pop %v2299
  %v2396 = vrsqrt.pop %v2300
  %v2397 = vrsqrt.pop %v2301
  %v2398 = vrsqrt.pop %v2302
  %v2399 = vrsqrt.pop %v2303
  %v2400 = vrsqrt.pop %v2304
  %v2401 = vrsqrt.pop %v2305
  %v2402 = vrsqrt.pop %v2306
  %v2403 = vrsqrt.pop %v2307
  %v2404 = vrsqrt.pop %v2308
  %v2405 = vrsqrt.pop %v2309
  %v2406 = vrsqrt.pop %v2310
  %v2407 = vrsqrt.pop %v2311
  %v2408 = vrsqrt.pop %v2312
  %v2409 = vrsqrt.pop %v2313
  %v2410 = vrsqrt.pop %v2314
  %v2411 = vrsqrt.pop %v2315
  %v2412 = vrsqrt.pop %v2316
  %v2413 = vrsqrt.pop %v2317
  %v2414 = vrsqrt.pop %v2318
  %v2415 = vrsqrt.pop %v2319
  %v2416 = vrsqrt.pop %v2320
  %v2417 = vrsqrt.pop %v2321
  %v2418 = vrsqrt.pop %v2322
  %v2419 = vrsqrt.pop %v2323
  %v2420 = vld [vmem:[%s3] sm:$0xff]
  %v2421 = vld [vmem:[%s3 + $0x8] sm:$0xff]
  %v2422 = vld [vmem:[%s3 + $0x10] sm:$0xff]
  %v2423 = vld [vmem:[%s3 + $0x18] sm:$0xff]
  %v2424 = vld [vmem:[%s3 + $0x20] sm:$0xff]
  %v2425 = vld [vmem:[%s3 + $0x28] sm:$0xff]
  %v2426 = vld [vmem:[%s3 + $0x30] sm:$0xff]
  %v2427 = vld [vmem:[%s3 + $0x38] sm:$0xff]
  %v2428 = vld [vmem:[%s3 + $0x40] sm:$0xff]
  %v2429 = vld [vmem:[%s3 + $0x48] sm:$0xff]
  %v2430 = vld [vmem:[%s3 + $0x50] sm:$0xff]
  %v2431 = vld [vmem:[%s3 + $0x58] sm:$0xff]
  %v2432 = vld [vmem:[%s3 + $0x60] sm:$0xff]
  %v2433 = vld [vmem:[%s3 + $0x68] sm:$0xff]
  %v2434 = vld [vmem:[%s3 + $0x70] sm:$0xff]
  %v2435 = vld [vmem:[%s3 + $0x78] sm:$0xff]
  %v2436 = vld [vmem:[%s3 + $0x80] sm:$0xff]
  %v2437 = vld [vmem:[%s3 + $0x88] sm:$0xff]
  %v2438 = vld [vmem:[%s3 + $0x90] sm:$0xff]
  %v2439 = vld [vmem:[%s3 + $0x98] sm:$0xff]
  %v2440 = vld [vmem:[%s3 + $0xa0] sm:$0xff]
  %v2441 = vld [vmem:[%s3 + $0xa8] sm:$0xff]
  %v2442 = vld [vmem:[%s3 + $0xb0] sm:$0xff]
  %v2443 = vld [vmem:[%s3 + $0xb8] sm:$0xff]
  %v2444 = vld [vmem:[%s3 + $0xc0] sm:$0xff]
  %v2445 = vld [vmem:[%s3 + $0xc8] sm:$0xff]
  %v2446 = vld [vmem:[%s3 + $0xd0] sm:$0xff]
  %v2447 = vld [vmem:[%s3 + $0xd8] sm:$0xff]
  %v2448 = vld [vmem:[%s3 + $0xe0] sm:$0xff]
  %v2449 = vld [vmem:[%s3 + $0xe8] sm:$0xff]
  %v2450 = vld [vmem:[%s3 + $0xf0] sm:$0xff]
  %v2451 = vld [vmem:[%s3 + $0xf8] sm:$0xff]
  %v2452 = vld [vmem:[%s3 + $0x100] sm:$0xff]
  %v2453 = vld [vmem:[%s3 + $0x108] sm:$0xff]
  %v2454 = vld [vmem:[%s3 + $0x110] sm:$0xff]
  %v2455 = vld [vmem:[%s3 + $0x118] sm:$0xff]
  %v2456 = vld [vmem:[%s3 + $0x120] sm:$0xff]
  %v2457 = vld [vmem:[%s3 + $0x128] sm:$0xff]
  %v2458 = vld [vmem:[%s3 + $0x130] sm:$0xff]
  %v2459 = vld [vmem:[%s3 + $0x138] sm:$0xff]
  %v2460 = vld [vmem:[%s3 + $0x140] sm:$0xff]
  %v2461 = vld [vmem:[%s3 + $0x148] sm:$0xff]
  %v2462 = vld [vmem:[%s3 + $0x150] sm:$0xff]
  %v2463 = vld [vmem:[%s3 + $0x158] sm:$0xff]
  %v2464 = vld [vmem:[%s3 + $0x160] sm:$0xff]
  %v2465 = vld [vmem:[%s3 + $0x168] sm:$0xff]
  %v2466 = vld [vmem:[%s3 + $0x170] sm:$0xff]
  %v2467 = vld [vmem:[%s3 + $0x178] sm:$0xff]
  %v2468 = vld [vmem:[%s3 + $0x180] sm:$0xff]
  %v2469 = vld [vmem:[%s3 + $0x188] sm:$0xff]
  %v2470 = vld [vmem:[%s3 + $0x190] sm:$0xff]
  %v2471 = vld [vmem:[%s3 + $0x198] sm:$0xff]
  %v2472 = vld [vmem:[%s3 + $0x1a0] sm:$0xff]
  %v2473 = vld [vmem:[%s3 + $0x1a8] sm:$0xff]
  %v2474 = vld [vmem:[%s3 + $0x1b0] sm:$0xff]
  %v2475 = vld [vmem:[%s3 + $0x1b8] sm:$0xff]
  %v2476 = vld [vmem:[%s3 + $0x1c0] sm:$0xff]
  %v2477 = vld [vmem:[%s3 + $0x1c8] sm:$0xff]
  %v2478 = vld [vmem:[%s3 + $0x1d0] sm:$0xff]
  %v2479 = vld [vmem:[%s3 + $0x1d8] sm:$0xff]
  %v2480 = vld [vmem:[%s3 + $0x1e0] sm:$0xff]
  %v2481 = vld [vmem:[%s3 + $0x1e8] sm:$0xff]
  %v2482 = vld [vmem:[%s3 + $0x1f0] sm:$0xff]
  %v2483 = vld [vmem:[%s3 + $0x1f8] sm:$0xff]
  %v2484 = vld [vmem:[%s3 + $0x200] sm:$0xff]
  %v2485 = vld [vmem:[%s3 + $0x208] sm:$0xff]
  %v2486 = vld [vmem:[%s3 + $0x210] sm:$0xff]
  %v2487 = vld [vmem:[%s3 + $0x218] sm:$0xff]
  %v2488 = vld [vmem:[%s3 + $0x220] sm:$0xff]
  %v2489 = vld [vmem:[%s3 + $0x228] sm:$0xff]
  %v2490 = vld [vmem:[%s3 + $0x230] sm:$0xff]
  %v2491 = vld [vmem:[%s3 + $0x238] sm:$0xff]
  %v2492 = vld [vmem:[%s3 + $0x240] sm:$0xff]
  %v2493 = vld [vmem:[%s3 + $0x248] sm:$0xff]
  %v2494 = vld [vmem:[%s3 + $0x250] sm:$0xff]
  %v2495 = vld [vmem:[%s3 + $0x258] sm:$0xff]
  %v2496 = vld [vmem:[%s3 + $0x260] sm:$0xff]
  %v2497 = vld [vmem:[%s3 + $0x268] sm:$0xff]
  %v2498 = vld [vmem:[%s3 + $0x270] sm:$0xff]
  %v2499 = vld [vmem:[%s3 + $0x278] sm:$0xff]
  %v2500 = vld [vmem:[%s3 + $0x280] sm:$0xff]
  %v2501 = vld [vmem:[%s3 + $0x288] sm:$0xff]
  %v2502 = vld [vmem:[%s3 + $0x290] sm:$0xff]
  %v2503 = vld [vmem:[%s3 + $0x298] sm:$0xff]
  %v2504 = vld [vmem:[%s3 + $0x2a0] sm:$0xff]
  %v2505 = vld [vmem:[%s3 + $0x2a8] sm:$0xff]
  %v2506 = vld [vmem:[%s3 + $0x2b0] sm:$0xff]
  %v2507 = vld [vmem:[%s3 + $0x2b8] sm:$0xff]
  %v2508 = vld [vmem:[%s3 + $0x2c0] sm:$0xff]
  %v2509 = vld [vmem:[%s3 + $0x2c8] sm:$0xff]
  %v2510 = vld [vmem:[%s3 + $0x2d0] sm:$0xff]
  %v2511 = vld [vmem:[%s3 + $0x2d8] sm:$0xff]
  %v2512 = vld [vmem:[%s3 + $0x2e0] sm:$0xff]
  %v2513 = vld [vmem:[%s3 + $0x2e8] sm:$0xff]
  %v2514 = vld [vmem:[%s3 + $0x2f0] sm:$0xff]
  %v2515 = vld [vmem:[%s3 + $0x2f8] sm:$0xff]
  %v2516 = vmul.f32 %v2420, %v2324
  %v2517 = vmul.f32 %v2421, %v2325
  %v2518 = vmul.f32 %v2422, %v2326
  %v2519 = vmul.f32 %v2423, %v2327
  %v2520 = vmul.f32 %v2424, %v2328
  %v2521 = vmul.f32 %v2425, %v2329
  %v2522 = vmul.f32 %v2426, %v2330
  %v2523 = vmul.f32 %v2427, %v2331
  %v2524 = vmul.f32 %v2428, %v2332
  %v2525 = vmul.f32 %v2429, %v2333
  %v2526 = vmul.f32 %v2430, %v2334
  %v2527 = vmul.f32 %v2431, %v2335
  %v2528 = vmul.f32 %v2432, %v2336
  %v2529 = vmul.f32 %v2433, %v2337
  %v2530 = vmul.f32 %v2434, %v2338
  %v2531 = vmul.f32 %v2435, %v2339
  %v2532 = vmul.f32 %v2436, %v2340
  %v2533 = vmul.f32 %v2437, %v2341
  %v2534 = vmul.f32 %v2438, %v2342
  %v2535 = vmul.f32 %v2439, %v2343
  %v2536 = vmul.f32 %v2440, %v2344
  %v2537 = vmul.f32 %v2441, %v2345
  %v2538 = vmul.f32 %v2442, %v2346
  %v2539 = vmul.f32 %v2443, %v2347
  %v2540 = vmul.f32 %v2444, %v2348
  %v2541 = vmul.f32 %v2445, %v2349
  %v2542 = vmul.f32 %v2446, %v2350
  %v2543 = vmul.f32 %v2447, %v2351
  %v2544 = vmul.f32 %v2448, %v2352
  %v2545 = vmul.f32 %v2449, %v2353
  %v2546 = vmul.f32 %v2450, %v2354
  %v2547 = vmul.f32 %v2451, %v2355
  %v2548 = vmul.f32 %v2452, %v2356
  %v2549 = vmul.f32 %v2453, %v2357
  %v2550 = vmul.f32 %v2454, %v2358
  %v2551 = vmul.f32 %v2455, %v2359
  %v2552 = vmul.f32 %v2456, %v2360
  %v2553 = vmul.f32 %v2457, %v2361
  %v2554 = vmul.f32 %v2458, %v2362
  %v2555 = vmul.f32 %v2459, %v2363
  %v2556 = vmul.f32 %v2460, %v2364
  %v2557 = vmul.f32 %v2461, %v2365
  %v2558 = vmul.f32 %v2462, %v2366
  %v2559 = vmul.f32 %v2463, %v2367
  %v2560 = vmul.f32 %v2464, %v2368
  %v2561 = vmul.f32 %v2465, %v2369
  %v2562 = vmul.f32 %v2466, %v2370
  %v2563 = vmul.f32 %v2467, %v2371
  %v2564 = vmul.f32 %v2468, %v2372
  %v2565 = vmul.f32 %v2469, %v2373
  %v2566 = vmul.f32 %v2470, %v2374
  %v2567 = vmul.f32 %v2471, %v2375
  %v2568 = vmul.f32 %v2472, %v2376
  %v2569 = vmul.f32 %v2473, %v2377
  %v2570 = vmul.f32 %v2474, %v2378
  %v2571 = vmul.f32 %v2475, %v2379
  %v2572 = vmul.f32 %v2476, %v2380
  %v2573 = vmul.f32 %v2477, %v2381
  %v2574 = vmul.f32 %v2478, %v2382
  %v2575 = vmul.f32 %v2479, %v2383
  %v2576 = vmul.f32 %v2480, %v2384
  %v2577 = vmul.f32 %v2481, %v2385
  %v2578 = vmul.f32 %v2482, %v2386
  %v2579 = vmul.f32 %v2483, %v2387
  %v2580 = vmul.f32 %v2484, %v2388
  %v2581 = vmul.f32 %v2485, %v2389
  %v2582 = vmul.f32 %v2486, %v2390
  %v2583 = vmul.f32 %v2487, %v2391
  %v2584 = vmul.f32 %v2488, %v2392
  %v2585 = vmul.f32 %v2489, %v2393
  %v2586 = vmul.f32 %v2490, %v2394
  %v2587 = vmul.f32 %v2491, %v2395
  %v2588 = vmul.f32 %v2492, %v2396
  %v2589 = vmul.f32 %v2493, %v2397
  %v2590 = vmul.f32 %v2494, %v2398
  %v2591 = vmul.f32 %v2495, %v2399
  %v2592 = vmul.f32 %v2496, %v2400
  %v2593 = vmul.f32 %v2497, %v2401
  %v2594 = vmul.f32 %v2498, %v2402
  %v2595 = vmul.f32 %v2499, %v2403
  %v2596 = vmul.f32 %v2500, %v2404
  %v2597 = vmul.f32 %v2501, %v2405
  %v2598 = vmul.f32 %v2502, %v2406
  %v2599 = vmul.f32 %v2503, %v2407
  %v2600 = vmul.f32 %v2504, %v2408
  %v2601 = vmul.f32 %v2505, %v2409
  %v2602 = vmul.f32 %v2506, %v2410
  %v2603 = vmul.f32 %v2507, %v2411
  %v2604 = vmul.f32 %v2508, %v2412
  %v2605 = vmul.f32 %v2509, %v2413
  %v2606 = vmul.f32 %v2510, %v2414
  %v2607 = vmul.f32 %v2511, %v2415
  %v2608 = vmul.f32 %v2512, %v2416
  %v2609 = vmul.f32 %v2513, %v2417
  %v2610 = vmul.f32 %v2514, %v2418
  %v2611 = vmul.f32 %v2515, %v2419
  %v2612 = vmul.f32 %v1748, %v2516
  %v2613 = vmul.f32 %v1749, %v2517
  %v2614 = vmul.f32 %v1750, %v2518
  %v2615 = vmul.f32 %v1751, %v2519
  %v2616 = vmul.f32 %v1752, %v2520
  %v2617 = vmul.f32 %v1753, %v2521
  %v2618 = vmul.f32 %v1754, %v2522
  %v2619 = vmul.f32 %v1755, %v2523
  %v2620 = vmul.f32 %v1756, %v2524
  %v2621 = vmul.f32 %v1757, %v2525
  %v2622 = vmul.f32 %v1758, %v2526
  %v2623 = vmul.f32 %v1759, %v2527
  %v2624 = vmul.f32 %v1760, %v2528
  %v2625 = vmul.f32 %v1761, %v2529
  %v2626 = vmul.f32 %v1762, %v2530
  %v2627 = vmul.f32 %v1763, %v2531
  %v2628 = vmul.f32 %v1764, %v2532
  %v2629 = vmul.f32 %v1765, %v2533
  %v2630 = vmul.f32 %v1766, %v2534
  %v2631 = vmul.f32 %v1767, %v2535
  %v2632 = vmul.f32 %v1768, %v2536
  %v2633 = vmul.f32 %v1769, %v2537
  %v2634 = vmul.f32 %v1770, %v2538
  %v2635 = vmul.f32 %v1771, %v2539
  %v2636 = vmul.f32 %v1772, %v2540
  %v2637 = vmul.f32 %v1773, %v2541
  %v2638 = vmul.f32 %v1774, %v2542
  %v2639 = vmul.f32 %v1775, %v2543
  %v2640 = vmul.f32 %v1776, %v2544
  %v2641 = vmul.f32 %v1777, %v2545
  %v2642 = vmul.f32 %v1778, %v2546
  %v2643 = vmul.f32 %v1779, %v2547
  %v2644 = vmul.f32 %v1780, %v2548
  %v2645 = vmul.f32 %v1781, %v2549
  %v2646 = vmul.f32 %v1782, %v2550
  %v2647 = vmul.f32 %v1783, %v2551
  %v2648 = vmul.f32 %v1784, %v2552
  %v2649 = vmul.f32 %v1785, %v2553
  %v2650 = vmul.f32 %v1786, %v2554
  %v2651 = vmul.f32 %v1787, %v2555
  %v2652 = vmul.f32 %v1788, %v2556
  %v2653 = vmul.f32 %v1789, %v2557
  %v2654 = vmul.f32 %v1790, %v2558
  %v2655 = vmul.f32 %v1791, %v2559
  %v2656 = vmul.f32 %v1792, %v2560
  %v2657 = vmul.f32 %v1793, %v2561
  %v2658 = vmul.f32 %v1794, %v2562
  %v2659 = vmul.f32 %v1795, %v2563
  %v2660 = vmul.f32 %v1796, %v2564
  %v2661 = vmul.f32 %v1797, %v2565
  %v2662 = vmul.f32 %v1798, %v2566
  %v2663 = vmul.f32 %v1799, %v2567
  %v2664 = vmul.f32 %v1800, %v2568
  %v2665 = vmul.f32 %v1801, %v2569
  %v2666 = vmul.f32 %v1802, %v2570
  %v2667 = vmul.f32 %v1803, %v2571
  %v2668 = vmul.f32 %v1804, %v2572
  %v2669 = vmul.f32 %v1805, %v2573
  %v2670 = vmul.f32 %v1806, %v2574
  %v2671 = vmul.f32 %v1807, %v2575
  %v2672 = vmul.f32 %v1808, %v2576
  %v2673 = vmul.f32 %v1809, %v2577
  %v2674 = vmul.f32 %v1810, %v2578
  %v2675 = vmul.f32 %v1811, %v2579
  %v2676 = vmul.f32 %v1812, %v2580
  %v2677 = vmul.f32 %v1813, %v2581
  %v2678 = vmul.f32 %v1814, %v2582
  %v2679 = vmul.f32 %v1815, %v2583
  %v2680 = vmul.f32 %v1816, %v2584
  %v2681 = vmul.f32 %v1817, %v2585
  %v2682 = vmul.f32 %v1818, %v2586
  %v2683 = vmul.f32 %v1819, %v2587
  %v2684 = vmul.f32 %v1820, %v2588
  %v2685 = vmul.f32 %v1821, %v2589
  %v2686 = vmul.f32 %v1822, %v2590
  %v2687 = vmul.f32 %v1823, %v2591
  %v2688 = vmul.f32 %v1824, %v2592
  %v2689 = vmul.f32 %v1825, %v2593
  %v2690 = vmul.f32 %v1826, %v2594
  %v2691 = vmul.f32 %v1827, %v2595
  %v2692 = vmul.f32 %v1828, %v2596
  %v2693 = vmul.f32 %v1829, %v2597
  %v2694 = vmul.f32 %v1830, %v2598
  %v2695 = vmul.f32 %v1831, %v2599
  %v2696 = vmul.f32 %v1832, %v2600
  %v2697 = vmul.f32 %v1833, %v2601
  %v2698 = vmul.f32 %v1834, %v2602
  %v2699 = vmul.f32 %v1835, %v2603
  %v2700 = vmul.f32 %v1836, %v2604
  %v2701 = vmul.f32 %v1837, %v2605
  %v2702 = vmul.f32 %v1838, %v2606
  %v2703 = vmul.f32 %v1839, %v2607
  %v2704 = vmul.f32 %v1840, %v2608
  %v2705 = vmul.f32 %v1841, %v2609
  %v2706 = vmul.f32 %v1842, %v2610
  %v2707 = vmul.f32 %v1843, %v2611
  %2804 = vrot.lane.b32.xlu0 %v2612, 1
  %v2805 = vpop.permute.xlu0 %2804
  %2806 = vrot.lane.b32.xlu0 %v2613, 1
  %v2807 = vpop.permute.xlu0 %2806
  %2808 = vrot.lane.b32.xlu0 %v2614, 1
  %v2809 = vpop.permute.xlu0 %2808
  %2810 = vrot.lane.b32.xlu0 %v2615, 1
  %v2811 = vpop.permute.xlu0 %2810
  %2812 = vrot.lane.b32.xlu0 %v2616, 1
  %v2813 = vpop.permute.xlu0 %2812
  %2814 = vrot.lane.b32.xlu0 %v2617, 1
  %v2815 = vpop.permute.xlu0 %2814
  %2816 = vrot.lane.b32.xlu0 %v2618, 1
  %v2817 = vpop.permute.xlu0 %2816
  %2818 = vrot.lane.b32.xlu0 %v2619, 1
  %v2819 = vpop.permute.xlu0 %2818
  %2820 = vrot.lane.b32.xlu0 %v2620, 1
  %v2821 = vpop.permute.xlu0 %2820
  %2822 = vrot.lane.b32.xlu0 %v2621, 1
  %v2823 = vpop.permute.xlu0 %2822
  %2824 = vrot.lane.b32.xlu0 %v2622, 1
  %v2825 = vpop.permute.xlu0 %2824
  %2826 = vrot.lane.b32.xlu0 %v2623, 1
  %v2827 = vpop.permute.xlu0 %2826
  %2828 = vrot.lane.b32.xlu0 %v2624, 1
  %v2829 = vpop.permute.xlu0 %2828
  %2830 = vrot.lane.b32.xlu0 %v2625, 1
  %v2831 = vpop.permute.xlu0 %2830
  %2832 = vrot.lane.b32.xlu0 %v2626, 1
  %v2833 = vpop.permute.xlu0 %2832
  %2834 = vrot.lane.b32.xlu0 %v2627, 1
  %v2835 = vpop.permute.xlu0 %2834
  %2836 = vrot.lane.b32.xlu0 %v2628, 1
  %v2837 = vpop.permute.xlu0 %2836
  %2838 = vrot.lane.b32.xlu0 %v2629, 1
  %v2839 = vpop.permute.xlu0 %2838
  %2840 = vrot.lane.b32.xlu0 %v2630, 1
  %v2841 = vpop.permute.xlu0 %2840
  %2842 = vrot.lane.b32.xlu0 %v2631, 1
  %v2843 = vpop.permute.xlu0 %2842
  %2844 = vrot.lane.b32.xlu0 %v2632, 1
  %v2845 = vpop.permute.xlu0 %2844
  %2846 = vrot.lane.b32.xlu0 %v2633, 1
  %v2847 = vpop.permute.xlu0 %2846
  %2848 = vrot.lane.b32.xlu0 %v2634, 1
  %v2849 = vpop.permute.xlu0 %2848
  %2850 = vrot.lane.b32.xlu0 %v2635, 1
  %v2851 = vpop.permute.xlu0 %2850
  %2852 = vrot.lane.b32.xlu0 %v2636, 1
  %v2853 = vpop.permute.xlu0 %2852
  %2854 = vrot.lane.b32.xlu0 %v2637, 1
  %v2855 = vpop.permute.xlu0 %2854
  %2856 = vrot.lane.b32.xlu0 %v2638, 1
  %v2857 = vpop.permute.xlu0 %2856
  %2858 = vrot.lane.b32.xlu0 %v2639, 1
  %v2859 = vpop.permute.xlu0 %2858
  %2860 = vrot.lane.b32.xlu0 %v2640, 1
  %v2861 = vpop.permute.xlu0 %2860
  %2862 = vrot.lane.b32.xlu0 %v2641, 1
  %v2863 = vpop.permute.xlu0 %2862
  %2864 = vrot.lane.b32.xlu0 %v2642, 1
  %v2865 = vpop.permute.xlu0 %2864
  %2866 = vrot.lane.b32.xlu0 %v2643, 1
  %v2867 = vpop.permute.xlu0 %2866
  %2868 = vrot.lane.b32.xlu0 %v2644, 1
  %v2869 = vpop.permute.xlu0 %2868
  %2870 = vrot.lane.b32.xlu0 %v2645, 1
  %v2871 = vpop.permute.xlu0 %2870
  %2872 = vrot.lane.b32.xlu0 %v2646, 1
  %v2873 = vpop.permute.xlu0 %2872
  %2874 = vrot.lane.b32.xlu0 %v2647, 1
  %v2875 = vpop.permute.xlu0 %2874
  %2876 = vrot.lane.b32.xlu0 %v2648, 1
  %v2877 = vpop.permute.xlu0 %2876
  %2878 = vrot.lane.b32.xlu0 %v2649, 1
  %v2879 = vpop.permute.xlu0 %2878
  %2880 = vrot.lane.b32.xlu0 %v2650, 1
  %v2881 = vpop.permute.xlu0 %2880
  %2882 = vrot.lane.b32.xlu0 %v2651, 1
  %v2883 = vpop.permute.xlu0 %2882
  %2884 = vrot.lane.b32.xlu0 %v2652, 1
  %v2885 = vpop.permute.xlu0 %2884
  %2886 = vrot.lane.b32.xlu0 %v2653, 1
  %v2887 = vpop.permute.xlu0 %2886
  %2888 = vrot.lane.b32.xlu0 %v2654, 1
  %v2889 = vpop.permute.xlu0 %2888
  %2890 = vrot.lane.b32.xlu0 %v2655, 1
  %v2891 = vpop.permute.xlu0 %2890
  %2892 = vrot.lane.b32.xlu0 %v2656, 1
  %v2893 = vpop.permute.xlu0 %2892
  %2894 = vrot.lane.b32.xlu0 %v2657, 1
  %v2895 = vpop.permute.xlu0 %2894
  %2896 = vrot.lane.b32.xlu0 %v2658, 1
  %v2897 = vpop.permute.xlu0 %2896
  %2898 = vrot.lane.b32.xlu0 %v2659, 1
  %v2899 = vpop.permute.xlu0 %2898
  %2900 = vrot.lane.b32.xlu0 %v2660, 1
  %v2901 = vpop.permute.xlu0 %2900
  %2902 = vrot.lane.b32.xlu0 %v2661, 1
  %v2903 = vpop.permute.xlu0 %2902
  %2904 = vrot.lane.b32.xlu0 %v2662, 1
  %v2905 = vpop.permute.xlu0 %2904
  %2906 = vrot.lane.b32.xlu0 %v2663, 1
  %v2907 = vpop.permute.xlu0 %2906
  %2908 = vrot.lane.b32.xlu0 %v2664, 1
  %v2909 = vpop.permute.xlu0 %2908
  %2910 = vrot.lane.b32.xlu0 %v2665, 1
  %v2911 = vpop.permute.xlu0 %2910
  %2912 = vrot.lane.b32.xlu0 %v2666, 1
  %v2913 = vpop.permute.xlu0 %2912
  %2914 = vrot.lane.b32.xlu0 %v2667, 1
  %v2915 = vpop.permute.xlu0 %2914
  %2916 = vrot.lane.b32.xlu0 %v2668, 1
  %v2917 = vpop.permute.xlu0 %2916
  %2918 = vrot.lane.b32.xlu0 %v2669, 1
  %v2919 = vpop.permute.xlu0 %2918
  %2920 = vrot.lane.b32.xlu0 %v2670, 1
  %v2921 = vpop.permute.xlu0 %2920
  %2922 = vrot.lane.b32.xlu0 %v2671, 1
  %v2923 = vpop.permute.xlu0 %2922
  %2924 = vrot.lane.b32.xlu0 %v2672, 1
  %v2925 = vpop.permute.xlu0 %2924
  %2926 = vrot.lane.b32.xlu0 %v2673, 1
  %v2927 = vpop.permute.xlu0 %2926
  %2928 = vrot.lane.b32.xlu0 %v2674, 1
  %v2929 = vpop.permute.xlu0 %2928
  %2930 = vrot.lane.b32.xlu0 %v2675, 1
  %v2931 = vpop.permute.xlu0 %2930
  %2932 = vrot.lane.b32.xlu0 %v2676, 1
  %v2933 = vpop.permute.xlu0 %2932
  %2934 = vrot.lane.b32.xlu0 %v2677, 1
  %v2935 = vpop.permute.xlu0 %2934
  %2936 = vrot.lane.b32.xlu0 %v2678, 1
  %v2937 = vpop.permute.xlu0 %2936
  %2938 = vrot.lane.b32.xlu0 %v2679, 1
  %v2939 = vpop.permute.xlu0 %2938
  %2940 = vrot.lane.b32.xlu0 %v2680, 1
  %v2941 = vpop.permute.xlu0 %2940
  %2942 = vrot.lane.b32.xlu0 %v2681, 1
  %v2943 = vpop.permute.xlu0 %2942
  %2944 = vrot.lane.b32.xlu0 %v2682, 1
  %v2945 = vpop.permute.xlu0 %2944
  %2946 = vrot.lane.b32.xlu0 %v2683, 1
  %v2947 = vpop.permute.xlu0 %2946
  %2948 = vrot.lane.b32.xlu0 %v2684, 1
  %v2949 = vpop.permute.xlu0 %2948
  %2950 = vrot.lane.b32.xlu0 %v2685, 1
  %v2951 = vpop.permute.xlu0 %2950
  %2952 = vrot.lane.b32.xlu0 %v2686, 1
  %v2953 = vpop.permute.xlu0 %2952
  %2954 = vrot.lane.b32.xlu0 %v2687, 1
  %v2955 = vpop.permute.xlu0 %2954
  %2956 = vrot.lane.b32.xlu0 %v2688, 1
  %v2957 = vpop.permute.xlu0 %2956
  %2958 = vrot.lane.b32.xlu0 %v2689, 1
  %v2959 = vpop.permute.xlu0 %2958
  %2960 = vrot.lane.b32.xlu0 %v2690, 1
  %v2961 = vpop.permute.xlu0 %2960
  %2962 = vrot.lane.b32.xlu0 %v2691, 1
  %v2963 = vpop.permute.xlu0 %2962
  %2964 = vrot.lane.b32.xlu0 %v2692, 1
  %v2965 = vpop.permute.xlu0 %2964
  %2966 = vrot.lane.b32.xlu0 %v2693, 1
  %v2967 = vpop.permute.xlu0 %2966
  %2968 = vrot.lane.b32.xlu0 %v2694, 1
  %v2969 = vpop.permute.xlu0 %2968
  %2970 = vrot.lane.b32.xlu0 %v2695, 1
  %v2971 = vpop.permute.xlu0 %2970
  %2972 = vrot.lane.b32.xlu0 %v2696, 1
  %v2973 = vpop.permute.xlu0 %2972
  %2974 = vrot.lane.b32.xlu0 %v2697, 1
  %v2975 = vpop.permute.xlu0 %2974
  %2976 = vrot.lane.b32.xlu0 %v2698, 1
  %v2977 = vpop.permute.xlu0 %2976
  %2978 = vrot.lane.b32.xlu0 %v2699, 1
  %v2979 = vpop.permute.xlu0 %2978
  %2980 = vrot.lane.b32.xlu0 %v2700, 1
  %v2981 = vpop.permute.xlu0 %2980
  %2982 = vrot.lane.b32.xlu0 %v2701, 1
  %v2983 = vpop.permute.xlu0 %2982
  %2984 = vrot.lane.b32.xlu0 %v2702, 1
  %v2985 = vpop.permute.xlu0 %2984
  %2986 = vrot.lane.b32.xlu0 %v2703, 1
  %v2987 = vpop.permute.xlu0 %2986
  %2988 = vrot.lane.b32.xlu0 %v2704, 1
  %v2989 = vpop.permute.xlu0 %2988
  %2990 = vrot.lane.b32.xlu0 %v2705, 1
  %v2991 = vpop.permute.xlu0 %2990
  %2992 = vrot.lane.b32.xlu0 %v2706, 1
  %v2993 = vpop.permute.xlu0 %2992
  %2994 = vrot.lane.b32.xlu0 %v2707, 1
  %v2995 = vpop.permute.xlu0 %2994
  %v3092 = vsub.f32 %v2420, %v2805
  %v3093 = vsub.f32 %v2421, %v2807
  %v3094 = vsub.f32 %v2422, %v2809
  %v3095 = vsub.f32 %v2423, %v2811
  %v3096 = vsub.f32 %v2424, %v2813
  %v3097 = vsub.f32 %v2425, %v2815
  %v3098 = vsub.f32 %v2426, %v2817
  %v3099 = vsub.f32 %v2427, %v2819
  %v3100 = vsub.f32 %v2428, %v2821
  %v3101 = vsub.f32 %v2429, %v2823
  %v3102 = vsub.f32 %v2430, %v2825
  %v3103 = vsub.f32 %v2431, %v2827
  %v3104 = vsub.f32 %v2432, %v2829
  %v3105 = vsub.f32 %v2433, %v2831
  %v3106 = vsub.f32 %v2434, %v2833
  %v3107 = vsub.f32 %v2435, %v2835
  %v3108 = vsub.f32 %v2436, %v2837
  %v3109 = vsub.f32 %v2437, %v2839
  %v3110 = vsub.f32 %v2438, %v2841
  %v3111 = vsub.f32 %v2439, %v2843
  %v3112 = vsub.f32 %v2440, %v2845
  %v3113 = vsub.f32 %v2441, %v2847
  %v3114 = vsub.f32 %v2442, %v2849
  %v3115 = vsub.f32 %v2443, %v2851
  %v3116 = vsub.f32 %v2444, %v2853
  %v3117 = vsub.f32 %v2445, %v2855
  %v3118 = vsub.f32 %v2446, %v2857
  %v3119 = vsub.f32 %v2447, %v2859
  %v3120 = vsub.f32 %v2448, %v2861
  %v3121 = vsub.f32 %v2449, %v2863
  %v3122 = vsub.f32 %v2450, %v2865
  %v3123 = vsub.f32 %v2451, %v2867
  %v3124 = vsub.f32 %v2452, %v2869
  %v3125 = vsub.f32 %v2453, %v2871
  %v3126 = vsub.f32 %v2454, %v2873
  %v3127 = vsub.f32 %v2455, %v2875
  %v3128 = vsub.f32 %v2456, %v2877
  %v3129 = vsub.f32 %v2457, %v2879
  %v3130 = vsub.f32 %v2458, %v2881
  %v3131 = vsub.f32 %v2459, %v2883
  %v3132 = vsub.f32 %v2460, %v2885
  %v3133 = vsub.f32 %v2461, %v2887
  %v3134 = vsub.f32 %v2462, %v2889
  %v3135 = vsub.f32 %v2463, %v2891
  %v3136 = vsub.f32 %v2464, %v2893
  %v3137 = vsub.f32 %v2465, %v2895
  %v3138 = vsub.f32 %v2466, %v2897
  %v3139 = vsub.f32 %v2467, %v2899
  %v3140 = vsub.f32 %v2468, %v2901
  %v3141 = vsub.f32 %v2469, %v2903
  %v3142 = vsub.f32 %v2470, %v2905
  %v3143 = vsub.f32 %v2471, %v2907
  %v3144 = vsub.f32 %v2472, %v2909
  %v3145 = vsub.f32 %v2473, %v2911
  %v3146 = vsub.f32 %v2474, %v2913
  %v3147 = vsub.f32 %v2475, %v2915
  %v3148 = vsub.f32 %v2476, %v2917
  %v3149 = vsub.f32 %v2477, %v2919
  %v3150 = vsub.f32 %v2478, %v2921
  %v3151 = vsub.f32 %v2479, %v2923
  %v3152 = vsub.f32 %v2480, %v2925
  %v3153 = vsub.f32 %v2481, %v2927
  %v3154 = vsub.f32 %v2482, %v2929
  %v3155 = vsub.f32 %v2483, %v2931
  %v3156 = vsub.f32 %v2484, %v2933
  %v3157 = vsub.f32 %v2485, %v2935
  %v3158 = vsub.f32 %v2486, %v2937
  %v3159 = vsub.f32 %v2487, %v2939
  %v3160 = vsub.f32 %v2488, %v2941
  %v3161 = vsub.f32 %v2489, %v2943
  %v3162 = vsub.f32 %v2490, %v2945
  %v3163 = vsub.f32 %v2491, %v2947
  %v3164 = vsub.f32 %v2492, %v2949
  %v3165 = vsub.f32 %v2493, %v2951
  %v3166 = vsub.f32 %v2494, %v2953
  %v3167 = vsub.f32 %v2495, %v2955
  %v3168 = vsub.f32 %v2496, %v2957
  %v3169 = vsub.f32 %v2497, %v2959
  %v3170 = vsub.f32 %v2498, %v2961
  %v3171 = vsub.f32 %v2499, %v2963
  %v3172 = vsub.f32 %v2500, %v2965
  %v3173 = vsub.f32 %v2501, %v2967
  %v3174 = vsub.f32 %v2502, %v2969
  %v3175 = vsub.f32 %v2503, %v2971
  %v3176 = vsub.f32 %v2504, %v2973
  %v3177 = vsub.f32 %v2505, %v2975
  %v3178 = vsub.f32 %v2506, %v2977
  %v3179 = vsub.f32 %v2507, %v2979
  %v3180 = vsub.f32 %v2508, %v2981
  %v3181 = vsub.f32 %v2509, %v2983
  %v3182 = vsub.f32 %v2510, %v2985
  %v3183 = vsub.f32 %v2511, %v2987
  %v3184 = vsub.f32 %v2512, %v2989
  %v3185 = vsub.f32 %v2513, %v2991
  %v3186 = vsub.f32 %v2514, %v2993
  %v3187 = vsub.f32 %v2515, %v2995
  %3189 = vset.pattern.permute.xlu0 0
  %3190 = vperm.xlu0 %3189, %v2516
  %v3191 = vpop.permute.xlu0 %3190
  %3194 = vset.pattern.permute.xlu0 0
  %3195 = vperm.xlu0 %3194, %v2517
  %v3196 = vpop.permute.xlu0 %3195
  %3199 = vset.pattern.permute.xlu0 0
  %3200 = vperm.xlu0 %3199, %v2518
  %v3201 = vpop.permute.xlu0 %3200
  %3204 = vset.pattern.permute.xlu0 0
  %3205 = vperm.xlu0 %3204, %v2519
  %v3206 = vpop.permute.xlu0 %3205
  %3209 = vset.pattern.permute.xlu0 0
  %3210 = vperm.xlu0 %3209, %v2520
  %v3211 = vpop.permute.xlu0 %3210
  %3214 = vset.pattern.permute.xlu0 0
  %3215 = vperm.xlu0 %3214, %v2521
  %v3216 = vpop.permute.xlu0 %3215
  %3219 = vset.pattern.permute.xlu0 0
  %3220 = vperm.xlu0 %3219, %v2522
  %v3221 = vpop.permute.xlu0 %3220
  %3224 = vset.pattern.permute.xlu0 0
  %3225 = vperm.xlu0 %3224, %v2523
  %v3226 = vpop.permute.xlu0 %3225
  %3229 = vset.pattern.permute.xlu0 0
  %3230 = vperm.xlu0 %3229, %v2524
  %v3231 = vpop.permute.xlu0 %3230
  %3234 = vset.pattern.permute.xlu0 0
  %3235 = vperm.xlu0 %3234, %v2525
  %v3236 = vpop.permute.xlu0 %3235
  %3239 = vset.pattern.permute.xlu0 0
  %3240 = vperm.xlu0 %3239, %v2526
  %v3241 = vpop.permute.xlu0 %3240
  %3244 = vset.pattern.permute.xlu0 0
  %3245 = vperm.xlu0 %3244, %v2527
  %v3246 = vpop.permute.xlu0 %3245
  %3249 = vset.pattern.permute.xlu0 0
  %3250 = vperm.xlu0 %3249, %v2528
  %v3251 = vpop.permute.xlu0 %3250
  %3254 = vset.pattern.permute.xlu0 0
  %3255 = vperm.xlu0 %3254, %v2529
  %v3256 = vpop.permute.xlu0 %3255
  %3259 = vset.pattern.permute.xlu0 0
  %3260 = vperm.xlu0 %3259, %v2530
  %v3261 = vpop.permute.xlu0 %3260
  %3264 = vset.pattern.permute.xlu0 0
  %3265 = vperm.xlu0 %3264, %v2531
  %v3266 = vpop.permute.xlu0 %3265
  %3269 = vset.pattern.permute.xlu0 0
  %3270 = vperm.xlu0 %3269, %v2532
  %v3271 = vpop.permute.xlu0 %3270
  %3274 = vset.pattern.permute.xlu0 0
  %3275 = vperm.xlu0 %3274, %v2533
  %v3276 = vpop.permute.xlu0 %3275
  %3279 = vset.pattern.permute.xlu0 0
  %3280 = vperm.xlu0 %3279, %v2534
  %v3281 = vpop.permute.xlu0 %3280
  %3284 = vset.pattern.permute.xlu0 0
  %3285 = vperm.xlu0 %3284, %v2535
  %v3286 = vpop.permute.xlu0 %3285
  %3289 = vset.pattern.permute.xlu0 0
  %3290 = vperm.xlu0 %3289, %v2536
  %v3291 = vpop.permute.xlu0 %3290
  %3294 = vset.pattern.permute.xlu0 0
  %3295 = vperm.xlu0 %3294, %v2537
  %v3296 = vpop.permute.xlu0 %3295
  %3299 = vset.pattern.permute.xlu0 0
  %3300 = vperm.xlu0 %3299, %v2538
  %v3301 = vpop.permute.xlu0 %3300
  %3304 = vset.pattern.permute.xlu0 0
  %3305 = vperm.xlu0 %3304, %v2539
  %v3306 = vpop.permute.xlu0 %3305
  %3309 = vset.pattern.permute.xlu0 0
  %3310 = vperm.xlu0 %3309, %v2540
  %v3311 = vpop.permute.xlu0 %3310
  %3314 = vset.pattern.permute.xlu0 0
  %3315 = vperm.xlu0 %3314, %v2541
  %v3316 = vpop.permute.xlu0 %3315
  %3319 = vset.pattern.permute.xlu0 0
  %3320 = vperm.xlu0 %3319, %v2542
  %v3321 = vpop.permute.xlu0 %3320
  %3324 = vset.pattern.permute.xlu0 0
  %3325 = vperm.xlu0 %3324, %v2543
  %v3326 = vpop.permute.xlu0 %3325
  %3329 = vset.pattern.permute.xlu0 0
  %3330 = vperm.xlu0 %3329, %v2544
  %v3331 = vpop.permute.xlu0 %3330
  %3334 = vset.pattern.permute.xlu0 0
  %3335 = vperm.xlu0 %3334, %v2545
  %v3336 = vpop.permute.xlu0 %3335
  %3339 = vset.pattern.permute.xlu0 0
  %3340 = vperm.xlu0 %3339, %v2546
  %v3341 = vpop.permute.xlu0 %3340
  %3344 = vset.pattern.permute.xlu0 0
  %3345 = vperm.xlu0 %3344, %v2547
  %v3346 = vpop.permute.xlu0 %3345
  %3349 = vset.pattern.permute.xlu0 0
  %3350 = vperm.xlu0 %3349, %v2548
  %v3351 = vpop.permute.xlu0 %3350
  %3354 = vset.pattern.permute.xlu0 0
  %3355 = vperm.xlu0 %3354, %v2549
  %v3356 = vpop.permute.xlu0 %3355
  %3359 = vset.pattern.permute.xlu0 0
  %3360 = vperm.xlu0 %3359, %v2550
  %v3361 = vpop.permute.xlu0 %3360
  %3364 = vset.pattern.permute.xlu0 0
  %3365 = vperm.xlu0 %3364, %v2551
  %v3366 = vpop.permute.xlu0 %3365
  %3369 = vset.pattern.permute.xlu0 0
  %3370 = vperm.xlu0 %3369, %v2552
  %v3371 = vpop.permute.xlu0 %3370
  %3374 = vset.pattern.permute.xlu0 0
  %3375 = vperm.xlu0 %3374, %v2553
  %v3376 = vpop.permute.xlu0 %3375
  %3379 = vset.pattern.permute.xlu0 0
  %3380 = vperm.xlu0 %3379, %v2554
  %v3381 = vpop.permute.xlu0 %3380
  %3384 = vset.pattern.permute.xlu0 0
  %3385 = vperm.xlu0 %3384, %v2555
  %v3386 = vpop.permute.xlu0 %3385
  %3389 = vset.pattern.permute.xlu0 0
  %3390 = vperm.xlu0 %3389, %v2556
  %v3391 = vpop.permute.xlu0 %3390
  %3394 = vset.pattern.permute.xlu0 0
  %3395 = vperm.xlu0 %3394, %v2557
  %v3396 = vpop.permute.xlu0 %3395
  %3399 = vset.pattern.permute.xlu0 0
  %3400 = vperm.xlu0 %3399, %v2558
  %v3401 = vpop.permute.xlu0 %3400
  %3404 = vset.pattern.permute.xlu0 0
  %3405 = vperm.xlu0 %3404, %v2559
  %v3406 = vpop.permute.xlu0 %3405
  %3409 = vset.pattern.permute.xlu0 0
  %3410 = vperm.xlu0 %3409, %v2560
  %v3411 = vpop.permute.xlu0 %3410
  %3414 = vset.pattern.permute.xlu0 0
  %3415 = vperm.xlu0 %3414, %v2561
  %v3416 = vpop.permute.xlu0 %3415
  %3419 = vset.pattern.permute.xlu0 0
  %3420 = vperm.xlu0 %3419, %v2562
  %v3421 = vpop.permute.xlu0 %3420
  %3424 = vset.pattern.permute.xlu0 0
  %3425 = vperm.xlu0 %3424, %v2563
  %v3426 = vpop.permute.xlu0 %3425
  %3429 = vset.pattern.permute.xlu0 0
  %3430 = vperm.xlu0 %3429, %v2564
  %v3431 = vpop.permute.xlu0 %3430
  %3434 = vset.pattern.permute.xlu0 0
  %3435 = vperm.xlu0 %3434, %v2565
  %v3436 = vpop.permute.xlu0 %3435
  %3439 = vset.pattern.permute.xlu0 0
  %3440 = vperm.xlu0 %3439, %v2566
  %v3441 = vpop.permute.xlu0 %3440
  %3444 = vset.pattern.permute.xlu0 0
  %3445 = vperm.xlu0 %3444, %v2567
  %v3446 = vpop.permute.xlu0 %3445
  %3449 = vset.pattern.permute.xlu0 0
  %3450 = vperm.xlu0 %3449, %v2568
  %v3451 = vpop.permute.xlu0 %3450
  %3454 = vset.pattern.permute.xlu0 0
  %3455 = vperm.xlu0 %3454, %v2569
  %v3456 = vpop.permute.xlu0 %3455
  %3459 = vset.pattern.permute.xlu0 0
  %3460 = vperm.xlu0 %3459, %v2570
  %v3461 = vpop.permute.xlu0 %3460
  %3464 = vset.pattern.permute.xlu0 0
  %3465 = vperm.xlu0 %3464, %v2571
  %v3466 = vpop.permute.xlu0 %3465
  %3469 = vset.pattern.permute.xlu0 0
  %3470 = vperm.xlu0 %3469, %v2572
  %v3471 = vpop.permute.xlu0 %3470
  %3474 = vset.pattern.permute.xlu0 0
  %3475 = vperm.xlu0 %3474, %v2573
  %v3476 = vpop.permute.xlu0 %3475
  %3479 = vset.pattern.permute.xlu0 0
  %3480 = vperm.xlu0 %3479, %v2574
  %v3481 = vpop.permute.xlu0 %3480
  %3484 = vset.pattern.permute.xlu0 0
  %3485 = vperm.xlu0 %3484, %v2575
  %v3486 = vpop.permute.xlu0 %3485
  %3489 = vset.pattern.permute.xlu0 0
  %3490 = vperm.xlu0 %3489, %v2576
  %v3491 = vpop.permute.xlu0 %3490
  %3494 = vset.pattern.permute.xlu0 0
  %3495 = vperm.xlu0 %3494, %v2577
  %v3496 = vpop.permute.xlu0 %3495
  %3499 = vset.pattern.permute.xlu0 0
  %3500 = vperm.xlu0 %3499, %v2578
  %v3501 = vpop.permute.xlu0 %3500
  %3504 = vset.pattern.permute.xlu0 0
  %3505 = vperm.xlu0 %3504, %v2579
  %v3506 = vpop.permute.xlu0 %3505
  %3509 = vset.pattern.permute.xlu0 0
  %3510 = vperm.xlu0 %3509, %v2580
  %v3511 = vpop.permute.xlu0 %3510
  %3514 = vset.pattern.permute.xlu0 0
  %3515 = vperm.xlu0 %3514, %v2581
  %v3516 = vpop.permute.xlu0 %3515
  %3519 = vset.pattern.permute.xlu0 0
  %3520 = vperm.xlu0 %3519, %v2582
  %v3521 = vpop.permute.xlu0 %3520
  %3524 = vset.pattern.permute.xlu0 0
  %3525 = vperm.xlu0 %3524, %v2583
  %v3526 = vpop.permute.xlu0 %3525
  %3529 = vset.pattern.permute.xlu0 0
  %3530 = vperm.xlu0 %3529, %v2584
  %v3531 = vpop.permute.xlu0 %3530
  %3534 = vset.pattern.permute.xlu0 0
  %3535 = vperm.xlu0 %3534, %v2585
  %v3536 = vpop.permute.xlu0 %3535
  %3539 = vset.pattern.permute.xlu0 0
  %3540 = vperm.xlu0 %3539, %v2586
  %v3541 = vpop.permute.xlu0 %3540
  %3544 = vset.pattern.permute.xlu0 0
  %3545 = vperm.xlu0 %3544, %v2587
  %v3546 = vpop.permute.xlu0 %3545
  %3549 = vset.pattern.permute.xlu0 0
  %3550 = vperm.xlu0 %3549, %v2588
  %v3551 = vpop.permute.xlu0 %3550
  %3554 = vset.pattern.permute.xlu0 0
  %3555 = vperm.xlu0 %3554, %v2589
  %v3556 = vpop.permute.xlu0 %3555
  %3559 = vset.pattern.permute.xlu0 0
  %3560 = vperm.xlu0 %3559, %v2590
  %v3561 = vpop.permute.xlu0 %3560
  %3564 = vset.pattern.permute.xlu0 0
  %3565 = vperm.xlu0 %3564, %v2591
  %v3566 = vpop.permute.xlu0 %3565
  %3569 = vset.pattern.permute.xlu0 0
  %3570 = vperm.xlu0 %3569, %v2592
  %v3571 = vpop.permute.xlu0 %3570
  %3574 = vset.pattern.permute.xlu0 0
  %3575 = vperm.xlu0 %3574, %v2593
  %v3576 = vpop.permute.xlu0 %3575
  %3579 = vset.pattern.permute.xlu0 0
  %3580 = vperm.xlu0 %3579, %v2594
  %v3581 = vpop.permute.xlu0 %3580
  %3584 = vset.pattern.permute.xlu0 0
  %3585 = vperm.xlu0 %3584, %v2595
  %v3586 = vpop.permute.xlu0 %3585
  %3589 = vset.pattern.permute.xlu0 0
  %3590 = vperm.xlu0 %3589, %v2596
  %v3591 = vpop.permute.xlu0 %3590
  %3594 = vset.pattern.permute.xlu0 0
  %3595 = vperm.xlu0 %3594, %v2597
  %v3596 = vpop.permute.xlu0 %3595
  %3599 = vset.pattern.permute.xlu0 0
  %3600 = vperm.xlu0 %3599, %v2598
  %v3601 = vpop.permute.xlu0 %3600
  %3604 = vset.pattern.permute.xlu0 0
  %3605 = vperm.xlu0 %3604, %v2599
  %v3606 = vpop.permute.xlu0 %3605
  %3609 = vset.pattern.permute.xlu0 0
  %3610 = vperm.xlu0 %3609, %v2600
  %v3611 = vpop.permute.xlu0 %3610
  %3614 = vset.pattern.permute.xlu0 0
  %3615 = vperm.xlu0 %3614, %v2601
  %v3616 = vpop.permute.xlu0 %3615
  %3619 = vset.pattern.permute.xlu0 0
  %3620 = vperm.xlu0 %3619, %v2602
  %v3621 = vpop.permute.xlu0 %3620
  %3624 = vset.pattern.permute.xlu0 0
  %3625 = vperm.xlu0 %3624, %v2603
  %v3626 = vpop.permute.xlu0 %3625
  %3629 = vset.pattern.permute.xlu0 0
  %3630 = vperm.xlu0 %3629, %v2604
  %v3631 = vpop.permute.xlu0 %3630
  %3634 = vset.pattern.permute.xlu0 0
  %3635 = vperm.xlu0 %3634, %v2605
  %v3636 = vpop.permute.xlu0 %3635
  %3639 = vset.pattern.permute.xlu0 0
  %3640 = vperm.xlu0 %3639, %v2606
  %v3641 = vpop.permute.xlu0 %3640
  %3644 = vset.pattern.permute.xlu0 0
  %3645 = vperm.xlu0 %3644, %v2607
  %v3646 = vpop.permute.xlu0 %3645
  %3649 = vset.pattern.permute.xlu0 0
  %3650 = vperm.xlu0 %3649, %v2608
  %v3651 = vpop.permute.xlu0 %3650
  %3654 = vset.pattern.permute.xlu0 0
  %3655 = vperm.xlu0 %3654, %v2609
  %v3656 = vpop.permute.xlu0 %3655
  %3659 = vset.pattern.permute.xlu0 0
  %3660 = vperm.xlu0 %3659, %v2610
  %v3661 = vpop.permute.xlu0 %3660
  %3664 = vset.pattern.permute.xlu0 0
  %3665 = vperm.xlu0 %3664, %v2611
  %v3666 = vpop.permute.xlu0 %3665
  %v3668 = vmul.f32 %v309, %v3191
  %v3669 = vmul.f32 %v311, %v3191
  %v3670 = vmul.f32 %v313, %v3196
  %v3671 = vmul.f32 %v315, %v3196
  %v3672 = vmul.f32 %v319, %v3201
  %v3673 = vmul.f32 %v321, %v3201
  %v3674 = vmul.f32 %v323, %v3206
  %v3675 = vmul.f32 %v325, %v3206
  %v3676 = vmul.f32 %v329, %v3211
  %v3677 = vmul.f32 %v331, %v3211
  %v3678 = vmul.f32 %v333, %v3216
  %v3679 = vmul.f32 %v335, %v3216
  %v3680 = vmul.f32 %v339, %v3221
  %v3681 = vmul.f32 %v341, %v3221
  %v3682 = vmul.f32 %v343, %v3226
  %v3683 = vmul.f32 %v345, %v3226
  %v3684 = vmul.f32 %v349, %v3231
  %v3685 = vmul.f32 %v351, %v3231
  %v3686 = vmul.f32 %v353, %v3236
  %v3687 = vmul.f32 %v355, %v3236
  %v3688 = vmul.f32 %v359, %v3241
  %v3689 = vmul.f32 %v361, %v3241
  %v3690 = vmul.f32 %v363, %v3246
  %v3691 = vmul.f32 %v365, %v3246
  %v3692 = vmul.f32 %v369, %v3251
  %v3693 = vmul.f32 %v371, %v3251
  %v3694 = vmul.f32 %v373, %v3256
  %v3695 = vmul.f32 %v375, %v3256
  %v3696 = vmul.f32 %v379, %v3261
  %v3697 = vmul.f32 %v381, %v3261
  %v3698 = vmul.f32 %v383, %v3266
  %v3699 = vmul.f32 %v385, %v3266
  %v3700 = vmul.f32 %v389, %v3271
  %v3701 = vmul.f32 %v391, %v3271
  %v3702 = vmul.f32 %v393, %v3276
  %v3703 = vmul.f32 %v395, %v3276
  %v3704 = vmul.f32 %v399, %v3281
  %v3705 = vmul.f32 %v401, %v3281
  %v3706 = vmul.f32 %v403, %v3286
  %v3707 = vmul.f32 %v405, %v3286
  %v3708 = vmul.f32 %v409, %v3291
  %v3709 = vmul.f32 %v411, %v3291
  %v3710 = vmul.f32 %v413, %v3296
  %v3711 = vmul.f32 %v415, %v3296
  %v3712 = vmul.f32 %v419, %v3301
  %v3713 = vmul.f32 %v421, %v3301
  %v3714 = vmul.f32 %v423, %v3306
  %v3715 = vmul.f32 %v425, %v3306
  %v3716 = vmul.f32 %v429, %v3311
  %v3717 = vmul.f32 %v431, %v3311
  %v3718 = vmul.f32 %v433, %v3316
  %v3719 = vmul.f32 %v435, %v3316
  %v3720 = vmul.f32 %v439, %v3321
  %v3721 = vmul.f32 %v441, %v3321
  %v3722 = vmul.f32 %v443, %v3326
  %v3723 = vmul.f32 %v445, %v3326
  %v3724 = vmul.f32 %v449, %v3331
  %v3725 = vmul.f32 %v451, %v3331
  %v3726 = vmul.f32 %v453, %v3336
  %v3727 = vmul.f32 %v455, %v3336
  %v3728 = vmul.f32 %v459, %v3341
  %v3729 = vmul.f32 %v461, %v3341
  %v3730 = vmul.f32 %v463, %v3346
  %v3731 = vmul.f32 %v465, %v3346
  %v3732 = vmul.f32 %v469, %v3351
  %v3733 = vmul.f32 %v471, %v3351
  %v3734 = vmul.f32 %v473, %v3356
  %v3735 = vmul.f32 %v475, %v3356
  %v3736 = vmul.f32 %v479, %v3361
  %v3737 = vmul.f32 %v481, %v3361
  %v3738 = vmul.f32 %v483, %v3366
  %v3739 = vmul.f32 %v485, %v3366
  %v3740 = vmul.f32 %v489, %v3371
  %v3741 = vmul.f32 %v491, %v3371
  %v3742 = vmul.f32 %v493, %v3376
  %v3743 = vmul.f32 %v495, %v3376
  %v3744 = vmul.f32 %v499, %v3381
  %v3745 = vmul.f32 %v501, %v3381
  %v3746 = vmul.f32 %v503, %v3386
  %v3747 = vmul.f32 %v505, %v3386
  %v3748 = vmul.f32 %v509, %v3391
  %v3749 = vmul.f32 %v511, %v3391
  %v3750 = vmul.f32 %v513, %v3396
  %v3751 = vmul.f32 %v515, %v3396
  %v3752 = vmul.f32 %v519, %v3401
  %v3753 = vmul.f32 %v521, %v3401
  %v3754 = vmul.f32 %v523, %v3406
  %v3755 = vmul.f32 %v525, %v3406
  %v3756 = vmul.f32 %v529, %v3411
  %v3757 = vmul.f32 %v531, %v3411
  %v3758 = vmul.f32 %v533, %v3416
  %v3759 = vmul.f32 %v535, %v3416
  %v3760 = vmul.f32 %v539, %v3421
  %v3761 = vmul.f32 %v541, %v3421
  %v3762 = vmul.f32 %v543, %v3426
  %v3763 = vmul.f32 %v545, %v3426
  %v3764 = vmul.f32 %v549, %v3431
  %v3765 = vmul.f32 %v551, %v3431
  %v3766 = vmul.f32 %v553, %v3436
  %v3767 = vmul.f32 %v555, %v3436
  %v3768 = vmul.f32 %v559, %v3441
  %v3769 = vmul.f32 %v561, %v3441
  %v3770 = vmul.f32 %v563, %v3446
  %v3771 = vmul.f32 %v565, %v3446
  %v3772 = vmul.f32 %v569, %v3451
  %v3773 = vmul.f32 %v571, %v3451
  %v3774 = vmul.f32 %v573, %v3456
  %v3775 = vmul.f32 %v575, %v3456
  %v3776 = vmul.f32 %v579, %v3461
  %v3777 = vmul.f32 %v581, %v3461
  %v3778 = vmul.f32 %v583, %v3466
  %v3779 = vmul.f32 %v585, %v3466
  %v3780 = vmul.f32 %v589, %v3471
  %v3781 = vmul.f32 %v591, %v3471
  %v3782 = vmul.f32 %v593, %v3476
  %v3783 = vmul.f32 %v595, %v3476
  %v3784 = vmul.f32 %v599, %v3481
  %v3785 = vmul.f32 %v601, %v3481
  %v3786 = vmul.f32 %v603, %v3486
  %v3787 = vmul.f32 %v605, %v3486
  %v3788 = vmul.f32 %v609, %v3491
  %v3789 = vmul.f32 %v611, %v3491
  %v3790 = vmul.f32 %v613, %v3496
  %v3791 = vmul.f32 %v615, %v3496
  %v3792 = vmul.f32 %v619, %v3501
  %v3793 = vmul.f32 %v621, %v3501
  %v3794 = vmul.f32 %v623, %v3506
  %v3795 = vmul.f32 %v625, %v3506
  %v3796 = vmul.f32 %v629, %v3511
  %v3797 = vmul.f32 %v631, %v3511
  %v3798 = vmul.f32 %v633, %v3516
  %v3799 = vmul.f32 %v635, %v3516
  %v3800 = vmul.f32 %v639, %v3521
  %v3801 = vmul.f32 %v641, %v3521
  %v3802 = vmul.f32 %v643, %v3526
  %v3803 = vmul.f32 %v645, %v3526
  %v3804 = vmul.f32 %v649, %v3531
  %v3805 = vmul.f32 %v651, %v3531
  %v3806 = vmul.f32 %v653, %v3536
  %v3807 = vmul.f32 %v655, %v3536
  %v3808 = vmul.f32 %v659, %v3541
  %v3809 = vmul.f32 %v661, %v3541
  %v3810 = vmul.f32 %v663, %v3546
  %v3811 = vmul.f32 %v665, %v3546
  %v3812 = vmul.f32 %v669, %v3551
  %v3813 = vmul.f32 %v671, %v3551
  %v3814 = vmul.f32 %v673, %v3556
  %v3815 = vmul.f32 %v675, %v3556
  %v3816 = vmul.f32 %v679, %v3561
  %v3817 = vmul.f32 %v681, %v3561
  %v3818 = vmul.f32 %v683, %v3566
  %v3819 = vmul.f32 %v685, %v3566
  %v3820 = vmul.f32 %v689, %v3571
  %v3821 = vmul.f32 %v691, %v3571
  %v3822 = vmul.f32 %v693, %v3576
  %v3823 = vmul.f32 %v695, %v3576
  %v3824 = vmul.f32 %v699, %v3581
  %v3825 = vmul.f32 %v701, %v3581
  %v3826 = vmul.f32 %v703, %v3586
  %v3827 = vmul.f32 %v705, %v3586
  %v3828 = vmul.f32 %v709, %v3591
  %v3829 = vmul.f32 %v711, %v3591
  %v3830 = vmul.f32 %v713, %v3596
  %v3831 = vmul.f32 %v715, %v3596
  %v3832 = vmul.f32 %v719, %v3601
  %v3833 = vmul.f32 %v721, %v3601
  %v3834 = vmul.f32 %v723, %v3606
  %v3835 = vmul.f32 %v725, %v3606
  %v3836 = vmul.f32 %v729, %v3611
  %v3837 = vmul.f32 %v731, %v3611
  %v3838 = vmul.f32 %v733, %v3616
  %v3839 = vmul.f32 %v735, %v3616
  %v3840 = vmul.f32 %v739, %v3621
  %v3841 = vmul.f32 %v741, %v3621
  %v3842 = vmul.f32 %v743, %v3626
  %v3843 = vmul.f32 %v745, %v3626
  %v3844 = vmul.f32 %v749, %v3631
  %v3845 = vmul.f32 %v751, %v3631
  %v3846 = vmul.f32 %v753, %v3636
  %v3847 = vmul.f32 %v755, %v3636
  %v3848 = vmul.f32 %v759, %v3641
  %v3849 = vmul.f32 %v761, %v3641
  %v3850 = vmul.f32 %v763, %v3646
  %v3851 = vmul.f32 %v765, %v3646
  %v3852 = vmul.f32 %v769, %v3651
  %v3853 = vmul.f32 %v771, %v3651
  %v3854 = vmul.f32 %v773, %v3656
  %v3855 = vmul.f32 %v775, %v3656
  %v3856 = vmul.f32 %v779, %v3661
  %v3857 = vmul.f32 %v781, %v3661
  %v3858 = vmul.f32 %v783, %v3666
  %v3859 = vmul.f32 %v785, %v3666
  %3861 = vset.pattern.permute.xlu0 1
  %3862 = vperm.xlu0 %3861, %v3092
  %v3863 = vpop.permute.xlu0 %3862
  %3866 = vset.pattern.permute.xlu0 1
  %3867 = vperm.xlu0 %3866, %v3093
  %v3868 = vpop.permute.xlu0 %3867
  %3871 = vset.pattern.permute.xlu0 1
  %3872 = vperm.xlu0 %3871, %v3094
  %v3873 = vpop.permute.xlu0 %3872
  %3876 = vset.pattern.permute.xlu0 1
  %3877 = vperm.xlu0 %3876, %v3095
  %v3878 = vpop.permute.xlu0 %3877
  %3881 = vset.pattern.permute.xlu0 1
  %3882 = vperm.xlu0 %3881, %v3096
  %v3883 = vpop.permute.xlu0 %3882
  %3886 = vset.pattern.permute.xlu0 1
  %3887 = vperm.xlu0 %3886, %v3097
  %v3888 = vpop.permute.xlu0 %3887
  %3891 = vset.pattern.permute.xlu0 1
  %3892 = vperm.xlu0 %3891, %v3098
  %v3893 = vpop.permute.xlu0 %3892
  %3896 = vset.pattern.permute.xlu0 1
  %3897 = vperm.xlu0 %3896, %v3099
  %v3898 = vpop.permute.xlu0 %3897
  %3901 = vset.pattern.permute.xlu0 1
  %3902 = vperm.xlu0 %3901, %v3100
  %v3903 = vpop.permute.xlu0 %3902
  %3906 = vset.pattern.permute.xlu0 1
  %3907 = vperm.xlu0 %3906, %v3101
  %v3908 = vpop.permute.xlu0 %3907
  %3911 = vset.pattern.permute.xlu0 1
  %3912 = vperm.xlu0 %3911, %v3102
  %v3913 = vpop.permute.xlu0 %3912
  %3916 = vset.pattern.permute.xlu0 1
  %3917 = vperm.xlu0 %3916, %v3103
  %v3918 = vpop.permute.xlu0 %3917
  %3921 = vset.pattern.permute.xlu0 1
  %3922 = vperm.xlu0 %3921, %v3104
  %v3923 = vpop.permute.xlu0 %3922
  %3926 = vset.pattern.permute.xlu0 1
  %3927 = vperm.xlu0 %3926, %v3105
  %v3928 = vpop.permute.xlu0 %3927
  %3931 = vset.pattern.permute.xlu0 1
  %3932 = vperm.xlu0 %3931, %v3106
  %v3933 = vpop.permute.xlu0 %3932
  %3936 = vset.pattern.permute.xlu0 1
  %3937 = vperm.xlu0 %3936, %v3107
  %v3938 = vpop.permute.xlu0 %3937
  %3941 = vset.pattern.permute.xlu0 1
  %3942 = vperm.xlu0 %3941, %v3108
  %v3943 = vpop.permute.xlu0 %3942
  %3946 = vset.pattern.permute.xlu0 1
  %3947 = vperm.xlu0 %3946, %v3109
  %v3948 = vpop.permute.xlu0 %3947
  %3951 = vset.pattern.permute.xlu0 1
  %3952 = vperm.xlu0 %3951, %v3110
  %v3953 = vpop.permute.xlu0 %3952
  %3956 = vset.pattern.permute.xlu0 1
  %3957 = vperm.xlu0 %3956, %v3111
  %v3958 = vpop.permute.xlu0 %3957
  %3961 = vset.pattern.permute.xlu0 1
  %3962 = vperm.xlu0 %3961, %v3112
  %v3963 = vpop.permute.xlu0 %3962
  %3966 = vset.pattern.permute.xlu0 1
  %3967 = vperm.xlu0 %3966, %v3113
  %v3968 = vpop.permute.xlu0 %3967
  %3971 = vset.pattern.permute.xlu0 1
  %3972 = vperm.xlu0 %3971, %v3114
  %v3973 = vpop.permute.xlu0 %3972
  %3976 = vset.pattern.permute.xlu0 1
  %3977 = vperm.xlu0 %3976, %v3115
  %v3978 = vpop.permute.xlu0 %3977
  %3981 = vset.pattern.permute.xlu0 1
  %3982 = vperm.xlu0 %3981, %v3116
  %v3983 = vpop.permute.xlu0 %3982
  %3986 = vset.pattern.permute.xlu0 1
  %3987 = vperm.xlu0 %3986, %v3117
  %v3988 = vpop.permute.xlu0 %3987
  %3991 = vset.pattern.permute.xlu0 1
  %3992 = vperm.xlu0 %3991, %v3118
  %v3993 = vpop.permute.xlu0 %3992
  %3996 = vset.pattern.permute.xlu0 1
  %3997 = vperm.xlu0 %3996, %v3119
  %v3998 = vpop.permute.xlu0 %3997
  %4001 = vset.pattern.permute.xlu0 1
  %4002 = vperm.xlu0 %4001, %v3120
  %v4003 = vpop.permute.xlu0 %4002
  %4006 = vset.pattern.permute.xlu0 1
  %4007 = vperm.xlu0 %4006, %v3121
  %v4008 = vpop.permute.xlu0 %4007
  %4011 = vset.pattern.permute.xlu0 1
  %4012 = vperm.xlu0 %4011, %v3122
  %v4013 = vpop.permute.xlu0 %4012
  %4016 = vset.pattern.permute.xlu0 1
  %4017 = vperm.xlu0 %4016, %v3123
  %v4018 = vpop.permute.xlu0 %4017
  %4021 = vset.pattern.permute.xlu0 1
  %4022 = vperm.xlu0 %4021, %v3124
  %v4023 = vpop.permute.xlu0 %4022
  %4026 = vset.pattern.permute.xlu0 1
  %4027 = vperm.xlu0 %4026, %v3125
  %v4028 = vpop.permute.xlu0 %4027
  %4031 = vset.pattern.permute.xlu0 1
  %4032 = vperm.xlu0 %4031, %v3126
  %v4033 = vpop.permute.xlu0 %4032
  %4036 = vset.pattern.permute.xlu0 1
  %4037 = vperm.xlu0 %4036, %v3127
  %v4038 = vpop.permute.xlu0 %4037
  %4041 = vset.pattern.permute.xlu0 1
  %4042 = vperm.xlu0 %4041, %v3128
  %v4043 = vpop.permute.xlu0 %4042
  %4046 = vset.pattern.permute.xlu0 1
  %4047 = vperm.xlu0 %4046, %v3129
  %v4048 = vpop.permute.xlu0 %4047
  %4051 = vset.pattern.permute.xlu0 1
  %4052 = vperm.xlu0 %4051, %v3130
  %v4053 = vpop.permute.xlu0 %4052
  %4056 = vset.pattern.permute.xlu0 1
  %4057 = vperm.xlu0 %4056, %v3131
  %v4058 = vpop.permute.xlu0 %4057
  %4061 = vset.pattern.permute.xlu0 1
  %4062 = vperm.xlu0 %4061, %v3132
  %v4063 = vpop.permute.xlu0 %4062
  %4066 = vset.pattern.permute.xlu0 1
  %4067 = vperm.xlu0 %4066, %v3133
  %v4068 = vpop.permute.xlu0 %4067
  %4071 = vset.pattern.permute.xlu0 1
  %4072 = vperm.xlu0 %4071, %v3134
  %v4073 = vpop.permute.xlu0 %4072
  %4076 = vset.pattern.permute.xlu0 1
  %4077 = vperm.xlu0 %4076, %v3135
  %v4078 = vpop.permute.xlu0 %4077
  %4081 = vset.pattern.permute.xlu0 1
  %4082 = vperm.xlu0 %4081, %v3136
  %v4083 = vpop.permute.xlu0 %4082
  %4086 = vset.pattern.permute.xlu0 1
  %4087 = vperm.xlu0 %4086, %v3137
  %v4088 = vpop.permute.xlu0 %4087
  %4091 = vset.pattern.permute.xlu0 1
  %4092 = vperm.xlu0 %4091, %v3138
  %v4093 = vpop.permute.xlu0 %4092
  %4096 = vset.pattern.permute.xlu0 1
  %4097 = vperm.xlu0 %4096, %v3139
  %v4098 = vpop.permute.xlu0 %4097
  %4101 = vset.pattern.permute.xlu0 1
  %4102 = vperm.xlu0 %4101, %v3140
  %v4103 = vpop.permute.xlu0 %4102
  %4106 = vset.pattern.permute.xlu0 1
  %4107 = vperm.xlu0 %4106, %v3141
  %v4108 = vpop.permute.xlu0 %4107
  %4111 = vset.pattern.permute.xlu0 1
  %4112 = vperm.xlu0 %4111, %v3142
  %v4113 = vpop.permute.xlu0 %4112
  %4116 = vset.pattern.permute.xlu0 1
  %4117 = vperm.xlu0 %4116, %v3143
  %v4118 = vpop.permute.xlu0 %4117
  %4121 = vset.pattern.permute.xlu0 1
  %4122 = vperm.xlu0 %4121, %v3144
  %v4123 = vpop.permute.xlu0 %4122
  %4126 = vset.pattern.permute.xlu0 1
  %4127 = vperm.xlu0 %4126, %v3145
  %v4128 = vpop.permute.xlu0 %4127
  %4131 = vset.pattern.permute.xlu0 1
  %4132 = vperm.xlu0 %4131, %v3146
  %v4133 = vpop.permute.xlu0 %4132
  %4136 = vset.pattern.permute.xlu0 1
  %4137 = vperm.xlu0 %4136, %v3147
  %v4138 = vpop.permute.xlu0 %4137
  %4141 = vset.pattern.permute.xlu0 1
  %4142 = vperm.xlu0 %4141, %v3148
  %v4143 = vpop.permute.xlu0 %4142
  %4146 = vset.pattern.permute.xlu0 1
  %4147 = vperm.xlu0 %4146, %v3149
  %v4148 = vpop.permute.xlu0 %4147
  %4151 = vset.pattern.permute.xlu0 1
  %4152 = vperm.xlu0 %4151, %v3150
  %v4153 = vpop.permute.xlu0 %4152
  %4156 = vset.pattern.permute.xlu0 1
  %4157 = vperm.xlu0 %4156, %v3151
  %v4158 = vpop.permute.xlu0 %4157
  %4161 = vset.pattern.permute.xlu0 1
  %4162 = vperm.xlu0 %4161, %v3152
  %v4163 = vpop.permute.xlu0 %4162
  %4166 = vset.pattern.permute.xlu0 1
  %4167 = vperm.xlu0 %4166, %v3153
  %v4168 = vpop.permute.xlu0 %4167
  %4171 = vset.pattern.permute.xlu0 1
  %4172 = vperm.xlu0 %4171, %v3154
  %v4173 = vpop.permute.xlu0 %4172
  %4176 = vset.pattern.permute.xlu0 1
  %4177 = vperm.xlu0 %4176, %v3155
  %v4178 = vpop.permute.xlu0 %4177
  %4181 = vset.pattern.permute.xlu0 1
  %4182 = vperm.xlu0 %4181, %v3156
  %v4183 = vpop.permute.xlu0 %4182
  %4186 = vset.pattern.permute.xlu0 1
  %4187 = vperm.xlu0 %4186, %v3157
  %v4188 = vpop.permute.xlu0 %4187
  %4191 = vset.pattern.permute.xlu0 1
  %4192 = vperm.xlu0 %4191, %v3158
  %v4193 = vpop.permute.xlu0 %4192
  %4196 = vset.pattern.permute.xlu0 1
  %4197 = vperm.xlu0 %4196, %v3159
  %v4198 = vpop.permute.xlu0 %4197
  %4201 = vset.pattern.permute.xlu0 1
  %4202 = vperm.xlu0 %4201, %v3160
  %v4203 = vpop.permute.xlu0 %4202
  %4206 = vset.pattern.permute.xlu0 1
  %4207 = vperm.xlu0 %4206, %v3161
  %v4208 = vpop.permute.xlu0 %4207
  %4211 = vset.pattern.permute.xlu0 1
  %4212 = vperm.xlu0 %4211, %v3162
  %v4213 = vpop.permute.xlu0 %4212
  %4216 = vset.pattern.permute.xlu0 1
  %4217 = vperm.xlu0 %4216, %v3163
  %v4218 = vpop.permute.xlu0 %4217
  %4221 = vset.pattern.permute.xlu0 1
  %4222 = vperm.xlu0 %4221, %v3164
  %v4223 = vpop.permute.xlu0 %4222
  %4226 = vset.pattern.permute.xlu0 1
  %4227 = vperm.xlu0 %4226, %v3165
  %v4228 = vpop.permute.xlu0 %4227
  %4231 = vset.pattern.permute.xlu0 1
  %4232 = vperm.xlu0 %4231, %v3166
  %v4233 = vpop.permute.xlu0 %4232
  %4236 = vset.pattern.permute.xlu0 1
  %4237 = vperm.xlu0 %4236, %v3167
  %v4238 = vpop.permute.xlu0 %4237
  %4241 = vset.pattern.permute.xlu0 1
  %4242 = vperm.xlu0 %4241, %v3168
  %v4243 = vpop.permute.xlu0 %4242
  %4246 = vset.pattern.permute.xlu0 1
  %4247 = vperm.xlu0 %4246, %v3169
  %v4248 = vpop.permute.xlu0 %4247
  %4251 = vset.pattern.permute.xlu0 1
  %4252 = vperm.xlu0 %4251, %v3170
  %v4253 = vpop.permute.xlu0 %4252
  %4256 = vset.pattern.permute.xlu0 1
  %4257 = vperm.xlu0 %4256, %v3171
  %v4258 = vpop.permute.xlu0 %4257
  %4261 = vset.pattern.permute.xlu0 1
  %4262 = vperm.xlu0 %4261, %v3172
  %v4263 = vpop.permute.xlu0 %4262
  %4266 = vset.pattern.permute.xlu0 1
  %4267 = vperm.xlu0 %4266, %v3173
  %v4268 = vpop.permute.xlu0 %4267
  %4271 = vset.pattern.permute.xlu0 1
  %4272 = vperm.xlu0 %4271, %v3174
  %v4273 = vpop.permute.xlu0 %4272
  %4276 = vset.pattern.permute.xlu0 1
  %4277 = vperm.xlu0 %4276, %v3175
  %v4278 = vpop.permute.xlu0 %4277
  %4281 = vset.pattern.permute.xlu0 1
  %4282 = vperm.xlu0 %4281, %v3176
  %v4283 = vpop.permute.xlu0 %4282
  %4286 = vset.pattern.permute.xlu0 1
  %4287 = vperm.xlu0 %4286, %v3177
  %v4288 = vpop.permute.xlu0 %4287
  %4291 = vset.pattern.permute.xlu0 1
  %4292 = vperm.xlu0 %4291, %v3178
  %v4293 = vpop.permute.xlu0 %4292
  %4296 = vset.pattern.permute.xlu0 1
  %4297 = vperm.xlu0 %4296, %v3179
  %v4298 = vpop.permute.xlu0 %4297
  %4301 = vset.pattern.permute.xlu0 1
  %4302 = vperm.xlu0 %4301, %v3180
  %v4303 = vpop.permute.xlu0 %4302
  %4306 = vset.pattern.permute.xlu0 1
  %4307 = vperm.xlu0 %4306, %v3181
  %v4308 = vpop.permute.xlu0 %4307
  %4311 = vset.pattern.permute.xlu0 1
  %4312 = vperm.xlu0 %4311, %v3182
  %v4313 = vpop.permute.xlu0 %4312
  %4316 = vset.pattern.permute.xlu0 1
  %4317 = vperm.xlu0 %4316, %v3183
  %v4318 = vpop.permute.xlu0 %4317
  %4321 = vset.pattern.permute.xlu0 1
  %4322 = vperm.xlu0 %4321, %v3184
  %v4323 = vpop.permute.xlu0 %4322
  %4326 = vset.pattern.permute.xlu0 1
  %4327 = vperm.xlu0 %4326, %v3185
  %v4328 = vpop.permute.xlu0 %4327
  %4331 = vset.pattern.permute.xlu0 1
  %4332 = vperm.xlu0 %4331, %v3186
  %v4333 = vpop.permute.xlu0 %4332
  %4336 = vset.pattern.permute.xlu0 1
  %4337 = vperm.xlu0 %4336, %v3187
  %v4338 = vpop.permute.xlu0 %4337
  %v4340 = vadd.f32 %v3668, %v3863
  %v4341 = vadd.f32 %v3669, %v3863
  %v4342 = vadd.f32 %v3670, %v3868
  %v4343 = vadd.f32 %v3671, %v3868
  %v4344 = vadd.f32 %v3672, %v3873
  %v4345 = vadd.f32 %v3673, %v3873
  %v4346 = vadd.f32 %v3674, %v3878
  %v4347 = vadd.f32 %v3675, %v3878
  %v4348 = vadd.f32 %v3676, %v3883
  %v4349 = vadd.f32 %v3677, %v3883
  %v4350 = vadd.f32 %v3678, %v3888
  %v4351 = vadd.f32 %v3679, %v3888
  %v4352 = vadd.f32 %v3680, %v3893
  %v4353 = vadd.f32 %v3681, %v3893
  %v4354 = vadd.f32 %v3682, %v3898
  %v4355 = vadd.f32 %v3683, %v3898
  %v4356 = vadd.f32 %v3684, %v3903
  %v4357 = vadd.f32 %v3685, %v3903
  %v4358 = vadd.f32 %v3686, %v3908
  %v4359 = vadd.f32 %v3687, %v3908
  %v4360 = vadd.f32 %v3688, %v3913
  %v4361 = vadd.f32 %v3689, %v3913
  %v4362 = vadd.f32 %v3690, %v3918
  %v4363 = vadd.f32 %v3691, %v3918
  %v4364 = vadd.f32 %v3692, %v3923
  %v4365 = vadd.f32 %v3693, %v3923
  %v4366 = vadd.f32 %v3694, %v3928
  %v4367 = vadd.f32 %v3695, %v3928
  %v4368 = vadd.f32 %v3696, %v3933
  %v4369 = vadd.f32 %v3697, %v3933
  %v4370 = vadd.f32 %v3698, %v3938
  %v4371 = vadd.f32 %v3699, %v3938
  %v4372 = vadd.f32 %v3700, %v3943
  %v4373 = vadd.f32 %v3701, %v3943
  %v4374 = vadd.f32 %v3702, %v3948
  %v4375 = vadd.f32 %v3703, %v3948
  %v4376 = vadd.f32 %v3704, %v3953
  %v4377 = vadd.f32 %v3705, %v3953
  %v4378 = vadd.f32 %v3706, %v3958
  %v4379 = vadd.f32 %v3707, %v3958
  %v4380 = vadd.f32 %v3708, %v3963
  %v4381 = vadd.f32 %v3709, %v3963
  %v4382 = vadd.f32 %v3710, %v3968
  %v4383 = vadd.f32 %v3711, %v3968
  %v4384 = vadd.f32 %v3712, %v3973
  %v4385 = vadd.f32 %v3713, %v3973
  %v4386 = vadd.f32 %v3714, %v3978
  %v4387 = vadd.f32 %v3715, %v3978
  %v4388 = vadd.f32 %v3716, %v3983
  %v4389 = vadd.f32 %v3717, %v3983
  %v4390 = vadd.f32 %v3718, %v3988
  %v4391 = vadd.f32 %v3719, %v3988
  %v4392 = vadd.f32 %v3720, %v3993
  %v4393 = vadd.f32 %v3721, %v3993
  %v4394 = vadd.f32 %v3722, %v3998
  %v4395 = vadd.f32 %v3723, %v3998
  %v4396 = vadd.f32 %v3724, %v4003
  %v4397 = vadd.f32 %v3725, %v4003
  %v4398 = vadd.f32 %v3726, %v4008
  %v4399 = vadd.f32 %v3727, %v4008
  %v4400 = vadd.f32 %v3728, %v4013
  %v4401 = vadd.f32 %v3729, %v4013
  %v4402 = vadd.f32 %v3730, %v4018
  %v4403 = vadd.f32 %v3731, %v4018
  %v4404 = vadd.f32 %v3732, %v4023
  %v4405 = vadd.f32 %v3733, %v4023
  %v4406 = vadd.f32 %v3734, %v4028
  %v4407 = vadd.f32 %v3735, %v4028
  %v4408 = vadd.f32 %v3736, %v4033
  %v4409 = vadd.f32 %v3737, %v4033
  %v4410 = vadd.f32 %v3738, %v4038
  %v4411 = vadd.f32 %v3739, %v4038
  %v4412 = vadd.f32 %v3740, %v4043
  %v4413 = vadd.f32 %v3741, %v4043
  %v4414 = vadd.f32 %v3742, %v4048
  %v4415 = vadd.f32 %v3743, %v4048
  %v4416 = vadd.f32 %v3744, %v4053
  %v4417 = vadd.f32 %v3745, %v4053
  %v4418 = vadd.f32 %v3746, %v4058
  %v4419 = vadd.f32 %v3747, %v4058
  %v4420 = vadd.f32 %v3748, %v4063
  %v4421 = vadd.f32 %v3749, %v4063
  %v4422 = vadd.f32 %v3750, %v4068
  %v4423 = vadd.f32 %v3751, %v4068
  %v4424 = vadd.f32 %v3752, %v4073
  %v4425 = vadd.f32 %v3753, %v4073
  %v4426 = vadd.f32 %v3754, %v4078
  %v4427 = vadd.f32 %v3755, %v4078
  %v4428 = vadd.f32 %v3756, %v4083
  %v4429 = vadd.f32 %v3757, %v4083
  %v4430 = vadd.f32 %v3758, %v4088
  %v4431 = vadd.f32 %v3759, %v4088
  %v4432 = vadd.f32 %v3760, %v4093
  %v4433 = vadd.f32 %v3761, %v4093
  %v4434 = vadd.f32 %v3762, %v4098
  %v4435 = vadd.f32 %v3763, %v4098
  %v4436 = vadd.f32 %v3764, %v4103
  %v4437 = vadd.f32 %v3765, %v4103
  %v4438 = vadd.f32 %v3766, %v4108
  %v4439 = vadd.f32 %v3767, %v4108
  %v4440 = vadd.f32 %v3768, %v4113
  %v4441 = vadd.f32 %v3769, %v4113
  %v4442 = vadd.f32 %v3770, %v4118
  %v4443 = vadd.f32 %v3771, %v4118
  %v4444 = vadd.f32 %v3772, %v4123
  %v4445 = vadd.f32 %v3773, %v4123
  %v4446 = vadd.f32 %v3774, %v4128
  %v4447 = vadd.f32 %v3775, %v4128
  %v4448 = vadd.f32 %v3776, %v4133
  %v4449 = vadd.f32 %v3777, %v4133
  %v4450 = vadd.f32 %v3778, %v4138
  %v4451 = vadd.f32 %v3779, %v4138
  %v4452 = vadd.f32 %v3780, %v4143
  %v4453 = vadd.f32 %v3781, %v4143
  %v4454 = vadd.f32 %v3782, %v4148
  %v4455 = vadd.f32 %v3783, %v4148
  %v4456 = vadd.f32 %v3784, %v4153
  %v4457 = vadd.f32 %v3785, %v4153
  %v4458 = vadd.f32 %v3786, %v4158
  %v4459 = vadd.f32 %v3787, %v4158
  %v4460 = vadd.f32 %v3788, %v4163
  %v4461 = vadd.f32 %v3789, %v4163
  %v4462 = vadd.f32 %v3790, %v4168
  %v4463 = vadd.f32 %v3791, %v4168
  %v4464 = vadd.f32 %v3792, %v4173
  %v4465 = vadd.f32 %v3793, %v4173
  %v4466 = vadd.f32 %v3794, %v4178
  %v4467 = vadd.f32 %v3795, %v4178
  %v4468 = vadd.f32 %v3796, %v4183
  %v4469 = vadd.f32 %v3797, %v4183
  %v4470 = vadd.f32 %v3798, %v4188
  %v4471 = vadd.f32 %v3799, %v4188
  %v4472 = vadd.f32 %v3800, %v4193
  %v4473 = vadd.f32 %v3801, %v4193
  %v4474 = vadd.f32 %v3802, %v4198
  %v4475 = vadd.f32 %v3803, %v4198
  %v4476 = vadd.f32 %v3804, %v4203
  %v4477 = vadd.f32 %v3805, %v4203
  %v4478 = vadd.f32 %v3806, %v4208
  %v4479 = vadd.f32 %v3807, %v4208
  %v4480 = vadd.f32 %v3808, %v4213
  %v4481 = vadd.f32 %v3809, %v4213
  %v4482 = vadd.f32 %v3810, %v4218
  %v4483 = vadd.f32 %v3811, %v4218
  %v4484 = vadd.f32 %v3812, %v4223
  %v4485 = vadd.f32 %v3813, %v4223
  %v4486 = vadd.f32 %v3814, %v4228
  %v4487 = vadd.f32 %v3815, %v4228
  %v4488 = vadd.f32 %v3816, %v4233
  %v4489 = vadd.f32 %v3817, %v4233
  %v4490 = vadd.f32 %v3818, %v4238
  %v4491 = vadd.f32 %v3819, %v4238
  %v4492 = vadd.f32 %v3820, %v4243
  %v4493 = vadd.f32 %v3821, %v4243
  %v4494 = vadd.f32 %v3822, %v4248
  %v4495 = vadd.f32 %v3823, %v4248
  %v4496 = vadd.f32 %v3824, %v4253
  %v4497 = vadd.f32 %v3825, %v4253
  %v4498 = vadd.f32 %v3826, %v4258
  %v4499 = vadd.f32 %v3827, %v4258
  %v4500 = vadd.f32 %v3828, %v4263
  %v4501 = vadd.f32 %v3829, %v4263
  %v4502 = vadd.f32 %v3830, %v4268
  %v4503 = vadd.f32 %v3831, %v4268
  %v4504 = vadd.f32 %v3832, %v4273
  %v4505 = vadd.f32 %v3833, %v4273
  %v4506 = vadd.f32 %v3834, %v4278
  %v4507 = vadd.f32 %v3835, %v4278
  %v4508 = vadd.f32 %v3836, %v4283
  %v4509 = vadd.f32 %v3837, %v4283
  %v4510 = vadd.f32 %v3838, %v4288
  %v4511 = vadd.f32 %v3839, %v4288
  %v4512 = vadd.f32 %v3840, %v4293
  %v4513 = vadd.f32 %v3841, %v4293
  %v4514 = vadd.f32 %v3842, %v4298
  %v4515 = vadd.f32 %v3843, %v4298
  %v4516 = vadd.f32 %v3844, %v4303
  %v4517 = vadd.f32 %v3845, %v4303
  %v4518 = vadd.f32 %v3846, %v4308
  %v4519 = vadd.f32 %v3847, %v4308
  %v4520 = vadd.f32 %v3848, %v4313
  %v4521 = vadd.f32 %v3849, %v4313
  %v4522 = vadd.f32 %v3850, %v4318
  %v4523 = vadd.f32 %v3851, %v4318
  %v4524 = vadd.f32 %v3852, %v4323
  %v4525 = vadd.f32 %v3853, %v4323
  %v4526 = vadd.f32 %v3854, %v4328
  %v4527 = vadd.f32 %v3855, %v4328
  %v4528 = vadd.f32 %v3856, %v4333
  %v4529 = vadd.f32 %v3857, %v4333
  %v4530 = vadd.f32 %v3858, %v4338
  %v4531 = vadd.f32 %v3859, %v4338
  %4532 = vst [vmem:[%s4] sm:$0xff] %v4340
  %4533 = vst.msk [vmem:[%s4 + $0x8] sm:$0xff] %vm787, %v4341
  %4534 = vst [vmem:[%s4 + $0x10] sm:$0xff] %v4342
  %4535 = vst.msk [vmem:[%s4 + $0x18] sm:$0xff] %vm787, %v4343
  %4536 = vst [vmem:[%s4 + $0x20] sm:$0xff] %v4344
  %4537 = vst.msk [vmem:[%s4 + $0x28] sm:$0xff] %vm787, %v4345
  %4538 = vst [vmem:[%s4 + $0x30] sm:$0xff] %v4346
  %4539 = vst.msk [vmem:[%s4 + $0x38] sm:$0xff] %vm787, %v4347
  %4540 = vst [vmem:[%s4 + $0x40] sm:$0xff] %v4348
  %4541 = vst.msk [vmem:[%s4 + $0x48] sm:$0xff] %vm787, %v4349
  %4542 = vst [vmem:[%s4 + $0x50] sm:$0xff] %v4350
  %4543 = vst.msk [vmem:[%s4 + $0x58] sm:$0xff] %vm787, %v4351
  %4544 = vst [vmem:[%s4 + $0x60] sm:$0xff] %v4352
  %4545 = vst.msk [vmem:[%s4 + $0x68] sm:$0xff] %vm787, %v4353
  %4546 = vst [vmem:[%s4 + $0x70] sm:$0xff] %v4354
  %4547 = vst.msk [vmem:[%s4 + $0x78] sm:$0xff] %vm787, %v4355
  %4548 = vst [vmem:[%s4 + $0x80] sm:$0xff] %v4356
  %4549 = vst.msk [vmem:[%s4 + $0x88] sm:$0xff] %vm787, %v4357
  %4550 = vst [vmem:[%s4 + $0x90] sm:$0xff] %v4358
  %4551 = vst.msk [vmem:[%s4 + $0x98] sm:$0xff] %vm787, %v4359
  %4552 = vst [vmem:[%s4 + $0xa0] sm:$0xff] %v4360
  %4553 = vst.msk [vmem:[%s4 + $0xa8] sm:$0xff] %vm787, %v4361
  %4554 = vst [vmem:[%s4 + $0xb0] sm:$0xff] %v4362
  %4555 = vst.msk [vmem:[%s4 + $0xb8] sm:$0xff] %vm787, %v4363
  %4556 = vst [vmem:[%s4 + $0xc0] sm:$0xff] %v4364
  %4557 = vst.msk [vmem:[%s4 + $0xc8] sm:$0xff] %vm787, %v4365
  %4558 = vst [vmem:[%s4 + $0xd0] sm:$0xff] %v4366
  %4559 = vst.msk [vmem:[%s4 + $0xd8] sm:$0xff] %vm787, %v4367
  %4560 = vst [vmem:[%s4 + $0xe0] sm:$0xff] %v4368
  %4561 = vst.msk [vmem:[%s4 + $0xe8] sm:$0xff] %vm787, %v4369
  %4562 = vst [vmem:[%s4 + $0xf0] sm:$0xff] %v4370
  %4563 = vst.msk [vmem:[%s4 + $0xf8] sm:$0xff] %vm787, %v4371
  %4564 = vst [vmem:[%s4 + $0x100] sm:$0xff] %v4372
  %4565 = vst.msk [vmem:[%s4 + $0x108] sm:$0xff] %vm787, %v4373
  %4566 = vst [vmem:[%s4 + $0x110] sm:$0xff] %v4374
  %4567 = vst.msk [vmem:[%s4 + $0x118] sm:$0xff] %vm787, %v4375
  %4568 = vst [vmem:[%s4 + $0x120] sm:$0xff] %v4376
  %4569 = vst.msk [vmem:[%s4 + $0x128] sm:$0xff] %vm787, %v4377
  %4570 = vst [vmem:[%s4 + $0x130] sm:$0xff] %v4378
  %4571 = vst.msk [vmem:[%s4 + $0x138] sm:$0xff] %vm787, %v4379
  %4572 = vst [vmem:[%s4 + $0x140] sm:$0xff] %v4380
  %4573 = vst.msk [vmem:[%s4 + $0x148] sm:$0xff] %vm787, %v4381
  %4574 = vst [vmem:[%s4 + $0x150] sm:$0xff] %v4382
  %4575 = vst.msk [vmem:[%s4 + $0x158] sm:$0xff] %vm787, %v4383
  %4576 = vst [vmem:[%s4 + $0x160] sm:$0xff] %v4384
  %4577 = vst.msk [vmem:[%s4 + $0x168] sm:$0xff] %vm787, %v4385
  %4578 = vst [vmem:[%s4 + $0x170] sm:$0xff] %v4386
  %4579 = vst.msk [vmem:[%s4 + $0x178] sm:$0xff] %vm787, %v4387
  %4580 = vst [vmem:[%s4 + $0x180] sm:$0xff] %v4388
  %4581 = vst.msk [vmem:[%s4 + $0x188] sm:$0xff] %vm787, %v4389
  %4582 = vst [vmem:[%s4 + $0x190] sm:$0xff] %v4390
  %4583 = vst.msk [vmem:[%s4 + $0x198] sm:$0xff] %vm787, %v4391
  %4584 = vst [vmem:[%s4 + $0x1a0] sm:$0xff] %v4392
  %4585 = vst.msk [vmem:[%s4 + $0x1a8] sm:$0xff] %vm787, %v4393
  %4586 = vst [vmem:[%s4 + $0x1b0] sm:$0xff] %v4394
  %4587 = vst.msk [vmem:[%s4 + $0x1b8] sm:$0xff] %vm787, %v4395
  %4588 = vst [vmem:[%s4 + $0x1c0] sm:$0xff] %v4396
  %4589 = vst.msk [vmem:[%s4 + $0x1c8] sm:$0xff] %vm787, %v4397
  %4590 = vst [vmem:[%s4 + $0x1d0] sm:$0xff] %v4398
  %4591 = vst.msk [vmem:[%s4 + $0x1d8] sm:$0xff] %vm787, %v4399
  %4592 = vst [vmem:[%s4 + $0x1e0] sm:$0xff] %v4400
  %4593 = vst.msk [vmem:[%s4 + $0x1e8] sm:$0xff] %vm787, %v4401
  %4594 = vst [vmem:[%s4 + $0x1f0] sm:$0xff] %v4402
  %4595 = vst.msk [vmem:[%s4 + $0x1f8] sm:$0xff] %vm787, %v4403
  %4596 = vst [vmem:[%s4 + $0x200] sm:$0xff] %v4404
  %4597 = vst.msk [vmem:[%s4 + $0x208] sm:$0xff] %vm787, %v4405
  %4598 = vst [vmem:[%s4 + $0x210] sm:$0xff] %v4406
  %4599 = vst.msk [vmem:[%s4 + $0x218] sm:$0xff] %vm787, %v4407
  %4600 = vst [vmem:[%s4 + $0x220] sm:$0xff] %v4408
  %4601 = vst.msk [vmem:[%s4 + $0x228] sm:$0xff] %vm787, %v4409
  %4602 = vst [vmem:[%s4 + $0x230] sm:$0xff] %v4410
  %4603 = vst.msk [vmem:[%s4 + $0x238] sm:$0xff] %vm787, %v4411
  %4604 = vst [vmem:[%s4 + $0x240] sm:$0xff] %v4412
  %4605 = vst.msk [vmem:[%s4 + $0x248] sm:$0xff] %vm787, %v4413
  %4606 = vst [vmem:[%s4 + $0x250] sm:$0xff] %v4414
  %4607 = vst.msk [vmem:[%s4 + $0x258] sm:$0xff] %vm787, %v4415
  %4608 = vst [vmem:[%s4 + $0x260] sm:$0xff] %v4416
  %4609 = vst.msk [vmem:[%s4 + $0x268] sm:$0xff] %vm787, %v4417
  %4610 = vst [vmem:[%s4 + $0x270] sm:$0xff] %v4418
  %4611 = vst.msk [vmem:[%s4 + $0x278] sm:$0xff] %vm787, %v4419
  %4612 = vst [vmem:[%s4 + $0x280] sm:$0xff] %v4420
  %4613 = vst.msk [vmem:[%s4 + $0x288] sm:$0xff] %vm787, %v4421
  %4614 = vst [vmem:[%s4 + $0x290] sm:$0xff] %v4422
  %4615 = vst.msk [vmem:[%s4 + $0x298] sm:$0xff] %vm787, %v4423
  %4616 = vst [vmem:[%s4 + $0x2a0] sm:$0xff] %v4424
  %4617 = vst.msk [vmem:[%s4 + $0x2a8] sm:$0xff] %vm787, %v4425
  %4618 = vst [vmem:[%s4 + $0x2b0] sm:$0xff] %v4426
  %4619 = vst.msk [vmem:[%s4 + $0x2b8] sm:$0xff] %vm787, %v4427
  %4620 = vst [vmem:[%s4 + $0x2c0] sm:$0xff] %v4428
  %4621 = vst.msk [vmem:[%s4 + $0x2c8] sm:$0xff] %vm787, %v4429
  %4622 = vst [vmem:[%s4 + $0x2d0] sm:$0xff] %v4430
  %4623 = vst.msk [vmem:[%s4 + $0x2d8] sm:$0xff] %vm787, %v4431
  %4624 = vst [vmem:[%s4 + $0x2e0] sm:$0xff] %v4432
  %4625 = vst.msk [vmem:[%s4 + $0x2e8] sm:$0xff] %vm787, %v4433
  %4626 = vst [vmem:[%s4 + $0x2f0] sm:$0xff] %v4434
  %4627 = vst.msk [vmem:[%s4 + $0x2f8] sm:$0xff] %vm787, %v4435
  %4628 = vst [vmem:[%s4 + $0x300] sm:$0xff] %v4436
  %4629 = vst.msk [vmem:[%s4 + $0x308] sm:$0xff] %vm787, %v4437
  %4630 = vst [vmem:[%s4 + $0x310] sm:$0xff] %v4438
  %4631 = vst.msk [vmem:[%s4 + $0x318] sm:$0xff] %vm787, %v4439
  %4632 = vst [vmem:[%s4 + $0x320] sm:$0xff] %v4440
  %4633 = vst.msk [vmem:[%s4 + $0x328] sm:$0xff] %vm787, %v4441
  %4634 = vst [vmem:[%s4 + $0x330] sm:$0xff] %v4442
  %4635 = vst.msk [vmem:[%s4 + $0x338] sm:$0xff] %vm787, %v4443
  %4636 = vst [vmem:[%s4 + $0x340] sm:$0xff] %v4444
  %4637 = vst.msk [vmem:[%s4 + $0x348] sm:$0xff] %vm787, %v4445
  %4638 = vst [vmem:[%s4 + $0x350] sm:$0xff] %v4446
  %4639 = vst.msk [vmem:[%s4 + $0x358] sm:$0xff] %vm787, %v4447
  %4640 = vst [vmem:[%s4 + $0x360] sm:$0xff] %v4448
  %4641 = vst.msk [vmem:[%s4 + $0x368] sm:$0xff] %vm787, %v4449
  %4642 = vst [vmem:[%s4 + $0x370] sm:$0xff] %v4450
  %4643 = vst.msk [vmem:[%s4 + $0x378] sm:$0xff] %vm787, %v4451
  %4644 = vst [vmem:[%s4 + $0x380] sm:$0xff] %v4452
  %4645 = vst.msk [vmem:[%s4 + $0x388] sm:$0xff] %vm787, %v4453
  %4646 = vst [vmem:[%s4 + $0x390] sm:$0xff] %v4454
  %4647 = vst.msk [vmem:[%s4 + $0x398] sm:$0xff] %vm787, %v4455
  %4648 = vst [vmem:[%s4 + $0x3a0] sm:$0xff] %v4456
  %4649 = vst.msk [vmem:[%s4 + $0x3a8] sm:$0xff] %vm787, %v4457
  %4650 = vst [vmem:[%s4 + $0x3b0] sm:$0xff] %v4458
  %4651 = vst.msk [vmem:[%s4 + $0x3b8] sm:$0xff] %vm787, %v4459
  %4652 = vst [vmem:[%s4 + $0x3c0] sm:$0xff] %v4460
  %4653 = vst.msk [vmem:[%s4 + $0x3c8] sm:$0xff] %vm787, %v4461
  %4654 = vst [vmem:[%s4 + $0x3d0] sm:$0xff] %v4462
  %4655 = vst.msk [vmem:[%s4 + $0x3d8] sm:$0xff] %vm787, %v4463
  %4656 = vst [vmem:[%s4 + $0x3e0] sm:$0xff] %v4464
  %4657 = vst.msk [vmem:[%s4 + $0x3e8] sm:$0xff] %vm787, %v4465
  %4658 = vst [vmem:[%s4 + $0x3f0] sm:$0xff] %v4466
  %4659 = vst.msk [vmem:[%s4 + $0x3f8] sm:$0xff] %vm787, %v4467
  %4660 = vst [vmem:[%s4 + $0x400] sm:$0xff] %v4468
  %4661 = vst.msk [vmem:[%s4 + $0x408] sm:$0xff] %vm787, %v4469
  %4662 = vst [vmem:[%s4 + $0x410] sm:$0xff] %v4470
  %4663 = vst.msk [vmem:[%s4 + $0x418] sm:$0xff] %vm787, %v4471
  %4664 = vst [vmem:[%s4 + $0x420] sm:$0xff] %v4472
  %4665 = vst.msk [vmem:[%s4 + $0x428] sm:$0xff] %vm787, %v4473
  %4666 = vst [vmem:[%s4 + $0x430] sm:$0xff] %v4474
  %4667 = vst.msk [vmem:[%s4 + $0x438] sm:$0xff] %vm787, %v4475
  %4668 = vst [vmem:[%s4 + $0x440] sm:$0xff] %v4476
  %4669 = vst.msk [vmem:[%s4 + $0x448] sm:$0xff] %vm787, %v4477
  %4670 = vst [vmem:[%s4 + $0x450] sm:$0xff] %v4478
  %4671 = vst.msk [vmem:[%s4 + $0x458] sm:$0xff] %vm787, %v4479
  %4672 = vst [vmem:[%s4 + $0x460] sm:$0xff] %v4480
  %4673 = vst.msk [vmem:[%s4 + $0x468] sm:$0xff] %vm787, %v4481
  %4674 = vst [vmem:[%s4 + $0x470] sm:$0xff] %v4482
  %4675 = vst.msk [vmem:[%s4 + $0x478] sm:$0xff] %vm787, %v4483
  %4676 = vst [vmem:[%s4 + $0x480] sm:$0xff] %v4484
  %4677 = vst.msk [vmem:[%s4 + $0x488] sm:$0xff] %vm787, %v4485
  %4678 = vst [vmem:[%s4 + $0x490] sm:$0xff] %v4486
  %4679 = vst.msk [vmem:[%s4 + $0x498] sm:$0xff] %vm787, %v4487
  %4680 = vst [vmem:[%s4 + $0x4a0] sm:$0xff] %v4488
  %4681 = vst.msk [vmem:[%s4 + $0x4a8] sm:$0xff] %vm787, %v4489
  %4682 = vst [vmem:[%s4 + $0x4b0] sm:$0xff] %v4490
  %4683 = vst.msk [vmem:[%s4 + $0x4b8] sm:$0xff] %vm787, %v4491
  %4684 = vst [vmem:[%s4 + $0x4c0] sm:$0xff] %v4492
  %4685 = vst.msk [vmem:[%s4 + $0x4c8] sm:$0xff] %vm787, %v4493
  %4686 = vst [vmem:[%s4 + $0x4d0] sm:$0xff] %v4494
  %4687 = vst.msk [vmem:[%s4 + $0x4d8] sm:$0xff] %vm787, %v4495
  %4688 = vst [vmem:[%s4 + $0x4e0] sm:$0xff] %v4496
  %4689 = vst.msk [vmem:[%s4 + $0x4e8] sm:$0xff] %vm787, %v4497
  %4690 = vst [vmem:[%s4 + $0x4f0] sm:$0xff] %v4498
  %4691 = vst.msk [vmem:[%s4 + $0x4f8] sm:$0xff] %vm787, %v4499
  %4692 = vst [vmem:[%s4 + $0x500] sm:$0xff] %v4500
  %4693 = vst.msk [vmem:[%s4 + $0x508] sm:$0xff] %vm787, %v4501
  %4694 = vst [vmem:[%s4 + $0x510] sm:$0xff] %v4502
  %4695 = vst.msk [vmem:[%s4 + $0x518] sm:$0xff] %vm787, %v4503
  %4696 = vst [vmem:[%s4 + $0x520] sm:$0xff] %v4504
  %4697 = vst.msk [vmem:[%s4 + $0x528] sm:$0xff] %vm787, %v4505
  %4698 = vst [vmem:[%s4 + $0x530] sm:$0xff] %v4506
  %4699 = vst.msk [vmem:[%s4 + $0x538] sm:$0xff] %vm787, %v4507
  %4700 = vst [vmem:[%s4 + $0x540] sm:$0xff] %v4508
  %4701 = vst.msk [vmem:[%s4 + $0x548] sm:$0xff] %vm787, %v4509
  %4702 = vst [vmem:[%s4 + $0x550] sm:$0xff] %v4510
  %4703 = vst.msk [vmem:[%s4 + $0x558] sm:$0xff] %vm787, %v4511
  %4704 = vst [vmem:[%s4 + $0x560] sm:$0xff] %v4512
  %4705 = vst.msk [vmem:[%s4 + $0x568] sm:$0xff] %vm787, %v4513
  %4706 = vst [vmem:[%s4 + $0x570] sm:$0xff] %v4514
  %4707 = vst.msk [vmem:[%s4 + $0x578] sm:$0xff] %vm787, %v4515
  %4708 = vst [vmem:[%s4 + $0x580] sm:$0xff] %v4516
  %4709 = vst.msk [vmem:[%s4 + $0x588] sm:$0xff] %vm787, %v4517
  %4710 = vst [vmem:[%s4 + $0x590] sm:$0xff] %v4518
  %4711 = vst.msk [vmem:[%s4 + $0x598] sm:$0xff] %vm787, %v4519
  %4712 = vst [vmem:[%s4 + $0x5a0] sm:$0xff] %v4520
  %4713 = vst.msk [vmem:[%s4 + $0x5a8] sm:$0xff] %vm787, %v4521
  %4714 = vst [vmem:[%s4 + $0x5b0] sm:$0xff] %v4522
  %4715 = vst.msk [vmem:[%s4 + $0x5b8] sm:$0xff] %vm787, %v4523
  %4716 = vst [vmem:[%s4 + $0x5c0] sm:$0xff] %v4524
  %4717 = vst.msk [vmem:[%s4 + $0x5c8] sm:$0xff] %vm787, %v4525
  %4718 = vst [vmem:[%s4 + $0x5d0] sm:$0xff] %v4526
  %4719 = vst.msk [vmem:[%s4 + $0x5d8] sm:$0xff] %vm787, %v4527
  %4720 = vst [vmem:[%s4 + $0x5e0] sm:$0xff] %v4528
  %4721 = vst.msk [vmem:[%s4 + $0x5e8] sm:$0xff] %vm787, %v4529
  %4722 = vst [vmem:[%s4 + $0x5f0] sm:$0xff] %v4530
  %4723 = vst.msk [vmem:[%s4 + $0x5f8] sm:$0xff] %vm787, %v4531
  // Predicated region
  $region18: #{tpu_custom_call.1} parent=0 // pred_check
    _
  $region19: #{tpu_custom_call.1} parent=0 // pred_check_branch
    %4725 = sbr.rel (0) target = $region21
  $region20: #{tpu_custom_call.1} parent=0 // pred_region
    _
  $region21: #{tpu_custom_call.1} parent=0 // pred_fallthru
    _
  // Predicated region
  $region22: #{tpu_custom_call.1} parent=0 // pred_check
    _
  $region23: #{tpu_custom_call.1} parent=0 // pred_check_branch
    %4727 = sbr.rel (0) target = $region25
  $region24: #{tpu_custom_call.1} parent=0 // pred_region
    _
  $region25: #{tpu_custom_call.1} parent=0 // pred_fallthru
    _

</llo_original>
